<compile_context>
chip_gen: v6e
topology: v6e:2x2x1
jax: 0.10.0
libtpu: 0.0.40
codegen_flags: <defaults>
</compile_context>

<pallas_src>
import functools

import jax
import jax.numpy as jnp
import numpy as np
from jax import lax
from jax.experimental import pallas as pl
from jax.experimental.pallas import tpu as pltpu

# ---------------- config (mirrors CSETagger.__init__ dims) ----------------
EMBED_DIM = 32
IPA_DIM = 8
PHONO_DIM = 16
CHAR_CIN = IPA_DIM + PHONO_DIM          # conv input channels (24)
CHAR_CHANNELS = 16                      # config.char_cnn_channels
CHAR_KERNELS = (3, 5, 7)                # config.char_cnn_kernels (odd -> 'same' length)
CLASSES = 5
IPA_VOCAB = 20


def _round_up(x, m):
    return ((x + m - 1) // m) * m


# ---------------- fused kernel: im2col char CNN + head + argmax + masked CE ----------------
def _fused_tagger_kernel(x_ref, ipa_ref, ph_ref, cm_ref, y_ref, wm_ref,
                         wconv_ref, bconv_ref, wcls_ref, bcls_ref,
                         pred_ref, tok_ref, feat_scr,
                         *, L, K, P, C, O3, CIN, IPA):
    tb = x_ref.shape[1]
    f32 = jnp.float32
    bf16 = jnp.bfloat16
    halo = P * CIN                      # 72 rows of zero padding on each side
    win = K * CIN                       # 168-row im2col window

    # ---- build the zero-padded im2col feature scratch ((L+2P)*CIN, TB) fp32 ----
    # fp32 keeps all sub-writes 8-row aligned (24-channel blocks); windows cast to bf16 at use.
    feat_scr[0:halo, :] = jnp.zeros((halo, tb), f32)
    feat_scr[halo + L * CIN: halo + L * CIN + halo, :] = jnp.zeros((halo, tb), f32)
    for t in range(L):
        base = halo + t * CIN
        feat_scr[base:base + IPA, :] = ipa_ref[t].astype(f32)      # ipa already char-masked
        feat_scr[base + IPA:base + CIN, :] = ph_ref[t].astype(f32)

    # ---- constants hoisted out of the position loop (no repeated broadcast_in_dim) ----
    bias_b = jnp.broadcast_to(bconv_ref[...], (O3, tb))             # (48, TB) fp32
    wconv = wconv_ref[...]                                          # (48, 168) bf16

    # ---- fused 3-kernel Conv1d via im2col: ONE MXU dot per char position,
    #      swish on the EUP, char-mask, running masked max-pool over positions ----
    pooled = jnp.full((O3, tb), -jnp.inf, f32)
    for t in range(L):
        window = feat_scr[t * CIN:t * CIN + win, :].astype(bf16)    # (168, TB)
        acc = jnp.dot(wconv, window, preferred_element_type=f32) + bias_b
        act = acc * pl.reciprocal(1.0 + jnp.exp(-acc), approx=True)  # swish = x*sigmoid(x)
        act = act * cm_ref[t:t + 1, :]                               # zero padded chars
        pooled = jnp.maximum(pooled, act)                            # masked max-pool

    # ---- fused linear head: single (C,80) x (80,TB) bf16 dot on [x ; pooled] ----
    feats = jnp.concatenate([x_ref[...], pooled.astype(bf16)], axis=0)   # (80, TB) bf16
    logits = (jnp.dot(wcls_ref[...], feats, preferred_element_type=f32)
              + bcls_ref[...])                                            # (C, TB) fp32

    # ---- argmax (first max index on ties) via sublane reductions ----
    cls_iota = lax.broadcasted_iota(jnp.int32, (C, tb), 0)
    best = jnp.max(logits, axis=0, keepdims=True)                         # (1, TB)
    pred_f = jnp.min(jnp.where(logits == best, cls_iota.astype(f32), float(C)),
                     axis=0, keepdims=True)
    pred_ref[...] = pred_f.astype(jnp.int32)

    # ---- per-token masked CE; ignore_index=-100 contributes 0 (reduction='none' semantics) ----
    y = y_ref[...]                                                        # (1, TB) int32
    z = logits - best
    ssum = jnp.sum(jnp.exp(z), axis=0, keepdims=True)
    picked = jnp.sum(jnp.where(cls_iota == y, z, 0.0), axis=0, keepdims=True)
    nll = jnp.log(ssum) - picked                                          # -log_softmax[y]
    tok_ref[...] = jnp.where(y != -100, nll, 0.0) * wm_ref[...]


def _fused_tagger_pallas(x_T, ipa_T, ph_T, cm_T, y_row, m_row,
                         wconv, bconv, wcls, bcls, *, TB):
    E, NSp = x_T.shape
    L, IPA, _ = ipa_T.shape
    PH = ph_T.shape[1]
    CIN = IPA + PH
    O3, WIN = wconv.shape
    K = WIN // CIN
    P = K // 2
    C = wcls.shape[0]
    D = wcls.shape[1]
    G = NSp // TB

    kernel = functools.partial(_fused_tagger_kernel,
                               L=L, K=K, P=P, C=C, O3=O3, CIN=CIN, IPA=IPA)

    in_specs = [
        pl.BlockSpec((E, TB), lambda n: (0, n)),              # x         (32, NSp)   bf16
        pl.BlockSpec((L, IPA, TB), lambda n: (0, 0, n)),      # ipa       (L, 8, NSp) bf16 (masked)
        pl.BlockSpec((L, PH, TB), lambda n: (0, 0, n)),       # phono     (L,16, NSp) bf16
        pl.BlockSpec((L, TB), lambda n: (0, n)),              # char mask (L, NSp)    f32
        pl.BlockSpec((1, TB), lambda n: (0, n)),              # labels    (1, NSp)    i32
        pl.BlockSpec((1, TB), lambda n: (0, n)),              # word mask (1, NSp)    f32
        pl.BlockSpec((O3, WIN), lambda n: (0, 0)),            # conv W    (48, 168)   bf16
        pl.BlockSpec((O3, 1), lambda n: (0, 0)),              # conv b    (48, 1)     f32
        pl.BlockSpec((C, D), lambda n: (0, 0)),               # cls W     (5, 80)     bf16
        pl.BlockSpec((C, 1), lambda n: (0, 0)),               # cls b     (5, 1)      f32
    ]
    out_specs = (pl.BlockSpec((1, TB), lambda n: (0, n)),     # predictions (lane-dense)
                 pl.BlockSpec((1, TB), lambda n: (0, n)))     # per-token masked CE
    out_shape = (jax.ShapeDtypeStruct((1, NSp), jnp.int32),
                 jax.ShapeDtypeStruct((1, NSp), jnp.float32))
    scratch_shapes = [pltpu.VMEM(((L + 2 * P) * CIN, TB), jnp.float32)]   # (432, TB) im2col slab

    return pl.pallas_call(
        kernel,
        out_shape=out_shape,
        grid=(G,),
        in_specs=in_specs,
        out_specs=out_specs,
        scratch_shapes=scratch_shapes,
        compiler_params=pltpu.CompilerParams(dimension_semantics=("parallel",)),
    )(x_T, ipa_T, ph_T, cm_T, y_row, m_row, wconv, bconv, wcls, bcls)


# ---------------- parameter init (deterministic, synthetic) ----------------
def init_params(key):
    ks = jax.random.split(key, 10)
    params = {}
    params["ipa_emb"] = jax.random.normal(ks[0], (IPA_VOCAB, IPA_DIM), jnp.float32) * 0.1

    conv_w, conv_b = [], []
    for i, k in enumerate(CHAR_KERNELS):
        w = jax.random.normal(ks[1 + i], (CHAR_CHANNELS, CHAR_CIN, k), jnp.float32) * 0.1  # torch (O,Cin,k)
        b = jax.random.normal(ks[4 + i], (CHAR_CHANNELS,), jnp.float32) * 0.1
        conv_w.append(w)
        conv_b.append(b)
    params["conv_w"] = conv_w          # torch layout, used by the pure-JAX reference
    params["conv_b"] = conv_b

    D = EMBED_DIM + 3 * CHAR_CHANNELS
    w = jax.random.normal(ks[7], (CLASSES, D), jnp.float32) * 0.1          # torch Linear (out, in)
    b = jax.random.normal(ks[8], (CLASSES,), jnp.float32) * 0.1
    params["cls_w"] = w
    params["cls_b"] = b

    # ---- kernel-ready packed forms ----
    K = max(CHAR_KERNELS)
    P = K // 2
    O = CHAR_CHANNELS
    wpack = jnp.zeros((K, 3 * O, CHAR_CIN), jnp.float32)                   # (7, 48, 24)
    for i, (wi, ki) in enumerate(zip(conv_w, CHAR_KERNELS)):
        off = P - ki // 2                                                  # center smaller kernels
        wpack = wpack.at[off:off + ki, i * O:(i + 1) * O, :].set(jnp.transpose(wi, (2, 0, 1)))
    # im2col weight: row index = tap*CIN + channel  -> (48, K*24) = (48, 168)
    params["conv_w_im2col"] = jnp.transpose(wpack, (1, 0, 2)).reshape(3 * O, K * CHAR_CIN).astype(jnp.bfloat16)
    params["conv_b_packed"] = jnp.concatenate(conv_b).reshape(3 * O, 1)    # (48, 1) f32
    params["cls_w_bf"] = w.astype(jnp.bfloat16)                            # (C, 80) bf16 (un-split)
    params["cls_b_col"] = b.reshape(CLASSES, 1)                            # (C, 1) f32
    return params


# ---------------- forward (gather + layout glue in JAX, everything else in one Pallas kernel) ----
def cse_tagger_forward(params, x, y, word_mask, x_ipa, x_phono):
    N, S, E = x.shape
    L = x_phono.shape[2]
    NS = N * S

    # words per tile: lane-dense (multiple of 128), up to 512, and >=2 grid steps when
    # possible so the single "parallel" grid axis shards across v7x's two TensorCores.
    NSp_min = _round_up(NS, 128)
    if NSp_min <= 128:
        TB = 128
    else:
        TB = min(512, _round_up(NSp_min // 2, 128))
    NSp = _round_up(NS, TB)

    # char mask exactly as the module: sum(phono features) != 0  (computed once, in fp32)
    char_mask = (jnp.sum(x_phono, axis=-1) != 0.0).astype(jnp.float32)     # (N, S, L)
    # embedding gather stays in XLA glue (arbitrary gather has no clean tiled-Pallas form);
    # the mask multiply + bf16 cast happen BEFORE the layout transpose to halve its bytes.
    ipa = params["ipa_emb"][x_ipa] * char_mask[..., None]                  # (N, S, L, 8) f32

    x_T = x.astype(jnp.bfloat16).reshape(NS, E).T                          # (32, NS)  bf16
    ipa_T = jnp.transpose(ipa.astype(jnp.bfloat16).reshape(NS, L, IPA_DIM), (1, 2, 0))    # (L, 8, NS)
    ph_T = jnp.transpose(x_phono.astype(jnp.bfloat16).reshape(NS, L, PHONO_DIM), (1, 2, 0))  # (L,16,NS)
    cm_T = char_mask.reshape(NS, L).T                                      # (L, NS)   f32
    y_row = y.reshape(1, NS).astype(jnp.int32)
    m_row = word_mask.reshape(1, NS).astype(jnp.float32)

    pad = NSp - NS
    if pad:
        x_T = jnp.pad(x_T, ((0, 0), (0, pad)))
        ipa_T = jnp.pad(ipa_T, ((0, 0), (0, 0), (0, pad)))
        ph_T = jnp.pad(ph_T, ((0, 0), (0, 0), (0, pad)))
        cm_T = jnp.pad(cm_T, ((0, 0), (0, pad)))
        y_row = jnp.pad(y_row, ((0, 0), (0, pad)))
        m_row = jnp.pad(m_row, ((0, 0), (0, pad)))                         # padded words: mask=0 -> 0 loss

    pred_row, tok_loss = _fused_tagger_pallas(
        x_T, ipa_T, ph_T, cm_T, y_row, m_row,
        params["conv_w_im2col"], params["conv_b_packed"],
        params["cls_w_bf"], params["cls_b_col"], TB=TB)

    pred = pred_row[0, :NS].reshape(N, S)
    # Matches the module: denominator is sum(word_mask); y==-100 tokens contribute 0 to the
    # numerator only (CrossEntropyLoss(reduction='none', ignore_index=-100) semantics).
    loss = jnp.sum(tok_loss) / jnp.sum(word_mask)
    return pred, loss


# ---------------- pure-JAX reference (fp32, for sanity checking) ----------------
def reference_forward(params, x, y, word_mask, x_ipa, x_phono):
    N, S, _ = x.shape
    L = x_phono.shape[2]
    char_mask = jnp.where(jnp.sum(x_phono, axis=-1) != 0, 1.0, 0.0)
    ipa_feats = params["ipa_emb"][x_ipa] * char_mask[..., None]
    char_feats = jnp.concatenate([ipa_feats, x_phono], axis=-1)
    cf = char_feats.reshape(N * S, L, CHAR_CIN).transpose(0, 2, 1)         # NCW like PyTorch
    outs = []
    for w, b, k in zip(params["conv_w"], params["conv_b"], CHAR_KERNELS):
        conv = lax.conv_general_dilated(cf, w, window_strides=(1,),
                                        padding=[(k // 2, k // 2)],
                                        dimension_numbers=("NCH", "OIH", "NCH"),
                                        precision=lax.Precision.HIGHEST)
        conv = conv + b.reshape(1, CHAR_CHANNELS, 1)
        conv = conv * jax.nn.sigmoid(conv)
        conv = conv.transpose(0, 2, 1).reshape(N, S, L, CHAR_CHANNELS)
        conv = conv * char_mask[..., None]
        outs.append(jnp.max(conv, axis=2))
    word_char = jnp.concatenate(outs, axis=-1)
    feats = jnp.concatenate([x, word_char], axis=-1)
    logits = jnp.einsum("nsd,cd->nsc", feats, params["cls_w"],
                        precision=lax.Precision.HIGHEST) + params["cls_b"].reshape(1, 1, CLASSES)
    pred = jnp.argmax(logits, axis=-1)
    logsm = jax.nn.log_softmax(logits, axis=-1)
    safe_y = jnp.where(y == -100, 0, y)
    nll = -jnp.take_along_axis(logsm, safe_y[..., None], axis=-1)[..., 0]
    nll = jnp.where(y == -100, 0.0, nll)                                   # ignore_index, reduction='none'
    loss = jnp.sum(nll * word_mask) / jnp.sum(word_mask)
    return pred, loss, logits


if __name__ == "__main__":
    params = init_params(jax.random.PRNGKey(0))

    N, S, L = 2, 8, 12
    kx, ky, ki, kp = jax.random.split(jax.random.PRNGKey(0), 4)
    x = jax.random.normal(kx, (N, S, EMBED_DIM), jnp.float32)
    y = jax.random.randint(ky, (N, S), 0, CLASSES)
    word_mask = jnp.ones((N, S), jnp.float32).at[:, -2:].set(0.0)
    y = y.at[:, -2:].set(-100)                 # padded words carry ignore_index labels
    x_ipa = jax.random.randint(ki, (N, S, L), 0, IPA_VOCAB)
    x_phono = jax.random.normal(kp, (N, S, L, PHONO_DIM), jnp.float32)
    # zero out trailing char positions so char_mask has real padding to handle
    char_len_mask = (lax.broadcasted_iota(jnp.int32, (N, S, L), 2) < 9).astype(jnp.float32)
    x_phono = x_phono * char_len_mask[..., None]

    pred, loss = jax.jit(cse_tagger_forward)(params, x, y, word_mask, x_ipa, x_phono)
    jax.block_until_ready((pred, loss))

    ref_pred, ref_loss, ref_logits = reference_forward(params, x, y, word_mask, x_ipa, x_phono)
    np.testing.assert_allclose(np.asarray(loss), np.asarray(ref_loss), rtol=2e-2, atol=2e-2)

    pred_np, ref_pred_np = np.asarray(pred), np.asarray(ref_pred)
    mism = pred_np != ref_pred_np
    if np.any(mism):
        # bf16 MXU operands + approx swish reciprocal: only near-tied logits may flip argmax
        srt = np.sort(np.asarray(ref_logits), axis=-1)
        margin = srt[..., -1] - srt[..., -2]
        assert np.all(margin[mism] < 3e-2), "prediction mismatch beyond bf16 near-tie tolerance"

    print("KERNEL_OK")
</pallas_src>

<mosaic_0001>
module attributes {stable_mosaic.version = 11 : i64} {
  func.func @_fused_tagger_kernel(%arg0: i32, %arg1: memref<32x128xbf16, #tpu.memory_space<vmem>>, %arg2: memref<12x8x128xbf16, #tpu.memory_space<vmem>>, %arg3: memref<12x16x128xbf16, #tpu.memory_space<vmem>>, %arg4: memref<12x128xf32, #tpu.memory_space<vmem>>, %arg5: memref<1x128xi32, #tpu.memory_space<vmem>>, %arg6: memref<1x128xf32, #tpu.memory_space<vmem>>, %arg7: memref<48x168xbf16, #tpu.memory_space<vmem>>, %arg8: memref<48x1xf32, #tpu.memory_space<vmem>>, %arg9: memref<5x80xbf16, #tpu.memory_space<vmem>>, %arg10: memref<5x1xf32, #tpu.memory_space<vmem>>, %arg11: memref<1x128xi32, #tpu.memory_space<vmem>>, %arg12: memref<1x128xf32, #tpu.memory_space<vmem>>, %arg13: memref<432x128xf32, #tpu.memory_space<vmem>>) attributes {dimension_semantics = [#tpu.dimension_semantics<parallel>], iteration_bounds = array<i64: 1>, scalar_prefetch = 0 : i64, scratch_operands = 1 : i64, tpu.core_type = #tpu.core_type<tc>, window_params = [{transform_indices = @transform_0, window_bounds = array<i64: 32, 128>}, {transform_indices = @transform_1, window_bounds = array<i64: 12, 8, 128>}, {transform_indices = @transform_2, window_bounds = array<i64: 12, 16, 128>}, {transform_indices = @transform_3, window_bounds = array<i64: 12, 128>}, {transform_indices = @transform_4, window_bounds = array<i64: 1, 128>}, {transform_indices = @transform_5, window_bounds = array<i64: 1, 128>}, {pipeline_mode = #tpu.pipeline_mode<synchronous>, transform_indices = @transform_6, window_bounds = array<i64: 48, 168>}, {pipeline_mode = #tpu.pipeline_mode<synchronous>, transform_indices = @transform_7, window_bounds = array<i64: 48, 1>}, {pipeline_mode = #tpu.pipeline_mode<synchronous>, transform_indices = @transform_8, window_bounds = array<i64: 5, 80>}, {pipeline_mode = #tpu.pipeline_mode<synchronous>, transform_indices = @transform_9, window_bounds = array<i64: 5, 1>}, {transform_indices = @transform_10, window_bounds = array<i64: 1, 128>}, {transform_indices = @transform_11, window_bounds = array<i64: 1, 128>}]} {
    %cst = arith.constant 0.000000e+00 : f32
    %0 = vector.broadcast %cst : f32 to vector<72x128xf32>
    %c0 = arith.constant 0 : index
    %c0_0 = arith.constant 0 : index
    %1 = vector.load %arg13[%c0, %c0_0] : memref<432x128xf32, #tpu.memory_space<vmem>>, vector<72x128xf32>
    tpu.vector_store %arg13[%c0, %c0_0], %0 {strides = array<i32>} : memref<432x128xf32, #tpu.memory_space<vmem>>, vector<72x128xf32>,
    %cst_1 = arith.constant 0.000000e+00 : f32
    %2 = vector.broadcast %cst_1 : f32 to vector<72x128xf32>
    %c360 = arith.constant 360 : index
    %c0_2 = arith.constant 0 : index
    %3 = vector.load %arg13[%c360, %c0_2] : memref<432x128xf32, #tpu.memory_space<vmem>>, vector<72x128xf32>
    tpu.vector_store %arg13[%c360, %c0_2], %2 {strides = array<i32>} : memref<432x128xf32, #tpu.memory_space<vmem>>, vector<72x128xf32>,
    %c0_3 = arith.constant 0 : index
    %c0_4 = arith.constant 0 : index
    %c0_5 = arith.constant 0 : index
    %4 = vector.load %arg2[%c0_3, %c0_4, %c0_5] : memref<12x8x128xbf16, #tpu.memory_space<vmem>>, vector<1x8x128xbf16>
    %5 = vector.shape_cast %4 : vector<1x8x128xbf16> to vector<8x128xbf16>
    %6 = arith.extf %5 : vector<8x128xbf16> to vector<8x128xf32>
    %c72 = arith.constant 72 : index
    %c0_6 = arith.constant 0 : index
    %7 = vector.load %arg13[%c72, %c0_6] : memref<432x128xf32, #tpu.memory_space<vmem>>, vector<8x128xf32>
    tpu.vector_store %arg13[%c72, %c0_6], %6 {strides = array<i32>} : memref<432x128xf32, #tpu.memory_space<vmem>>, vector<8x128xf32>,
    %c0_7 = arith.constant 0 : index
    %c0_8 = arith.constant 0 : index
    %c0_9 = arith.constant 0 : index
    %8 = vector.load %arg3[%c0_7, %c0_8, %c0_9] : memref<12x16x128xbf16, #tpu.memory_space<vmem>>, vector<1x16x128xbf16>
    %9 = vector.shape_cast %8 : vector<1x16x128xbf16> to vector<16x128xbf16>
    %10 = arith.extf %9 : vector<16x128xbf16> to vector<16x128xf32>
    %c80 = arith.constant 80 : index
    %c0_10 = arith.constant 0 : index
    %11 = vector.load %arg13[%c80, %c0_10] : memref<432x128xf32, #tpu.memory_space<vmem>>, vector<16x128xf32>
    tpu.vector_store %arg13[%c80, %c0_10], %10 {strides = array<i32>} : memref<432x128xf32, #tpu.memory_space<vmem>>, vector<16x128xf32>,
    %c1 = arith.constant 1 : index
    %c0_11 = arith.constant 0 : index
    %c0_12 = arith.constant 0 : index
    %12 = vector.load %arg2[%c1, %c0_11, %c0_12] : memref<12x8x128xbf16, #tpu.memory_space<vmem>>, vector<1x8x128xbf16>
    %13 = vector.shape_cast %12 : vector<1x8x128xbf16> to vector<8x128xbf16>
    %14 = arith.extf %13 : vector<8x128xbf16> to vector<8x128xf32>
    %c96 = arith.constant 96 : index
    %c0_13 = arith.constant 0 : index
    %15 = vector.load %arg13[%c96, %c0_13] : memref<432x128xf32, #tpu.memory_space<vmem>>, vector<8x128xf32>
    tpu.vector_store %arg13[%c96, %c0_13], %14 {strides = array<i32>} : memref<432x128xf32, #tpu.memory_space<vmem>>, vector<8x128xf32>,
    %c1_14 = arith.constant 1 : index
    %c0_15 = arith.constant 0 : index
    %c0_16 = arith.constant 0 : index
    %16 = vector.load %arg3[%c1_14, %c0_15, %c0_16] : memref<12x16x128xbf16, #tpu.memory_space<vmem>>, vector<1x16x128xbf16>
    %17 = vector.shape_cast %16 : vector<1x16x128xbf16> to vector<16x128xbf16>
    %18 = arith.extf %17 : vector<16x128xbf16> to vector<16x128xf32>
    %c104 = arith.constant 104 : index
    %c0_17 = arith.constant 0 : index
    %19 = vector.load %arg13[%c104, %c0_17] : memref<432x128xf32, #tpu.memory_space<vmem>>, vector<16x128xf32>
    tpu.vector_store %arg13[%c104, %c0_17], %18 {strides = array<i32>} : memref<432x128xf32, #tpu.memory_space<vmem>>, vector<16x128xf32>,
    %c2 = arith.constant 2 : index
    %c0_18 = arith.constant 0 : index
    %c0_19 = arith.constant 0 : index
    %20 = vector.load %arg2[%c2, %c0_18, %c0_19] : memref<12x8x128xbf16, #tpu.memory_space<vmem>>, vector<1x8x128xbf16>
    %21 = vector.shape_cast %20 : vector<1x8x128xbf16> to vector<8x128xbf16>
    %22 = arith.extf %21 : vector<8x128xbf16> to vector<8x128xf32>
    %c120 = arith.constant 120 : index
    %c0_20 = arith.constant 0 : index
    %23 = vector.load %arg13[%c120, %c0_20] : memref<432x128xf32, #tpu.memory_space<vmem>>, vector<8x128xf32>
    tpu.vector_store %arg13[%c120, %c0_20], %22 {strides = array<i32>} : memref<432x128xf32, #tpu.memory_space<vmem>>, vector<8x128xf32>,
    %c2_21 = arith.constant 2 : index
    %c0_22 = arith.constant 0 : index
    %c0_23 = arith.constant 0 : index
    %24 = vector.load %arg3[%c2_21, %c0_22, %c0_23] : memref<12x16x128xbf16, #tpu.memory_space<vmem>>, vector<1x16x128xbf16>
    %25 = vector.shape_cast %24 : vector<1x16x128xbf16> to vector<16x128xbf16>
    %26 = arith.extf %25 : vector<16x128xbf16> to vector<16x128xf32>
    %c128 = arith.constant 128 : index
    %c0_24 = arith.constant 0 : index
    %27 = vector.load %arg13[%c128, %c0_24] : memref<432x128xf32, #tpu.memory_space<vmem>>, vector<16x128xf32>
    tpu.vector_store %arg13[%c128, %c0_24], %26 {strides = array<i32>} : memref<432x128xf32, #tpu.memory_space<vmem>>, vector<16x128xf32>,
    %c3 = arith.constant 3 : index
    %c0_25 = arith.constant 0 : index
    %c0_26 = arith.constant 0 : index
    %28 = vector.load %arg2[%c3, %c0_25, %c0_26] : memref<12x8x128xbf16, #tpu.memory_space<vmem>>, vector<1x8x128xbf16>
    %29 = vector.shape_cast %28 : vector<1x8x128xbf16> to vector<8x128xbf16>
    %30 = arith.extf %29 : vector<8x128xbf16> to vector<8x128xf32>
    %c144 = arith.constant 144 : index
    %c0_27 = arith.constant 0 : index
    %31 = vector.load %arg13[%c144, %c0_27] : memref<432x128xf32, #tpu.memory_space<vmem>>, vector<8x128xf32>
    tpu.vector_store %arg13[%c144, %c0_27], %30 {strides = array<i32>} : memref<432x128xf32, #tpu.memory_space<vmem>>, vector<8x128xf32>,
    %c3_28 = arith.constant 3 : index
    %c0_29 = arith.constant 0 : index
    %c0_30 = arith.constant 0 : index
    %32 = vector.load %arg3[%c3_28, %c0_29, %c0_30] : memref<12x16x128xbf16, #tpu.memory_space<vmem>>, vector<1x16x128xbf16>
    %33 = vector.shape_cast %32 : vector<1x16x128xbf16> to vector<16x128xbf16>
    %34 = arith.extf %33 : vector<16x128xbf16> to vector<16x128xf32>
    %c152 = arith.constant 152 : index
    %c0_31 = arith.constant 0 : index
    %35 = vector.load %arg13[%c152, %c0_31] : memref<432x128xf32, #tpu.memory_space<vmem>>, vector<16x128xf32>
    tpu.vector_store %arg13[%c152, %c0_31], %34 {strides = array<i32>} : memref<432x128xf32, #tpu.memory_space<vmem>>, vector<16x128xf32>,
    %c4 = arith.constant 4 : index
    %c0_32 = arith.constant 0 : index
    %c0_33 = arith.constant 0 : index
    %36 = vector.load %arg2[%c4, %c0_32, %c0_33] : memref<12x8x128xbf16, #tpu.memory_space<vmem>>, vector<1x8x128xbf16>
    %37 = vector.shape_cast %36 : vector<1x8x128xbf16> to vector<8x128xbf16>
    %38 = arith.extf %37 : vector<8x128xbf16> to vector<8x128xf32>
    %c168 = arith.constant 168 : index
    %c0_34 = arith.constant 0 : index
    %39 = vector.load %arg13[%c168, %c0_34] : memref<432x128xf32, #tpu.memory_space<vmem>>, vector<8x128xf32>
    tpu.vector_store %arg13[%c168, %c0_34], %38 {strides = array<i32>} : memref<432x128xf32, #tpu.memory_space<vmem>>, vector<8x128xf32>,
    %c4_35 = arith.constant 4 : index
    %c0_36 = arith.constant 0 : index
    %c0_37 = arith.constant 0 : index
    %40 = vector.load %arg3[%c4_35, %c0_36, %c0_37] : memref<12x16x128xbf16, #tpu.memory_space<vmem>>, vector<1x16x128xbf16>
    %41 = vector.shape_cast %40 : vector<1x16x128xbf16> to vector<16x128xbf16>
    %42 = arith.extf %41 : vector<16x128xbf16> to vector<16x128xf32>
    %c176 = arith.constant 176 : index
    %c0_38 = arith.constant 0 : index
    %43 = vector.load %arg13[%c176, %c0_38] : memref<432x128xf32, #tpu.memory_space<vmem>>, vector<16x128xf32>
    tpu.vector_store %arg13[%c176, %c0_38], %42 {strides = array<i32>} : memref<432x128xf32, #tpu.memory_space<vmem>>, vector<16x128xf32>,
    %c5 = arith.constant 5 : index
    %c0_39 = arith.constant 0 : index
    %c0_40 = arith.constant 0 : index
    %44 = vector.load %arg2[%c5, %c0_39, %c0_40] : memref<12x8x128xbf16, #tpu.memory_space<vmem>>, vector<1x8x128xbf16>
    %45 = vector.shape_cast %44 : vector<1x8x128xbf16> to vector<8x128xbf16>
    %46 = arith.extf %45 : vector<8x128xbf16> to vector<8x128xf32>
    %c192 = arith.constant 192 : index
    %c0_41 = arith.constant 0 : index
    %47 = vector.load %arg13[%c192, %c0_41] : memref<432x128xf32, #tpu.memory_space<vmem>>, vector<8x128xf32>
    tpu.vector_store %arg13[%c192, %c0_41], %46 {strides = array<i32>} : memref<432x128xf32, #tpu.memory_space<vmem>>, vector<8x128xf32>,
    %c5_42 = arith.constant 5 : index
    %c0_43 = arith.constant 0 : index
    %c0_44 = arith.constant 0 : index
    %48 = vector.load %arg3[%c5_42, %c0_43, %c0_44] : memref<12x16x128xbf16, #tpu.memory_space<vmem>>, vector<1x16x128xbf16>
    %49 = vector.shape_cast %48 : vector<1x16x128xbf16> to vector<16x128xbf16>
    %50 = arith.extf %49 : vector<16x128xbf16> to vector<16x128xf32>
    %c200 = arith.constant 200 : index
    %c0_45 = arith.constant 0 : index
    %51 = vector.load %arg13[%c200, %c0_45] : memref<432x128xf32, #tpu.memory_space<vmem>>, vector<16x128xf32>
    tpu.vector_store %arg13[%c200, %c0_45], %50 {strides = array<i32>} : memref<432x128xf32, #tpu.memory_space<vmem>>, vector<16x128xf32>,
    %c6 = arith.constant 6 : index
    %c0_46 = arith.constant 0 : index
    %c0_47 = arith.constant 0 : index
    %52 = vector.load %arg2[%c6, %c0_46, %c0_47] : memref<12x8x128xbf16, #tpu.memory_space<vmem>>, vector<1x8x128xbf16>
    %53 = vector.shape_cast %52 : vector<1x8x128xbf16> to vector<8x128xbf16>
    %54 = arith.extf %53 : vector<8x128xbf16> to vector<8x128xf32>
    %c216 = arith.constant 216 : index
    %c0_48 = arith.constant 0 : index
    %55 = vector.load %arg13[%c216, %c0_48] : memref<432x128xf32, #tpu.memory_space<vmem>>, vector<8x128xf32>
    tpu.vector_store %arg13[%c216, %c0_48], %54 {strides = array<i32>} : memref<432x128xf32, #tpu.memory_space<vmem>>, vector<8x128xf32>,
    %c6_49 = arith.constant 6 : index
    %c0_50 = arith.constant 0 : index
    %c0_51 = arith.constant 0 : index
    %56 = vector.load %arg3[%c6_49, %c0_50, %c0_51] : memref<12x16x128xbf16, #tpu.memory_space<vmem>>, vector<1x16x128xbf16>
    %57 = vector.shape_cast %56 : vector<1x16x128xbf16> to vector<16x128xbf16>
    %58 = arith.extf %57 : vector<16x128xbf16> to vector<16x128xf32>
    %c224 = arith.constant 224 : index
    %c0_52 = arith.constant 0 : index
    %59 = vector.load %arg13[%c224, %c0_52] : memref<432x128xf32, #tpu.memory_space<vmem>>, vector<16x128xf32>
    tpu.vector_store %arg13[%c224, %c0_52], %58 {strides = array<i32>} : memref<432x128xf32, #tpu.memory_space<vmem>>, vector<16x128xf32>,
    %c7 = arith.constant 7 : index
    %c0_53 = arith.constant 0 : index
    %c0_54 = arith.constant 0 : index
    %60 = vector.load %arg2[%c7, %c0_53, %c0_54] : memref<12x8x128xbf16, #tpu.memory_space<vmem>>, vector<1x8x128xbf16>
    %61 = vector.shape_cast %60 : vector<1x8x128xbf16> to vector<8x128xbf16>
    %62 = arith.extf %61 : vector<8x128xbf16> to vector<8x128xf32>
    %c240 = arith.constant 240 : index
    %c0_55 = arith.constant 0 : index
    %63 = vector.load %arg13[%c240, %c0_55] : memref<432x128xf32, #tpu.memory_space<vmem>>, vector<8x128xf32>
    tpu.vector_store %arg13[%c240, %c0_55], %62 {strides = array<i32>} : memref<432x128xf32, #tpu.memory_space<vmem>>, vector<8x128xf32>,
    %c7_56 = arith.constant 7 : index
    %c0_57 = arith.constant 0 : index
    %c0_58 = arith.constant 0 : index
    %64 = vector.load %arg3[%c7_56, %c0_57, %c0_58] : memref<12x16x128xbf16, #tpu.memory_space<vmem>>, vector<1x16x128xbf16>
    %65 = vector.shape_cast %64 : vector<1x16x128xbf16> to vector<16x128xbf16>
    %66 = arith.extf %65 : vector<16x128xbf16> to vector<16x128xf32>
    %c248 = arith.constant 248 : index
    %c0_59 = arith.constant 0 : index
    %67 = vector.load %arg13[%c248, %c0_59] : memref<432x128xf32, #tpu.memory_space<vmem>>, vector<16x128xf32>
    tpu.vector_store %arg13[%c248, %c0_59], %66 {strides = array<i32>} : memref<432x128xf32, #tpu.memory_space<vmem>>, vector<16x128xf32>,
    %c8 = arith.constant 8 : index
    %c0_60 = arith.constant 0 : index
    %c0_61 = arith.constant 0 : index
    %68 = vector.load %arg2[%c8, %c0_60, %c0_61] : memref<12x8x128xbf16, #tpu.memory_space<vmem>>, vector<1x8x128xbf16>
    %69 = vector.shape_cast %68 : vector<1x8x128xbf16> to vector<8x128xbf16>
    %70 = arith.extf %69 : vector<8x128xbf16> to vector<8x128xf32>
    %c264 = arith.constant 264 : index
    %c0_62 = arith.constant 0 : index
    %71 = vector.load %arg13[%c264, %c0_62] : memref<432x128xf32, #tpu.memory_space<vmem>>, vector<8x128xf32>
    tpu.vector_store %arg13[%c264, %c0_62], %70 {strides = array<i32>} : memref<432x128xf32, #tpu.memory_space<vmem>>, vector<8x128xf32>,
    %c8_63 = arith.constant 8 : index
    %c0_64 = arith.constant 0 : index
    %c0_65 = arith.constant 0 : index
    %72 = vector.load %arg3[%c8_63, %c0_64, %c0_65] : memref<12x16x128xbf16, #tpu.memory_space<vmem>>, vector<1x16x128xbf16>
    %73 = vector.shape_cast %72 : vector<1x16x128xbf16> to vector<16x128xbf16>
    %74 = arith.extf %73 : vector<16x128xbf16> to vector<16x128xf32>
    %c272 = arith.constant 272 : index
    %c0_66 = arith.constant 0 : index
    %75 = vector.load %arg13[%c272, %c0_66] : memref<432x128xf32, #tpu.memory_space<vmem>>, vector<16x128xf32>
    tpu.vector_store %arg13[%c272, %c0_66], %74 {strides = array<i32>} : memref<432x128xf32, #tpu.memory_space<vmem>>, vector<16x128xf32>,
    %c9 = arith.constant 9 : index
    %c0_67 = arith.constant 0 : index
    %c0_68 = arith.constant 0 : index
    %76 = vector.load %arg2[%c9, %c0_67, %c0_68] : memref<12x8x128xbf16, #tpu.memory_space<vmem>>, vector<1x8x128xbf16>
    %77 = vector.shape_cast %76 : vector<1x8x128xbf16> to vector<8x128xbf16>
    %78 = arith.extf %77 : vector<8x128xbf16> to vector<8x128xf32>
    %c288 = arith.constant 288 : index
    %c0_69 = arith.constant 0 : index
    %79 = vector.load %arg13[%c288, %c0_69] : memref<432x128xf32, #tpu.memory_space<vmem>>, vector<8x128xf32>
    tpu.vector_store %arg13[%c288, %c0_69], %78 {strides = array<i32>} : memref<432x128xf32, #tpu.memory_space<vmem>>, vector<8x128xf32>,
    %c9_70 = arith.constant 9 : index
    %c0_71 = arith.constant 0 : index
    %c0_72 = arith.constant 0 : index
    %80 = vector.load %arg3[%c9_70, %c0_71, %c0_72] : memref<12x16x128xbf16, #tpu.memory_space<vmem>>, vector<1x16x128xbf16>
    %81 = vector.shape_cast %80 : vector<1x16x128xbf16> to vector<16x128xbf16>
    %82 = arith.extf %81 : vector<16x128xbf16> to vector<16x128xf32>
    %c296 = arith.constant 296 : index
    %c0_73 = arith.constant 0 : index
    %83 = vector.load %arg13[%c296, %c0_73] : memref<432x128xf32, #tpu.memory_space<vmem>>, vector<16x128xf32>
    tpu.vector_store %arg13[%c296, %c0_73], %82 {strides = array<i32>} : memref<432x128xf32, #tpu.memory_space<vmem>>, vector<16x128xf32>,
    %c10 = arith.constant 10 : index
    %c0_74 = arith.constant 0 : index
    %c0_75 = arith.constant 0 : index
    %84 = vector.load %arg2[%c10, %c0_74, %c0_75] : memref<12x8x128xbf16, #tpu.memory_space<vmem>>, vector<1x8x128xbf16>
    %85 = vector.shape_cast %84 : vector<1x8x128xbf16> to vector<8x128xbf16>
    %86 = arith.extf %85 : vector<8x128xbf16> to vector<8x128xf32>
    %c312 = arith.constant 312 : index
    %c0_76 = arith.constant 0 : index
    %87 = vector.load %arg13[%c312, %c0_76] : memref<432x128xf32, #tpu.memory_space<vmem>>, vector<8x128xf32>
    tpu.vector_store %arg13[%c312, %c0_76], %86 {strides = array<i32>} : memref<432x128xf32, #tpu.memory_space<vmem>>, vector<8x128xf32>,
    %c10_77 = arith.constant 10 : index
    %c0_78 = arith.constant 0 : index
    %c0_79 = arith.constant 0 : index
    %88 = vector.load %arg3[%c10_77, %c0_78, %c0_79] : memref<12x16x128xbf16, #tpu.memory_space<vmem>>, vector<1x16x128xbf16>
    %89 = vector.shape_cast %88 : vector<1x16x128xbf16> to vector<16x128xbf16>
    %90 = arith.extf %89 : vector<16x128xbf16> to vector<16x128xf32>
    %c320 = arith.constant 320 : index
    %c0_80 = arith.constant 0 : index
    %91 = vector.load %arg13[%c320, %c0_80] : memref<432x128xf32, #tpu.memory_space<vmem>>, vector<16x128xf32>
    tpu.vector_store %arg13[%c320, %c0_80], %90 {strides = array<i32>} : memref<432x128xf32, #tpu.memory_space<vmem>>, vector<16x128xf32>,
    %c11 = arith.constant 11 : index
    %c0_81 = arith.constant 0 : index
    %c0_82 = arith.constant 0 : index
    %92 = vector.load %arg2[%c11, %c0_81, %c0_82] : memref<12x8x128xbf16, #tpu.memory_space<vmem>>, vector<1x8x128xbf16>
    %93 = vector.shape_cast %92 : vector<1x8x128xbf16> to vector<8x128xbf16>
    %94 = arith.extf %93 : vector<8x128xbf16> to vector<8x128xf32>
    %c336 = arith.constant 336 : index
    %c0_83 = arith.constant 0 : index
    %95 = vector.load %arg13[%c336, %c0_83] : memref<432x128xf32, #tpu.memory_space<vmem>>, vector<8x128xf32>
    tpu.vector_store %arg13[%c336, %c0_83], %94 {strides = array<i32>} : memref<432x128xf32, #tpu.memory_space<vmem>>, vector<8x128xf32>,
    %c11_84 = arith.constant 11 : index
    %c0_85 = arith.constant 0 : index
    %c0_86 = arith.constant 0 : index
    %96 = vector.load %arg3[%c11_84, %c0_85, %c0_86] : memref<12x16x128xbf16, #tpu.memory_space<vmem>>, vector<1x16x128xbf16>
    %97 = vector.shape_cast %96 : vector<1x16x128xbf16> to vector<16x128xbf16>
    %98 = arith.extf %97 : vector<16x128xbf16> to vector<16x128xf32>
    %c344 = arith.constant 344 : index
    %c0_87 = arith.constant 0 : index
    %99 = vector.load %arg13[%c344, %c0_87] : memref<432x128xf32, #tpu.memory_space<vmem>>, vector<16x128xf32>
    tpu.vector_store %arg13[%c344, %c0_87], %98 {strides = array<i32>} : memref<432x128xf32, #tpu.memory_space<vmem>>, vector<16x128xf32>,
    %c0_88 = arith.constant 0 : index
    %c0_89 = arith.constant 0 : index
    %100 = vector.load %arg8[%c0_88, %c0_89] : memref<48x1xf32, #tpu.memory_space<vmem>>, vector<48x1xf32>
    %101 = vector.shape_cast %100 : vector<48x1xf32> to vector<48x1xf32>
    %102 = vector.broadcast %101 : vector<48x1xf32> to vector<48x128xf32>
    %c0_90 = arith.constant 0 : index
    %c0_91 = arith.constant 0 : index
    %103 = vector.load %arg7[%c0_90, %c0_91] : memref<48x168xbf16, #tpu.memory_space<vmem>>, vector<48x168xbf16>
    %cst_92 = arith.constant 0xFF800000 : f32
    %104 = vector.broadcast %cst_92 : f32 to vector<48x128xf32>
    %c0_93 = arith.constant 0 : index
    %c0_94 = arith.constant 0 : index
    %105 = vector.load %arg13[%c0_93, %c0_94] : memref<432x128xf32, #tpu.memory_space<vmem>>, vector<168x128xf32>
    %106 = arith.truncf %105 : vector<168x128xf32> to vector<168x128xbf16>
    %cst_95 = arith.constant dense<0.000000e+00> : vector<48x128xf32>
    %107 = tpu.matmul %103, %106, %cst_95 {dimension_numbers = #tpu.dot_dimension_numbers<[1], [0], [0], [1], [0, 0, 1, 1], [], []>} : vector<48x168xbf16>, vector<168x128xbf16>, vector<48x128xf32> -> vector<48x128xf32>
    %108 = arith.addf %107, %102 : vector<48x128xf32>
    %cst_96 = arith.constant 0.000000e+00 : f32
    %109 = vector.broadcast %cst_96 : f32 to vector<48x128xf32>
    %110 = arith.subf %109, %108 : vector<48x128xf32>
    %111 = math.exp %110 : vector<48x128xf32>
    %cst_97 = arith.constant 1.000000e+00 : f32
    %112 = vector.broadcast %cst_97 : f32 to vector<48x128xf32>
    %113 = arith.addf %112, %111 : vector<48x128xf32>
    %114 = tpu.reciprocal %113 {approx = true} : vector<48x128xf32> -> vector<48x128xf32>
    %115 = arith.mulf %108, %114 : vector<48x128xf32>
    %c0_98 = arith.constant 0 : index
    %c0_99 = arith.constant 0 : index
    %116 = vector.load %arg4[%c0_98, %c0_99] : memref<12x128xf32, #tpu.memory_space<vmem>>, vector<1x128xf32>
    %117 = vector.broadcast %116 : vector<1x128xf32> to vector<48x128xf32>
    %118 = arith.mulf %115, %117 : vector<48x128xf32>
    %119 = arith.maximumf %104, %118 : vector<48x128xf32>
    %c24 = arith.constant 24 : index
    %c0_100 = arith.constant 0 : index
    %120 = vector.load %arg13[%c24, %c0_100] : memref<432x128xf32, #tpu.memory_space<vmem>>, vector<168x128xf32>
    %121 = arith.truncf %120 : vector<168x128xf32> to vector<168x128xbf16>
    %cst_101 = arith.constant dense<0.000000e+00> : vector<48x128xf32>
    %122 = tpu.matmul %103, %121, %cst_101 {dimension_numbers = #tpu.dot_dimension_numbers<[1], [0], [0], [1], [0, 0, 1, 1], [], []>} : vector<48x168xbf16>, vector<168x128xbf16>, vector<48x128xf32> -> vector<48x128xf32>
    %123 = arith.addf %122, %102 : vector<48x128xf32>
    %cst_102 = arith.constant 0.000000e+00 : f32
    %124 = vector.broadcast %cst_102 : f32 to vector<48x128xf32>
    %125 = arith.subf %124, %123 : vector<48x128xf32>
    %126 = math.exp %125 : vector<48x128xf32>
    %cst_103 = arith.constant 1.000000e+00 : f32
    %127 = vector.broadcast %cst_103 : f32 to vector<48x128xf32>
    %128 = arith.addf %127, %126 : vector<48x128xf32>
    %129 = tpu.reciprocal %128 {approx = true} : vector<48x128xf32> -> vector<48x128xf32>
    %130 = arith.mulf %123, %129 : vector<48x128xf32>
    %c1_104 = arith.constant 1 : index
    %c0_105 = arith.constant 0 : index
    %131 = vector.load %arg4[%c1_104, %c0_105] : memref<12x128xf32, #tpu.memory_space<vmem>>, vector<1x128xf32>
    %132 = vector.broadcast %131 : vector<1x128xf32> to vector<48x128xf32>
    %133 = arith.mulf %130, %132 : vector<48x128xf32>
    %134 = arith.maximumf %119, %133 : vector<48x128xf32>
    %c48 = arith.constant 48 : index
    %c0_106 = arith.constant 0 : index
    %135 = vector.load %arg13[%c48, %c0_106] : memref<432x128xf32, #tpu.memory_space<vmem>>, vector<168x128xf32>
    %136 = arith.truncf %135 : vector<168x128xf32> to vector<168x128xbf16>
    %cst_107 = arith.constant dense<0.000000e+00> : vector<48x128xf32>
    %137 = tpu.matmul %103, %136, %cst_107 {dimension_numbers = #tpu.dot_dimension_numbers<[1], [0], [0], [1], [0, 0, 1, 1], [], []>} : vector<48x168xbf16>, vector<168x128xbf16>, vector<48x128xf32> -> vector<48x128xf32>
    %138 = arith.addf %137, %102 : vector<48x128xf32>
    %cst_108 = arith.constant 0.000000e+00 : f32
    %139 = vector.broadcast %cst_108 : f32 to vector<48x128xf32>
    %140 = arith.subf %139, %138 : vector<48x128xf32>
    %141 = math.exp %140 : vector<48x128xf32>
    %cst_109 = arith.constant 1.000000e+00 : f32
    %142 = vector.broadcast %cst_109 : f32 to vector<48x128xf32>
    %143 = arith.addf %142, %141 : vector<48x128xf32>
    %144 = tpu.reciprocal %143 {approx = true} : vector<48x128xf32> -> vector<48x128xf32>
    %145 = arith.mulf %138, %144 : vector<48x128xf32>
    %c2_110 = arith.constant 2 : index
    %c0_111 = arith.constant 0 : index
    %146 = vector.load %arg4[%c2_110, %c0_111] : memref<12x128xf32, #tpu.memory_space<vmem>>, vector<1x128xf32>
    %147 = vector.broadcast %146 : vector<1x128xf32> to vector<48x128xf32>
    %148 = arith.mulf %145, %147 : vector<48x128xf32>
    %149 = arith.maximumf %134, %148 : vector<48x128xf32>
    %c72_112 = arith.constant 72 : index
    %c0_113 = arith.constant 0 : index
    %150 = vector.load %arg13[%c72_112, %c0_113] : memref<432x128xf32, #tpu.memory_space<vmem>>, vector<168x128xf32>
    %151 = arith.truncf %150 : vector<168x128xf32> to vector<168x128xbf16>
    %cst_114 = arith.constant dense<0.000000e+00> : vector<48x128xf32>
    %152 = tpu.matmul %103, %151, %cst_114 {dimension_numbers = #tpu.dot_dimension_numbers<[1], [0], [0], [1], [0, 0, 1, 1], [], []>} : vector<48x168xbf16>, vector<168x128xbf16>, vector<48x128xf32> -> vector<48x128xf32>
    %153 = arith.addf %152, %102 : vector<48x128xf32>
    %cst_115 = arith.constant 0.000000e+00 : f32
    %154 = vector.broadcast %cst_115 : f32 to vector<48x128xf32>
    %155 = arith.subf %154, %153 : vector<48x128xf32>
    %156 = math.exp %155 : vector<48x128xf32>
    %cst_116 = arith.constant 1.000000e+00 : f32
    %157 = vector.broadcast %cst_116 : f32 to vector<48x128xf32>
    %158 = arith.addf %157, %156 : vector<48x128xf32>
    %159 = tpu.reciprocal %158 {approx = true} : vector<48x128xf32> -> vector<48x128xf32>
    %160 = arith.mulf %153, %159 : vector<48x128xf32>
    %c3_117 = arith.constant 3 : index
    %c0_118 = arith.constant 0 : index
    %161 = vector.load %arg4[%c3_117, %c0_118] : memref<12x128xf32, #tpu.memory_space<vmem>>, vector<1x128xf32>
    %162 = vector.broadcast %161 : vector<1x128xf32> to vector<48x128xf32>
    %163 = arith.mulf %160, %162 : vector<48x128xf32>
    %164 = arith.maximumf %149, %163 : vector<48x128xf32>
    %c96_119 = arith.constant 96 : index
    %c0_120 = arith.constant 0 : index
    %165 = vector.load %arg13[%c96_119, %c0_120] : memref<432x128xf32, #tpu.memory_space<vmem>>, vector<168x128xf32>
    %166 = arith.truncf %165 : vector<168x128xf32> to vector<168x128xbf16>
    %cst_121 = arith.constant dense<0.000000e+00> : vector<48x128xf32>
    %167 = tpu.matmul %103, %166, %cst_121 {dimension_numbers = #tpu.dot_dimension_numbers<[1], [0], [0], [1], [0, 0, 1, 1], [], []>} : vector<48x168xbf16>, vector<168x128xbf16>, vector<48x128xf32> -> vector<48x128xf32>
    %168 = arith.addf %167, %102 : vector<48x128xf32>
    %cst_122 = arith.constant 0.000000e+00 : f32
    %169 = vector.broadcast %cst_122 : f32 to vector<48x128xf32>
    %170 = arith.subf %169, %168 : vector<48x128xf32>
    %171 = math.exp %170 : vector<48x128xf32>
    %cst_123 = arith.constant 1.000000e+00 : f32
    %172 = vector.broadcast %cst_123 : f32 to vector<48x128xf32>
    %173 = arith.addf %172, %171 : vector<48x128xf32>
    %174 = tpu.reciprocal %173 {approx = true} : vector<48x128xf32> -> vector<48x128xf32>
    %175 = arith.mulf %168, %174 : vector<48x128xf32>
    %c4_124 = arith.constant 4 : index
    %c0_125 = arith.constant 0 : index
    %176 = vector.load %arg4[%c4_124, %c0_125] : memref<12x128xf32, #tpu.memory_space<vmem>>, vector<1x128xf32>
    %177 = vector.broadcast %176 : vector<1x128xf32> to vector<48x128xf32>
    %178 = arith.mulf %175, %177 : vector<48x128xf32>
    %179 = arith.maximumf %164, %178 : vector<48x128xf32>
    %c120_126 = arith.constant 120 : index
    %c0_127 = arith.constant 0 : index
    %180 = vector.load %arg13[%c120_126, %c0_127] : memref<432x128xf32, #tpu.memory_space<vmem>>, vector<168x128xf32>
    %181 = arith.truncf %180 : vector<168x128xf32> to vector<168x128xbf16>
    %cst_128 = arith.constant dense<0.000000e+00> : vector<48x128xf32>
    %182 = tpu.matmul %103, %181, %cst_128 {dimension_numbers = #tpu.dot_dimension_numbers<[1], [0], [0], [1], [0, 0, 1, 1], [], []>} : vector<48x168xbf16>, vector<168x128xbf16>, vector<48x128xf32> -> vector<48x128xf32>
    %183 = arith.addf %182, %102 : vector<48x128xf32>
    %cst_129 = arith.constant 0.000000e+00 : f32
    %184 = vector.broadcast %cst_129 : f32 to vector<48x128xf32>
    %185 = arith.subf %184, %183 : vector<48x128xf32>
    %186 = math.exp %185 : vector<48x128xf32>
    %cst_130 = arith.constant 1.000000e+00 : f32
    %187 = vector.broadcast %cst_130 : f32 to vector<48x128xf32>
    %188 = arith.addf %187, %186 : vector<48x128xf32>
    %189 = tpu.reciprocal %188 {approx = true} : vector<48x128xf32> -> vector<48x128xf32>
    %190 = arith.mulf %183, %189 : vector<48x128xf32>
    %c5_131 = arith.constant 5 : index
    %c0_132 = arith.constant 0 : index
    %191 = vector.load %arg4[%c5_131, %c0_132] : memref<12x128xf32, #tpu.memory_space<vmem>>, vector<1x128xf32>
    %192 = vector.broadcast %191 : vector<1x128xf32> to vector<48x128xf32>
    %193 = arith.mulf %190, %192 : vector<48x128xf32>
    %194 = arith.maximumf %179, %193 : vector<48x128xf32>
    %c144_133 = arith.constant 144 : index
    %c0_134 = arith.constant 0 : index
    %195 = vector.load %arg13[%c144_133, %c0_134] : memref<432x128xf32, #tpu.memory_space<vmem>>, vector<168x128xf32>
    %196 = arith.truncf %195 : vector<168x128xf32> to vector<168x128xbf16>
    %cst_135 = arith.constant dense<0.000000e+00> : vector<48x128xf32>
    %197 = tpu.matmul %103, %196, %cst_135 {dimension_numbers = #tpu.dot_dimension_numbers<[1], [0], [0], [1], [0, 0, 1, 1], [], []>} : vector<48x168xbf16>, vector<168x128xbf16>, vector<48x128xf32> -> vector<48x128xf32>
    %198 = arith.addf %197, %102 : vector<48x128xf32>
    %cst_136 = arith.constant 0.000000e+00 : f32
    %199 = vector.broadcast %cst_136 : f32 to vector<48x128xf32>
    %200 = arith.subf %199, %198 : vector<48x128xf32>
    %201 = math.exp %200 : vector<48x128xf32>
    %cst_137 = arith.constant 1.000000e+00 : f32
    %202 = vector.broadcast %cst_137 : f32 to vector<48x128xf32>
    %203 = arith.addf %202, %201 : vector<48x128xf32>
    %204 = tpu.reciprocal %203 {approx = true} : vector<48x128xf32> -> vector<48x128xf32>
    %205 = arith.mulf %198, %204 : vector<48x128xf32>
    %c6_138 = arith.constant 6 : index
    %c0_139 = arith.constant 0 : index
    %206 = vector.load %arg4[%c6_138, %c0_139] : memref<12x128xf32, #tpu.memory_space<vmem>>, vector<1x128xf32>
    %207 = vector.broadcast %206 : vector<1x128xf32> to vector<48x128xf32>
    %208 = arith.mulf %205, %207 : vector<48x128xf32>
    %209 = arith.maximumf %194, %208 : vector<48x128xf32>
    %c168_140 = arith.constant 168 : index
    %c0_141 = arith.constant 0 : index
    %210 = vector.load %arg13[%c168_140, %c0_141] : memref<432x128xf32, #tpu.memory_space<vmem>>, vector<168x128xf32>
    %211 = arith.truncf %210 : vector<168x128xf32> to vector<168x128xbf16>
    %cst_142 = arith.constant dense<0.000000e+00> : vector<48x128xf32>
    %212 = tpu.matmul %103, %211, %cst_142 {dimension_numbers = #tpu.dot_dimension_numbers<[1], [0], [0], [1], [0, 0, 1, 1], [], []>} : vector<48x168xbf16>, vector<168x128xbf16>, vector<48x128xf32> -> vector<48x128xf32>
    %213 = arith.addf %212, %102 : vector<48x128xf32>
    %cst_143 = arith.constant 0.000000e+00 : f32
    %214 = vector.broadcast %cst_143 : f32 to vector<48x128xf32>
    %215 = arith.subf %214, %213 : vector<48x128xf32>
    %216 = math.exp %215 : vector<48x128xf32>
    %cst_144 = arith.constant 1.000000e+00 : f32
    %217 = vector.broadcast %cst_144 : f32 to vector<48x128xf32>
    %218 = arith.addf %217, %216 : vector<48x128xf32>
    %219 = tpu.reciprocal %218 {approx = true} : vector<48x128xf32> -> vector<48x128xf32>
    %220 = arith.mulf %213, %219 : vector<48x128xf32>
    %c7_145 = arith.constant 7 : index
    %c0_146 = arith.constant 0 : index
    %221 = vector.load %arg4[%c7_145, %c0_146] : memref<12x128xf32, #tpu.memory_space<vmem>>, vector<1x128xf32>
    %222 = vector.broadcast %221 : vector<1x128xf32> to vector<48x128xf32>
    %223 = arith.mulf %220, %222 : vector<48x128xf32>
    %224 = arith.maximumf %209, %223 : vector<48x128xf32>
    %c192_147 = arith.constant 192 : index
    %c0_148 = arith.constant 0 : index
    %225 = vector.load %arg13[%c192_147, %c0_148] : memref<432x128xf32, #tpu.memory_space<vmem>>, vector<168x128xf32>
    %226 = arith.truncf %225 : vector<168x128xf32> to vector<168x128xbf16>
    %cst_149 = arith.constant dense<0.000000e+00> : vector<48x128xf32>
    %227 = tpu.matmul %103, %226, %cst_149 {dimension_numbers = #tpu.dot_dimension_numbers<[1], [0], [0], [1], [0, 0, 1, 1], [], []>} : vector<48x168xbf16>, vector<168x128xbf16>, vector<48x128xf32> -> vector<48x128xf32>
    %228 = arith.addf %227, %102 : vector<48x128xf32>
    %cst_150 = arith.constant 0.000000e+00 : f32
    %229 = vector.broadcast %cst_150 : f32 to vector<48x128xf32>
    %230 = arith.subf %229, %228 : vector<48x128xf32>
    %231 = math.exp %230 : vector<48x128xf32>
    %cst_151 = arith.constant 1.000000e+00 : f32
    %232 = vector.broadcast %cst_151 : f32 to vector<48x128xf32>
    %233 = arith.addf %232, %231 : vector<48x128xf32>
    %234 = tpu.reciprocal %233 {approx = true} : vector<48x128xf32> -> vector<48x128xf32>
    %235 = arith.mulf %228, %234 : vector<48x128xf32>
    %c8_152 = arith.constant 8 : index
    %c0_153 = arith.constant 0 : index
    %236 = vector.load %arg4[%c8_152, %c0_153] : memref<12x128xf32, #tpu.memory_space<vmem>>, vector<1x128xf32>
    %237 = vector.broadcast %236 : vector<1x128xf32> to vector<48x128xf32>
    %238 = arith.mulf %235, %237 : vector<48x128xf32>
    %239 = arith.maximumf %224, %238 : vector<48x128xf32>
    %c216_154 = arith.constant 216 : index
    %c0_155 = arith.constant 0 : index
    %240 = vector.load %arg13[%c216_154, %c0_155] : memref<432x128xf32, #tpu.memory_space<vmem>>, vector<168x128xf32>
    %241 = arith.truncf %240 : vector<168x128xf32> to vector<168x128xbf16>
    %cst_156 = arith.constant dense<0.000000e+00> : vector<48x128xf32>
    %242 = tpu.matmul %103, %241, %cst_156 {dimension_numbers = #tpu.dot_dimension_numbers<[1], [0], [0], [1], [0, 0, 1, 1], [], []>} : vector<48x168xbf16>, vector<168x128xbf16>, vector<48x128xf32> -> vector<48x128xf32>
    %243 = arith.addf %242, %102 : vector<48x128xf32>
    %cst_157 = arith.constant 0.000000e+00 : f32
    %244 = vector.broadcast %cst_157 : f32 to vector<48x128xf32>
    %245 = arith.subf %244, %243 : vector<48x128xf32>
    %246 = math.exp %245 : vector<48x128xf32>
    %cst_158 = arith.constant 1.000000e+00 : f32
    %247 = vector.broadcast %cst_158 : f32 to vector<48x128xf32>
    %248 = arith.addf %247, %246 : vector<48x128xf32>
    %249 = tpu.reciprocal %248 {approx = true} : vector<48x128xf32> -> vector<48x128xf32>
    %250 = arith.mulf %243, %249 : vector<48x128xf32>
    %c9_159 = arith.constant 9 : index
    %c0_160 = arith.constant 0 : index
    %251 = vector.load %arg4[%c9_159, %c0_160] : memref<12x128xf32, #tpu.memory_space<vmem>>, vector<1x128xf32>
    %252 = vector.broadcast %251 : vector<1x128xf32> to vector<48x128xf32>
    %253 = arith.mulf %250, %252 : vector<48x128xf32>
    %254 = arith.maximumf %239, %253 : vector<48x128xf32>
    %c240_161 = arith.constant 240 : index
    %c0_162 = arith.constant 0 : index
    %255 = vector.load %arg13[%c240_161, %c0_162] : memref<432x128xf32, #tpu.memory_space<vmem>>, vector<168x128xf32>
    %256 = arith.truncf %255 : vector<168x128xf32> to vector<168x128xbf16>
    %cst_163 = arith.constant dense<0.000000e+00> : vector<48x128xf32>
    %257 = tpu.matmul %103, %256, %cst_163 {dimension_numbers = #tpu.dot_dimension_numbers<[1], [0], [0], [1], [0, 0, 1, 1], [], []>} : vector<48x168xbf16>, vector<168x128xbf16>, vector<48x128xf32> -> vector<48x128xf32>
    %258 = arith.addf %257, %102 : vector<48x128xf32>
    %cst_164 = arith.constant 0.000000e+00 : f32
    %259 = vector.broadcast %cst_164 : f32 to vector<48x128xf32>
    %260 = arith.subf %259, %258 : vector<48x128xf32>
    %261 = math.exp %260 : vector<48x128xf32>
    %cst_165 = arith.constant 1.000000e+00 : f32
    %262 = vector.broadcast %cst_165 : f32 to vector<48x128xf32>
    %263 = arith.addf %262, %261 : vector<48x128xf32>
    %264 = tpu.reciprocal %263 {approx = true} : vector<48x128xf32> -> vector<48x128xf32>
    %265 = arith.mulf %258, %264 : vector<48x128xf32>
    %c10_166 = arith.constant 10 : index
    %c0_167 = arith.constant 0 : index
    %266 = vector.load %arg4[%c10_166, %c0_167] : memref<12x128xf32, #tpu.memory_space<vmem>>, vector<1x128xf32>
    %267 = vector.broadcast %266 : vector<1x128xf32> to vector<48x128xf32>
    %268 = arith.mulf %265, %267 : vector<48x128xf32>
    %269 = arith.maximumf %254, %268 : vector<48x128xf32>
    %c264_168 = arith.constant 264 : index
    %c0_169 = arith.constant 0 : index
    %270 = vector.load %arg13[%c264_168, %c0_169] : memref<432x128xf32, #tpu.memory_space<vmem>>, vector<168x128xf32>
    %271 = arith.truncf %270 : vector<168x128xf32> to vector<168x128xbf16>
    %cst_170 = arith.constant dense<0.000000e+00> : vector<48x128xf32>
    %272 = tpu.matmul %103, %271, %cst_170 {dimension_numbers = #tpu.dot_dimension_numbers<[1], [0], [0], [1], [0, 0, 1, 1], [], []>} : vector<48x168xbf16>, vector<168x128xbf16>, vector<48x128xf32> -> vector<48x128xf32>
    %273 = arith.addf %272, %102 : vector<48x128xf32>
    %cst_171 = arith.constant 0.000000e+00 : f32
    %274 = vector.broadcast %cst_171 : f32 to vector<48x128xf32>
    %275 = arith.subf %274, %273 : vector<48x128xf32>
    %276 = math.exp %275 : vector<48x128xf32>
    %cst_172 = arith.constant 1.000000e+00 : f32
    %277 = vector.broadcast %cst_172 : f32 to vector<48x128xf32>
    %278 = arith.addf %277, %276 : vector<48x128xf32>
    %279 = tpu.reciprocal %278 {approx = true} : vector<48x128xf32> -> vector<48x128xf32>
    %280 = arith.mulf %273, %279 : vector<48x128xf32>
    %c11_173 = arith.constant 11 : index
    %c0_174 = arith.constant 0 : index
    %281 = vector.load %arg4[%c11_173, %c0_174] : memref<12x128xf32, #tpu.memory_space<vmem>>, vector<1x128xf32>
    %282 = vector.broadcast %281 : vector<1x128xf32> to vector<48x128xf32>
    %283 = arith.mulf %280, %282 : vector<48x128xf32>
    %284 = arith.maximumf %269, %283 : vector<48x128xf32>
    %c0_175 = arith.constant 0 : index
    %c0_176 = arith.constant 0 : index
    %285 = vector.load %arg1[%c0_175, %c0_176] : memref<32x128xbf16, #tpu.memory_space<vmem>>, vector<32x128xbf16>
    %286 = arith.truncf %284 : vector<48x128xf32> to vector<48x128xbf16>
    %287 = tpu.concatenate %285, %286 in 0 : vector<32x128xbf16>, vector<48x128xbf16> -> vector<80x128xbf16>
    %c0_177 = arith.constant 0 : index
    %c0_178 = arith.constant 0 : index
    %288 = vector.load %arg9[%c0_177, %c0_178] : memref<5x80xbf16, #tpu.memory_space<vmem>>, vector<5x80xbf16>
    %cst_179 = arith.constant dense<0.000000e+00> : vector<5x128xf32>
    %289 = tpu.matmul %288, %287, %cst_179 {dimension_numbers = #tpu.dot_dimension_numbers<[1], [0], [0], [1], [0, 0, 1, 1], [], []>} : vector<5x80xbf16>, vector<80x128xbf16>, vector<5x128xf32> -> vector<5x128xf32>
    %c0_180 = arith.constant 0 : index
    %c0_181 = arith.constant 0 : index
    %290 = vector.load %arg10[%c0_180, %c0_181] : memref<5x1xf32, #tpu.memory_space<vmem>>, vector<5x1xf32>
    %291 = vector.broadcast %290 : vector<5x1xf32> to vector<5x128xf32>
    %292 = arith.addf %289, %291 : vector<5x128xf32>
    %293 = tpu.iota {dimensions = array<i32: 0>} : vector<5x128xi32>
    %cst_182 = arith.constant dense<0xFF800000> : vector<128xf32>
    %294 = vector.multi_reduction <maximumf>, %292, %cst_182 [0] : vector<5x128xf32> to vector<128xf32>
    %295 = vector.shape_cast %294 : vector<128xf32> to vector<1x128xf32>
    %296 = vector.broadcast %295 : vector<1x128xf32> to vector<5x128xf32>
    %297 = arith.cmpf oeq, %292, %296 : vector<5x128xf32>
    %298 = arith.sitofp %293 : vector<5x128xi32> to vector<5x128xf32>
    %cst_183 = arith.constant 5.000000e+00 : f32
    %299 = vector.broadcast %cst_183 : f32 to vector<5x128xf32>
    %300 = arith.select %297, %298, %299 : vector<5x128xi1>, vector<5x128xf32>
    %cst_184 = arith.constant dense<0x7F800000> : vector<128xf32>
    %301 = vector.multi_reduction <minimumf>, %300, %cst_184 [0] : vector<5x128xf32> to vector<128xf32>
    %302 = vector.shape_cast %301 : vector<128xf32> to vector<1x128xf32>
    %303 = arith.fptosi %302 : vector<1x128xf32> to vector<1x128xi32>
    %c0_185 = arith.constant 0 : index
    %c0_186 = arith.constant 0 : index
    %304 = vector.load %arg11[%c0_185, %c0_186] : memref<1x128xi32, #tpu.memory_space<vmem>>, vector<1x128xi32>
    tpu.vector_store %arg11[%c0_185, %c0_186], %303 {strides = array<i32>} : memref<1x128xi32, #tpu.memory_space<vmem>>, vector<1x128xi32>,
    %c0_187 = arith.constant 0 : index
    %c0_188 = arith.constant 0 : index
    %305 = vector.load %arg5[%c0_187, %c0_188] : memref<1x128xi32, #tpu.memory_space<vmem>>, vector<1x128xi32>
    %306 = vector.broadcast %295 : vector<1x128xf32> to vector<5x128xf32>
    %307 = arith.subf %292, %306 : vector<5x128xf32>
    %308 = math.exp %307 : vector<5x128xf32>
    %cst_189 = arith.constant dense<0.000000e+00> : vector<128xf32>
    %309 = vector.multi_reduction <add>, %308, %cst_189 [0] : vector<5x128xf32> to vector<128xf32>
    %310 = vector.shape_cast %309 : vector<128xf32> to vector<1x128xf32>
    %311 = vector.broadcast %305 : vector<1x128xi32> to vector<5x128xi32>
    %312 = arith.cmpi eq, %293, %311 : vector<5x128xi32>
    %cst_190 = arith.constant 0.000000e+00 : f32
    %313 = vector.broadcast %cst_190 : f32 to vector<5x128xf32>
    %314 = arith.select %312, %307, %313 : vector<5x128xi1>, vector<5x128xf32>
    %cst_191 = arith.constant dense<0.000000e+00> : vector<128xf32>
    %315 = vector.multi_reduction <add>, %314, %cst_191 [0] : vector<5x128xf32> to vector<128xf32>
    %316 = vector.shape_cast %315 : vector<128xf32> to vector<1x128xf32>
    %317 = math.log %310 : vector<1x128xf32>
    %318 = arith.subf %317, %316 : vector<1x128xf32>
    %c-100_i32 = arith.constant -100 : i32
    %319 = vector.broadcast %c-100_i32 : i32 to vector<1x128xi32>
    %320 = arith.cmpi ne, %305, %319 : vector<1x128xi32>
    %cst_192 = arith.constant 0.000000e+00 : f32
    %321 = vector.broadcast %cst_192 : f32 to vector<1x128xf32>
    %322 = arith.select %320, %318, %321 : vector<1x128xi1>, vector<1x128xf32>
    %c0_193 = arith.constant 0 : index
    %c0_194 = arith.constant 0 : index
    %323 = vector.load %arg6[%c0_193, %c0_194] : memref<1x128xf32, #tpu.memory_space<vmem>>, vector<1x128xf32>
    %324 = arith.mulf %322, %323 : vector<1x128xf32>
    %c0_195 = arith.constant 0 : index
    %c0_196 = arith.constant 0 : index
    %325 = vector.load %arg12[%c0_195, %c0_196] : memref<1x128xf32, #tpu.memory_space<vmem>>, vector<1x128xf32>
    tpu.vector_store %arg12[%c0_195, %c0_196], %324 {strides = array<i32>} : memref<1x128xf32, #tpu.memory_space<vmem>>, vector<1x128xf32>,
    return
  }
  func.func @transform_0(%arg0: i32) -> (i32, i32) {
    %c0_i32 = arith.constant 0 : i32
    %c0_i32_0 = arith.constant 0 : i32
    return %c0_i32, %arg0 : i32, i32
  }
  func.func @transform_1(%arg0: i32) -> (i32, i32, i32) {
    %c0_i32 = arith.constant 0 : i32
    %c0_i32_0 = arith.constant 0 : i32
    %c0_i32_1 = arith.constant 0 : i32
    return %c0_i32, %c0_i32_0, %arg0 : i32, i32, i32
  }
  func.func @transform_2(%arg0: i32) -> (i32, i32, i32) {
    %c0_i32 = arith.constant 0 : i32
    %c0_i32_0 = arith.constant 0 : i32
    %c0_i32_1 = arith.constant 0 : i32
    return %c0_i32, %c0_i32_0, %arg0 : i32, i32, i32
  }
  func.func @transform_3(%arg0: i32) -> (i32, i32) {
    %c0_i32 = arith.constant 0 : i32
    %c0_i32_0 = arith.constant 0 : i32
    return %c0_i32, %arg0 : i32, i32
  }
  func.func @transform_4(%arg0: i32) -> (i32, i32) {
    %c0_i32 = arith.constant 0 : i32
    %c0_i32_0 = arith.constant 0 : i32
    return %c0_i32, %arg0 : i32, i32
  }
  func.func @transform_5(%arg0: i32) -> (i32, i32) {
    %c0_i32 = arith.constant 0 : i32
    %c0_i32_0 = arith.constant 0 : i32
    return %c0_i32, %arg0 : i32, i32
  }
  func.func @transform_6(%arg0: i32) -> (i32, i32) {
    %c0_i32 = arith.constant 0 : i32
    %c0_i32_0 = arith.constant 0 : i32
    %c0_i32_1 = arith.constant 0 : i32
    return %c0_i32, %c0_i32_0 : i32, i32
  }
  func.func @transform_7(%arg0: i32) -> (i32, i32) {
    %c0_i32 = arith.constant 0 : i32
    %c0_i32_0 = arith.constant 0 : i32
    %c0_i32_1 = arith.constant 0 : i32
    return %c0_i32, %c0_i32_0 : i32, i32
  }
  func.func @transform_8(%arg0: i32) -> (i32, i32) {
    %c0_i32 = arith.constant 0 : i32
    %c0_i32_0 = arith.constant 0 : i32
    %c0_i32_1 = arith.constant 0 : i32
    return %c0_i32, %c0_i32_0 : i32, i32
  }
  func.func @transform_9(%arg0: i32) -> (i32, i32) {
    %c0_i32 = arith.constant 0 : i32
    %c0_i32_0 = arith.constant 0 : i32
    %c0_i32_1 = arith.constant 0 : i32
    return %c0_i32, %c0_i32_0 : i32, i32
  }
  func.func @transform_10(%arg0: i32) -> (i32, i32) {
    %c0_i32 = arith.constant 0 : i32
    %c0_i32_0 = arith.constant 0 : i32
    return %c0_i32, %arg0 : i32, i32
  }
  func.func @transform_11(%arg0: i32) -> (i32, i32) {
    %c0_i32 = arith.constant 0 : i32
    %c0_i32_0 = arith.constant 0 : i32
    return %c0_i32, %arg0 : i32, i32
  }
}

</mosaic_0001>

<llo_original>
// kernel: squeeze.1
$region0: #{squeeze.1}
  %s0 = inlined_call_operand.vmem [shape: s32[16], index: 0, kind: input, shape index: {}]
  %s1 = inlined_call_operand.hbm [shape: s32[2,8], index: 1, kind: output, shape index: {}]
  $region1: #{squeeze.1} parent=0
    #allocation0 [shape = 'u8[1024]{0}', space=vmem, size = 0x400, scoped, tag = 'operand span for operand 1']
    #allocation1 [shape = 's32[1]{0}', space=sflag, size = 0x4, scoped, tag = 'scoped memory for squeeze.1']
    #allocation2 [shape = 'u8[4096]{0}', space=vmem, size = 0x1000, scoped, tag = 'scoped mem for output reshape']
    #allocation3 [shape = 'u8[4096]{0}', space=vmem, size = 0x1000, scoped, tag = 'scoped mem for input reshape']
    %2 = vsyncpa [#allocation1], 0
    %s4 = sshll.u32 1, 1
    %s5 = ssub.s32 %s4, 1
    %v6 = vld [vmem:[%s0] sm:%s5]
    %7 = vst [vmem:[#allocation3] sm:%s5] %v6
    %v8 = vld [vmem:[#allocation3] sm:$0x1]
    %vm9 = vcmask 64512
    %10 = vst.msk [vmem:[#allocation2] sm:$0x1] %vm9, %v8
    %v11 = vld [vmem:[#allocation3] sm:$0x1]
    %12 = vrot.lane.b32.xlu0 %v11, 120
    %v13 = vpop.permute.xlu0 %12
    %vm14 = vcmask 64512
    %s15 = scalar_lea.vmem [#allocation2], 1
    %16 = vst.msk [vmem:[%s15] sm:$0x1] %vm14, %v13
    %s18 = sshll.u32 1, 2
    %s19 = ssub.s32 %s18, 1
    %v21 = vld [vmem:[#allocation2] sm:%s19]
    %s22 = sshll.u32 1, 2
    %s23 = ssub.s32 %s22, 1
    %24 = vst [vmem:[#allocation0] sm:%s23] %v21
    %s26 = ssub.s32 32, 32
    %27 = vsyncadd [#allocation1], %s26
    %s29 = sshll.u32 [#allocation0], 4
    %s30 = int_to_ptr.vmem [resolvable:$true] %s29
    %32 = dma.vmem_to_hbm [thread:$0]  %s30, 32, %s1, [#allocation1]
    %33 = dma.done [#allocation1], 32
    %34 = vsyncpa [#allocation1], 1

// kernel: cse_tagger_forward.1
$region0: #{cse_tagger_forward.1}
  #allocation0 [shape = 'u32[]', space=smem, size = 0x4, offset = 0x4, fixed_abs, tag = 'smem constant byte address 0x4 - core index']
  #allocation1 [shape = 'u32[144,128]{1,0:T(1,128)}', space=vmem, size = 0x12000, scoped, tag = 'internal scratch']
  #allocation2 [shape = 'f32[432,128]{1,0:T(8,128)}', space=vmem, size = 0x36000, scoped, tag = 'scratch operand']
  %s0 = inlined_call_operand.vmem [shape: bf16[32,128], index: 0, kind: input, shape index: {}]
  %s1 = inlined_call_operand.vmem [shape: bf16[12,8,128], index: 1, kind: input, shape index: {}]
  %s2 = inlined_call_operand.vmem [shape: bf16[12,16,128], index: 2, kind: input, shape index: {}]
  %s3 = inlined_call_operand.vmem [shape: f32[12,128], index: 3, kind: input, shape index: {}]
  %s4 = inlined_call_operand.vmem [shape: s32[1,128], index: 4, kind: input, shape index: {}]
  %s5 = inlined_call_operand.vmem [shape: f32[1,128], index: 5, kind: input, shape index: {}]
  %s6 = inlined_call_operand.vmem [shape: bf16[48,168], index: 6, kind: input, shape index: {}]
  %s7 = inlined_call_operand.vmem [shape: f32[48,1], index: 7, kind: input, shape index: {}]
  %s8 = inlined_call_operand.vmem [shape: bf16[5,80], index: 8, kind: input, shape index: {}]
  %s9 = inlined_call_operand.vmem [shape: f32[5,1], index: 9, kind: input, shape index: {}]
  %s10 = inlined_call_operand.vmem [shape: s32[1,128], index: 10, kind: output, shape index: {0}]
  %s11 = inlined_call_operand.vmem [shape: f32[1,128], index: 11, kind: output, shape index: {1}]
  %12 = xla_tuple %s10, %s11
  %s13 = sld [smem:[#allocation0]]
  $region58: #{cse_tagger_forward.1} parent=0
    _
  %s15 = ssub.s32 1, %s13
  %s16 = scalar_select 0, %s15, %s13
  // Predicated region
  $region2: #{cse_tagger_forward.1} parent=0 // pred_check
    _
  $region3: #{cse_tagger_forward.1} parent=0 // pred_check_branch
    %18 = sbr.rel (0) target = $region5
  $region4: #{cse_tagger_forward.1} parent=0 // pred_region
    _
  $region5: #{cse_tagger_forward.1} parent=0 // pred_fallthru
    _
  // Predicated region
  $region6: #{cse_tagger_forward.1} parent=0 // pred_check
    _
  $region7: #{cse_tagger_forward.1} parent=0 // pred_check_branch
    %20 = sbr.rel (0) target = $region9
  $region8: #{cse_tagger_forward.1} parent=0 // pred_region
    _
  $region9: #{cse_tagger_forward.1} parent=0 // pred_fallthru
    _
  // Predicated region
  $region10: #{cse_tagger_forward.1} parent=0 // pred_check
    _
  $region11: #{cse_tagger_forward.1} parent=0 // pred_check_branch
    %22 = sbr.rel (0) target = $region13
  $region12: #{cse_tagger_forward.1} parent=0 // pred_region
    _
  $region13: #{cse_tagger_forward.1} parent=0 // pred_fallthru
    _
  // Predicated region
  $region14: #{cse_tagger_forward.1} parent=0 // pred_check
    _
  $region15: #{cse_tagger_forward.1} parent=0 // pred_check_branch
    %24 = sbr.rel (0) target = $region17
  $region16: #{cse_tagger_forward.1} parent=0 // pred_region
    _
  $region17: #{cse_tagger_forward.1} parent=0 // pred_fallthru
    _
  // Predicated region
  $region18: #{cse_tagger_forward.1} parent=0 // pred_check
    _
  $region19: #{cse_tagger_forward.1} parent=0 // pred_check_branch
    %26 = sbr.rel (0) target = $region21
  $region20: #{cse_tagger_forward.1} parent=0 // pred_region
    _
  $region21: #{cse_tagger_forward.1} parent=0 // pred_fallthru
    _
  // Predicated region
  $region22: #{cse_tagger_forward.1} parent=0 // pred_check
    _
  $region23: #{cse_tagger_forward.1} parent=0 // pred_check_branch
    %28 = sbr.rel (0) target = $region25
  $region24: #{cse_tagger_forward.1} parent=0 // pred_region
    _
  $region25: #{cse_tagger_forward.1} parent=0 // pred_fallthru
    _
  // Predicated region
  $region26: #{cse_tagger_forward.1} parent=0 // pred_check
    _
  $region27: #{cse_tagger_forward.1} parent=0 // pred_check_branch
    %30 = sbr.rel (0) target = $region29
  $region28: #{cse_tagger_forward.1} parent=0 // pred_region
    _
  $region29: #{cse_tagger_forward.1} parent=0 // pred_fallthru
    _
  // Predicated region
  $region30: #{cse_tagger_forward.1} parent=0 // pred_check
    _
  $region31: #{cse_tagger_forward.1} parent=0 // pred_check_branch
    %32 = sbr.rel (0) target = $region33
  $region32: #{cse_tagger_forward.1} parent=0 // pred_region
    _
  $region33: #{cse_tagger_forward.1} parent=0 // pred_fallthru
    _
  // Predicated region
  $region34: #{cse_tagger_forward.1} parent=0 // pred_check
    _
  $region35: #{cse_tagger_forward.1} parent=0 // pred_check_branch
    %34 = sbr.rel (0) target = $region37
  $region36: #{cse_tagger_forward.1} parent=0 // pred_region
    _
  $region37: #{cse_tagger_forward.1} parent=0 // pred_fallthru
    _
  // Predicated region
  $region38: #{cse_tagger_forward.1} parent=0 // pred_check
    _
  $region39: #{cse_tagger_forward.1} parent=0 // pred_check_branch
    %36 = sbr.rel (0) target = $region41
  $region40: #{cse_tagger_forward.1} parent=0 // pred_region
    _
  $region41: #{cse_tagger_forward.1} parent=0 // pred_fallthru
    _
  %38 = vst [vmem:[#allocation2] sm:$0xff] 0.0
  %39 = vst [vmem:[#allocation2 + $0x8] sm:$0xff] 0.0
  %40 = vst [vmem:[#allocation2 + $0x10] sm:$0xff] 0.0
  %41 = vst [vmem:[#allocation2 + $0x18] sm:$0xff] 0.0
  %42 = vst [vmem:[#allocation2 + $0x20] sm:$0xff] 0.0
  %43 = vst [vmem:[#allocation2 + $0x28] sm:$0xff] 0.0
  %44 = vst [vmem:[#allocation2 + $0x30] sm:$0xff] 0.0
  %45 = vst [vmem:[#allocation2 + $0x38] sm:$0xff] 0.0
  %46 = vst [vmem:[#allocation2 + $0x40] sm:$0xff] 0.0
  %47 = vst [vmem:[#allocation2 + $0x168] sm:$0xff] 0.0
  %48 = vst [vmem:[#allocation2 + $0x170] sm:$0xff] 0.0
  %49 = vst [vmem:[#allocation2 + $0x178] sm:$0xff] 0.0
  %50 = vst [vmem:[#allocation2 + $0x180] sm:$0xff] 0.0
  %51 = vst [vmem:[#allocation2 + $0x188] sm:$0xff] 0.0
  %52 = vst [vmem:[#allocation2 + $0x190] sm:$0xff] 0.0
  %53 = vst [vmem:[#allocation2 + $0x198] sm:$0xff] 0.0
  %54 = vst [vmem:[#allocation2 + $0x1a0] sm:$0xff] 0.0
  %55 = vst [vmem:[#allocation2 + $0x1a8] sm:$0xff] 0.0
  %v56 = vld [vmem:[%s1] sm:$0xf]
  %v57 = vunpack.c.l.bf16 %v56
  %58 = vst [vmem:[#allocation2 + $0x48] sm:$0xff] %v57
  %v59 = vld [vmem:[%s2] sm:$0xf]
  %v60 = vld [vmem:[%s2 + $0x4] sm:$0xf]
  %v61 = vunpack.c.l.bf16 %v59
  %v62 = vunpack.c.l.bf16 %v60
  %63 = vst [vmem:[#allocation2 + $0x50] sm:$0xff] %v61
  %64 = vst [vmem:[#allocation2 + $0x58] sm:$0xff] %v62
  %s65 = scalar_lea.vmem %s1, 4
  %v66 = vld [vmem:[%s65] sm:$0xf]
  %v67 = vunpack.c.l.bf16 %v66
  %68 = vst [vmem:[#allocation2 + $0x60] sm:$0xff] %v67
  %s69 = scalar_lea.vmem %s2, 8
  %v70 = vld [vmem:[%s69] sm:$0xf]
  %v71 = vld [vmem:[%s69 + $0x4] sm:$0xf]
  %v72 = vunpack.c.l.bf16 %v70
  %v73 = vunpack.c.l.bf16 %v71
  %74 = vst [vmem:[#allocation2 + $0x68] sm:$0xff] %v72
  %75 = vst [vmem:[#allocation2 + $0x70] sm:$0xff] %v73
  %s76 = scalar_lea.vmem %s1, 8
  %v77 = vld [vmem:[%s76] sm:$0xf]
  %v78 = vunpack.c.l.bf16 %v77
  %79 = vst [vmem:[#allocation2 + $0x78] sm:$0xff] %v78
  %s80 = scalar_lea.vmem %s2, 16
  %v81 = vld [vmem:[%s80] sm:$0xf]
  %v82 = vld [vmem:[%s80 + $0x4] sm:$0xf]
  %v83 = vunpack.c.l.bf16 %v81
  %v84 = vunpack.c.l.bf16 %v82
  %85 = vst [vmem:[#allocation2 + $0x80] sm:$0xff] %v83
  %86 = vst [vmem:[#allocation2 + $0x88] sm:$0xff] %v84
  %s87 = scalar_lea.vmem %s1, 12
  %v88 = vld [vmem:[%s87] sm:$0xf]
  %v89 = vunpack.c.l.bf16 %v88
  %90 = vst [vmem:[#allocation2 + $0x90] sm:$0xff] %v89
  %s91 = scalar_lea.vmem %s2, 24
  %v92 = vld [vmem:[%s91] sm:$0xf]
  %v93 = vld [vmem:[%s91 + $0x4] sm:$0xf]
  %v94 = vunpack.c.l.bf16 %v92
  %v95 = vunpack.c.l.bf16 %v93
  %96 = vst [vmem:[#allocation2 + $0x98] sm:$0xff] %v94
  %97 = vst [vmem:[#allocation2 + $0xa0] sm:$0xff] %v95
  %s98 = scalar_lea.vmem %s1, 16
  %v99 = vld [vmem:[%s98] sm:$0xf]
  %v100 = vunpack.c.l.bf16 %v99
  %101 = vst [vmem:[#allocation2 + $0xa8] sm:$0xff] %v100
  %s102 = scalar_lea.vmem %s2, 32
  %v103 = vld [vmem:[%s102] sm:$0xf]
  %v104 = vld [vmem:[%s102 + $0x4] sm:$0xf]
  %v105 = vunpack.c.l.bf16 %v103
  %v106 = vunpack.c.l.bf16 %v104
  %107 = vst [vmem:[#allocation2 + $0xb0] sm:$0xff] %v105
  %108 = vst [vmem:[#allocation2 + $0xb8] sm:$0xff] %v106
  %s109 = scalar_lea.vmem %s1, 20
  %v110 = vld [vmem:[%s109] sm:$0xf]
  %v111 = vunpack.c.l.bf16 %v110
  %112 = vst [vmem:[#allocation2 + $0xc0] sm:$0xff] %v111
  %s113 = scalar_lea.vmem %s2, 40
  %v114 = vld [vmem:[%s113] sm:$0xf]
  %v115 = vld [vmem:[%s113 + $0x4] sm:$0xf]
  %v116 = vunpack.c.l.bf16 %v114
  %v117 = vunpack.c.l.bf16 %v115
  %118 = vst [vmem:[#allocation2 + $0xc8] sm:$0xff] %v116
  %119 = vst [vmem:[#allocation2 + $0xd0] sm:$0xff] %v117
  %s120 = scalar_lea.vmem %s1, 24
  %v121 = vld [vmem:[%s120] sm:$0xf]
  %v122 = vunpack.c.l.bf16 %v121
  %123 = vst [vmem:[#allocation2 + $0xd8] sm:$0xff] %v122
  %s124 = scalar_lea.vmem %s2, 48
  %v125 = vld [vmem:[%s124] sm:$0xf]
  %v126 = vld [vmem:[%s124 + $0x4] sm:$0xf]
  %v127 = vunpack.c.l.bf16 %v125
  %v128 = vunpack.c.l.bf16 %v126
  %129 = vst [vmem:[#allocation2 + $0xe0] sm:$0xff] %v127
  %130 = vst [vmem:[#allocation2 + $0xe8] sm:$0xff] %v128
  %s131 = scalar_lea.vmem %s1, 28
  %v132 = vld [vmem:[%s131] sm:$0xf]
  %v133 = vunpack.c.l.bf16 %v132
  %134 = vst [vmem:[#allocation2 + $0xf0] sm:$0xff] %v133
  %s135 = scalar_lea.vmem %s2, 56
  %v136 = vld [vmem:[%s135] sm:$0xf]
  %v137 = vld [vmem:[%s135 + $0x4] sm:$0xf]
  %v138 = vunpack.c.l.bf16 %v136
  %v139 = vunpack.c.l.bf16 %v137
  %140 = vst [vmem:[#allocation2 + $0xf8] sm:$0xff] %v138
  %141 = vst [vmem:[#allocation2 + $0x100] sm:$0xff] %v139
  %s142 = scalar_lea.vmem %s1, 32
  %v143 = vld [vmem:[%s142] sm:$0xf]
  %v144 = vunpack.c.l.bf16 %v143
  %145 = vst [vmem:[#allocation2 + $0x108] sm:$0xff] %v144
  %s146 = scalar_lea.vmem %s2, 64
  %v147 = vld [vmem:[%s146] sm:$0xf]
  %v148 = vld [vmem:[%s146 + $0x4] sm:$0xf]
  %v149 = vunpack.c.l.bf16 %v147
  %v150 = vunpack.c.l.bf16 %v148
  %151 = vst [vmem:[#allocation2 + $0x110] sm:$0xff] %v149
  %152 = vst [vmem:[#allocation2 + $0x118] sm:$0xff] %v150
  %s153 = scalar_lea.vmem %s1, 36
  %v154 = vld [vmem:[%s153] sm:$0xf]
  %v155 = vunpack.c.l.bf16 %v154
  %156 = vst [vmem:[#allocation2 + $0x120] sm:$0xff] %v155
  %s157 = scalar_lea.vmem %s2, 72
  %v158 = vld [vmem:[%s157] sm:$0xf]
  %v159 = vld [vmem:[%s157 + $0x4] sm:$0xf]
  %v160 = vunpack.c.l.bf16 %v158
  %v161 = vunpack.c.l.bf16 %v159
  %162 = vst [vmem:[#allocation2 + $0x128] sm:$0xff] %v160
  %163 = vst [vmem:[#allocation2 + $0x130] sm:$0xff] %v161
  %s164 = scalar_lea.vmem %s1, 40
  %v165 = vld [vmem:[%s164] sm:$0xf]
  %v166 = vunpack.c.l.bf16 %v165
  %167 = vst [vmem:[#allocation2 + $0x138] sm:$0xff] %v166
  %s168 = scalar_lea.vmem %s2, 80
  %v169 = vld [vmem:[%s168] sm:$0xf]
  %v170 = vld [vmem:[%s168 + $0x4] sm:$0xf]
  %v171 = vunpack.c.l.bf16 %v169
  %v172 = vunpack.c.l.bf16 %v170
  %173 = vst [vmem:[#allocation2 + $0x140] sm:$0xff] %v171
  %174 = vst [vmem:[#allocation2 + $0x148] sm:$0xff] %v172
  %s175 = scalar_lea.vmem %s1, 44
  %v176 = vld [vmem:[%s175] sm:$0xf]
  %v177 = vunpack.c.l.bf16 %v176
  %178 = vst [vmem:[#allocation2 + $0x150] sm:$0xff] %v177
  %s179 = scalar_lea.vmem %s2, 88
  %v180 = vld [vmem:[%s179] sm:$0xf]
  %v181 = vld [vmem:[%s179 + $0x4] sm:$0xf]
  %v182 = vunpack.c.l.bf16 %v180
  %v183 = vunpack.c.l.bf16 %v181
  %184 = vst [vmem:[#allocation2 + $0x158] sm:$0xff] %v182
  %185 = vst [vmem:[#allocation2 + $0x160] sm:$0xff] %v183
  %v186 = vld [vmem:[%s7] sm:$0xff]
  %v187 = vld [vmem:[%s7 + $0x8] sm:$0xff]
  %v188 = vld [vmem:[%s7 + $0x10] sm:$0xff]
  %v189 = vld [vmem:[%s7 + $0x18] sm:$0xff]
  %v190 = vld [vmem:[%s7 + $0x20] sm:$0xff]
  %v191 = vld [vmem:[%s7 + $0x28] sm:$0xff]
  %193 = vset.pattern.permute.xlu0 0
  %194 = vperm.xlu0 %193, %v186
  %v195 = vpop.permute.xlu0 %194
  %198 = vset.pattern.permute.xlu0 0
  %199 = vperm.xlu0 %198, %v187
  %v200 = vpop.permute.xlu0 %199
  %203 = vset.pattern.permute.xlu0 0
  %204 = vperm.xlu0 %203, %v188
  %v205 = vpop.permute.xlu0 %204
  %208 = vset.pattern.permute.xlu0 0
  %209 = vperm.xlu0 %208, %v189
  %v210 = vpop.permute.xlu0 %209
  %213 = vset.pattern.permute.xlu0 0
  %214 = vperm.xlu0 %213, %v190
  %v215 = vpop.permute.xlu0 %214
  %218 = vset.pattern.permute.xlu0 0
  %219 = vperm.xlu0 %218, %v191
  %v220 = vpop.permute.xlu0 %219
  %v222 = vld [vmem:[%s6] sm:$0xff]
  %v223 = vld [vmem:[%s6 + $0x8] sm:$0xff]
  %v224 = vld [vmem:[%s6 + $0x10] sm:$0xff]
  %v225 = vld [vmem:[%s6 + $0x18] sm:$0xff]
  %v226 = vld [vmem:[%s6 + $0x20] sm:$0xff]
  %v227 = vld [vmem:[%s6 + $0x28] sm:$0xff]
  %v228 = vld [vmem:[#allocation2] sm:$0xff]
  %v229 = vld [vmem:[#allocation2 + $0x8] sm:$0xff]
  %v230 = vld [vmem:[#allocation2 + $0x10] sm:$0xff]
  %v231 = vld [vmem:[#allocation2 + $0x18] sm:$0xff]
  %v232 = vld [vmem:[#allocation2 + $0x20] sm:$0xff]
  %v233 = vld [vmem:[#allocation2 + $0x28] sm:$0xff]
  %v234 = vld [vmem:[#allocation2 + $0x30] sm:$0xff]
  %v235 = vld [vmem:[#allocation2 + $0x38] sm:$0xff]
  %v236 = vld [vmem:[#allocation2 + $0x40] sm:$0xff]
  %v237 = vld [vmem:[#allocation2 + $0x48] sm:$0xff]
  %v238 = vld [vmem:[#allocation2 + $0x50] sm:$0xff]
  %v239 = vld [vmem:[#allocation2 + $0x58] sm:$0xff]
  %v240 = vld [vmem:[#allocation2 + $0x60] sm:$0xff]
  %v241 = vld [vmem:[#allocation2 + $0x68] sm:$0xff]
  %v242 = vld [vmem:[#allocation2 + $0x70] sm:$0xff]
  %v243 = vld [vmem:[#allocation2 + $0x78] sm:$0xff]
  %v244 = vld [vmem:[#allocation2 + $0x80] sm:$0xff]
  %v245 = vld [vmem:[#allocation2 + $0x88] sm:$0xff]
  %v246 = vld [vmem:[#allocation2 + $0x90] sm:$0xff]
  %v247 = vld [vmem:[#allocation2 + $0x98] sm:$0xff]
  %v248 = vld [vmem:[#allocation2 + $0xa0] sm:$0xff]
  %v249 = vpack.c.bf16 %v229, %v228
  %v250 = vpack.c.bf16 %v231, %v230
  %v251 = vpack.c.bf16 %v233, %v232
  %v252 = vpack.c.bf16 %v235, %v234
  %v253 = vpack.c.bf16 %v237, %v236
  %v254 = vpack.c.bf16 %v239, %v238
  %v255 = vpack.c.bf16 %v241, %v240
  %v256 = vpack.c.bf16 %v243, %v242
  %v257 = vpack.c.bf16 %v245, %v244
  %v258 = vpack.c.bf16 %v247, %v246
  %v259 = vpack.c.bf16 %v248, %v248
  %v266 = vunpack.c.l.b16 %v222
  %v267 = vunpack.c.h.b16 %v222
  %v268 = vunpack.c.l.b16 %v223
  %v269 = vunpack.c.h.b16 %v223
  %v270 = vunpack.c.l.b16 %v224
  %v271 = vunpack.c.h.b16 %v224
  %v272 = vunpack.c.l.b16 %v225
  %v273 = vunpack.c.h.b16 %v225
  %v274 = vunpack.c.l.b16 %v226
  %v275 = vunpack.c.h.b16 %v226
  %v276 = vunpack.c.l.b16 %v227
  %v277 = vunpack.c.h.b16 %v227
  %v278 = vpack.c.b16 %v268, %v266
  %v279 = vpack.c.b16 %v269, %v267
  %v280 = vpack.c.b16 %v272, %v270
  %v281 = vpack.c.b16 %v273, %v271
  %v282 = vpack.c.b16 %v276, %v274
  %v283 = vpack.c.b16 %v277, %v275
  %vm287 = vcmask 326656
  %v289 = vsel %vm287, %v279, 0
  %v292 = vsel %vm287, %v281, 0
  %v295 = vsel %vm287, %v283, 0
  %vm297 = vcmask 1043456
  %v299 = vsel %vm297, %v259, 0
  %301 = vmatprep.subr.bf16.mxu0 0
  %302 = vmatpush1.bf16.msra.mxu0 %v256
  %303 = vmatprep.subr.bf16.mxu0 0
  %304 = vmatpush1.bf16.msra.mxu0 %v255
  %305 = vmatprep.subr.bf16.mxu0 0
  %306 = vmatpush1.bf16.msra.mxu0 %v254
  %307 = vmatprep.subr.bf16.mxu0 0
  %308 = vmatpush1.bf16.msra.mxu0 %v253
  %309 = vmatprep.subr.bf16.mxu0 0
  %310 = vmatpush1.bf16.msra.mxu0 %v252
  %311 = vmatprep.subr.bf16.mxu0 0
  %312 = vmatpush1.bf16.msra.mxu0 %v251
  %313 = vmatprep.subr.bf16.mxu0 0
  %314 = vmatpush1.bf16.msra.mxu0 %v250
  %315 = vmatprep.subr.bf16.mxu0 0
  %316 = vmatpush1.bf16.msra.mxu0 %v249
  %317 = vmatprep.subr.bf16.mxu0 0
  %318 = vmatpush2.bf16.msra.mxu0 0
  %319 = vmatprep.subr.bf16.mxu0 0
  %320 = vmatpush2.bf16.msra.mxu0 0
  %321 = vmatprep.subr.bf16.mxu0 0
  %322 = vmatpush2.bf16.msra.mxu0 0
  %323 = vmatprep.subr.bf16.mxu0 0
  %324 = vmatpush2.bf16.msra.mxu0 0
  %325 = vmatprep.subr.bf16.mxu0 0
  %326 = vmatpush2.bf16.msra.mxu0 0
  %327 = vmatprep.subr.bf16.mxu0 0
  %328 = vmatpush2.bf16.msra.mxu0 %v299
  %329 = vmatprep.subr.bf16.mxu0 0
  %330 = vmatpush2.bf16.msra.mxu0 %v258
  %331 = vmatprep.subr.bf16.mxu0 0
  %332 = vmatpush2.bf16.msra.mxu0 %v257
  %333 = vmatprep.mubr.bf16.mxu0 %v289
  %334 = vmatmul.mubr.bf16.gmra.mxu0 %v278
  %v335 = vpop.f32.mrf.mxu0
  %v336 = vadd.f32 %v195, %v335
  %v337 = vpop.f32.mrf.mxu0
  %v338 = vpop.f32.mrf.mxu0
  %v339 = vadd.f32 %v200, %v338
  %v340 = vpop.f32.mrf.mxu0
  %341 = vmatprep.mubr.bf16.mxu0 %v292
  %342 = vmatmul.mubr.bf16.gmra.mxu0 %v280
  %v343 = vpop.f32.mrf.mxu0
  %v344 = vadd.f32 %v205, %v343
  %v345 = vpop.f32.mrf.mxu0
  %v346 = vpop.f32.mrf.mxu0
  %v347 = vadd.f32 %v210, %v346
  %v348 = vpop.f32.mrf.mxu0
  %349 = vmatprep.mubr.bf16.mxu0 %v295
  %350 = vmatmul.mubr.bf16.gmra.mxu0 %v282
  %v351 = vpop.f32.mrf.mxu0
  %v352 = vadd.f32 %v215, %v351
  %v353 = vpop.f32.mrf.mxu0
  %v354 = vpop.f32.mrf.mxu0
  %v355 = vadd.f32 %v220, %v354
  %v356 = vpop.f32.mrf.mxu0
  %357 = vdwg.mxu0
  %v358 = vsub.f32 0.0, %v336
  %v359 = vsub.f32 0.0, %v339
  %v360 = vsub.f32 0.0, %v344
  %v361 = vsub.f32 0.0, %v347
  %v362 = vsub.f32 0.0, %v352
  %v363 = vsub.f32 0.0, %v355
  %v364 = vmul.f32 %v358, 1.442695
  %v365 = vpow.pop %v364
  %v366 = vmul.f32 %v359, 1.442695
  %v367 = vpow.pop %v366
  %v368 = vmul.f32 %v360, 1.442695
  %v369 = vpow.pop %v368
  %v370 = vmul.f32 %v361, 1.442695
  %v371 = vpow.pop %v370
  %v372 = vmul.f32 %v362, 1.442695
  %v373 = vpow.pop %v372
  %v374 = vmul.f32 %v363, 1.442695
  %v375 = vpow.pop %v374
  %v376 = vadd.f32 %v365, 1.0
  %v377 = vadd.f32 %v367, 1.0
  %v378 = vadd.f32 %v369, 1.0
  %v379 = vadd.f32 %v371, 1.0
  %v380 = vadd.f32 %v373, 1.0
  %v381 = vadd.f32 %v375, 1.0
  %v382 = vrcp.pop %v376
  %v383 = vrcp.pop %v377
  %v384 = vrcp.pop %v378
  %v385 = vrcp.pop %v379
  %v386 = vrcp.pop %v380
  %v387 = vrcp.pop %v381
  %v388 = vmul.f32 %v336, %v382
  %v389 = vmul.f32 %v339, %v383
  %v390 = vmul.f32 %v344, %v384
  %v391 = vmul.f32 %v347, %v385
  %v392 = vmul.f32 %v352, %v386
  %v393 = vmul.f32 %v355, %v387
  %v394 = vld [vmem:[%s3] sm:$0x1]
  %v395 = vlaneseq
  %v396 = vshrl.u32 %v395, 7
  %v397 = vsub.s32 0, %v396
  %v398 = vrot.slane %v394, %v397
  %v399 = vmul.f32 %v388, %v398
  %v400 = vmul.f32 %v389, %v398
  %v401 = vmul.f32 %v390, %v398
  %v402 = vmul.f32 %v391, %v398
  %v403 = vmul.f32 %v392, %v398
  %v404 = vmul.f32 %v393, %v398
  %v405 = vld [vmem:[#allocation2 + $0x18] sm:$0xff]
  %v406 = vld [vmem:[#allocation2 + $0x20] sm:$0xff]
  %v407 = vld [vmem:[#allocation2 + $0x28] sm:$0xff]
  %v408 = vld [vmem:[#allocation2 + $0x30] sm:$0xff]
  %v409 = vld [vmem:[#allocation2 + $0x38] sm:$0xff]
  %v410 = vld [vmem:[#allocation2 + $0x40] sm:$0xff]
  %v411 = vld [vmem:[#allocation2 + $0x48] sm:$0xff]
  %v412 = vld [vmem:[#allocation2 + $0x50] sm:$0xff]
  %v413 = vld [vmem:[#allocation2 + $0x58] sm:$0xff]
  %v414 = vld [vmem:[#allocation2 + $0x60] sm:$0xff]
  %v415 = vld [vmem:[#allocation2 + $0x68] sm:$0xff]
  %v416 = vld [vmem:[#allocation2 + $0x70] sm:$0xff]
  %v417 = vld [vmem:[#allocation2 + $0x78] sm:$0xff]
  %v418 = vld [vmem:[#allocation2 + $0x80] sm:$0xff]
  %v419 = vld [vmem:[#allocation2 + $0x88] sm:$0xff]
  %v420 = vld [vmem:[#allocation2 + $0x90] sm:$0xff]
  %v421 = vld [vmem:[#allocation2 + $0x98] sm:$0xff]
  %v422 = vld [vmem:[#allocation2 + $0xa0] sm:$0xff]
  %v423 = vld [vmem:[#allocation2 + $0xa8] sm:$0xff]
  %v424 = vld [vmem:[#allocation2 + $0xb0] sm:$0xff]
  %v425 = vld [vmem:[#allocation2 + $0xb8] sm:$0xff]
  %v426 = vpack.c.bf16 %v406, %v405
  %v427 = vpack.c.bf16 %v408, %v407
  %v428 = vpack.c.bf16 %v410, %v409
  %v429 = vpack.c.bf16 %v412, %v411
  %v430 = vpack.c.bf16 %v414, %v413
  %v431 = vpack.c.bf16 %v416, %v415
  %v432 = vpack.c.bf16 %v418, %v417
  %v433 = vpack.c.bf16 %v420, %v419
  %v434 = vpack.c.bf16 %v422, %v421
  %v435 = vpack.c.bf16 %v424, %v423
  %v436 = vpack.c.bf16 %v425, %v425
  %v438 = vsel %vm297, %v436, 0
  %440 = vmatprep.subr.bf16.mxu0 0
  %441 = vmatpush1.bf16.msra.mxu0 %v433
  %442 = vmatprep.subr.bf16.mxu0 0
  %443 = vmatpush1.bf16.msra.mxu0 %v432
  %444 = vmatprep.subr.bf16.mxu0 0
  %445 = vmatpush1.bf16.msra.mxu0 %v431
  %446 = vmatprep.subr.bf16.mxu0 0
  %447 = vmatpush1.bf16.msra.mxu0 %v430
  %448 = vmatprep.subr.bf16.mxu0 0
  %449 = vmatpush1.bf16.msra.mxu0 %v429
  %450 = vmatprep.subr.bf16.mxu0 0
  %451 = vmatpush1.bf16.msra.mxu0 %v428
  %452 = vmatprep.subr.bf16.mxu0 0
  %453 = vmatpush1.bf16.msra.mxu0 %v427
  %454 = vmatprep.subr.bf16.mxu0 0
  %455 = vmatpush1.bf16.msra.mxu0 %v426
  %456 = vmatprep.subr.bf16.mxu0 0
  %457 = vmatpush2.bf16.msra.mxu0 0
  %458 = vmatprep.subr.bf16.mxu0 0
  %459 = vmatpush2.bf16.msra.mxu0 0
  %460 = vmatprep.subr.bf16.mxu0 0
  %461 = vmatpush2.bf16.msra.mxu0 0
  %462 = vmatprep.subr.bf16.mxu0 0
  %463 = vmatpush2.bf16.msra.mxu0 0
  %464 = vmatprep.subr.bf16.mxu0 0
  %465 = vmatpush2.bf16.msra.mxu0 0
  %466 = vmatprep.subr.bf16.mxu0 0
  %467 = vmatpush2.bf16.msra.mxu0 %v438
  %468 = vmatprep.subr.bf16.mxu0 0
  %469 = vmatpush2.bf16.msra.mxu0 %v435
  %470 = vmatprep.subr.bf16.mxu0 0
  %471 = vmatpush2.bf16.msra.mxu0 %v434
  %472 = vmatprep.mubr.bf16.mxu0 %v289
  %473 = vmatmul.mubr.bf16.gmra.mxu0 %v278
  %v474 = vpop.f32.mrf.mxu0
  %v475 = vadd.f32 %v195, %v474
  %v476 = vpop.f32.mrf.mxu0
  %v477 = vpop.f32.mrf.mxu0
  %v478 = vadd.f32 %v200, %v477
  %v479 = vpop.f32.mrf.mxu0
  %480 = vmatprep.mubr.bf16.mxu0 %v292
  %481 = vmatmul.mubr.bf16.gmra.mxu0 %v280
  %v482 = vpop.f32.mrf.mxu0
  %v483 = vadd.f32 %v205, %v482
  %v484 = vpop.f32.mrf.mxu0
  %v485 = vpop.f32.mrf.mxu0
  %v486 = vadd.f32 %v210, %v485
  %v487 = vpop.f32.mrf.mxu0
  %488 = vmatprep.mubr.bf16.mxu0 %v295
  %489 = vmatmul.mubr.bf16.gmra.mxu0 %v282
  %v490 = vpop.f32.mrf.mxu0
  %v491 = vadd.f32 %v215, %v490
  %v492 = vpop.f32.mrf.mxu0
  %v493 = vpop.f32.mrf.mxu0
  %v494 = vadd.f32 %v220, %v493
  %v495 = vpop.f32.mrf.mxu0
  %496 = vdwg.mxu0
  %v497 = vsub.f32 0.0, %v475
  %v498 = vsub.f32 0.0, %v478
  %v499 = vsub.f32 0.0, %v483
  %v500 = vsub.f32 0.0, %v486
  %v501 = vsub.f32 0.0, %v491
  %v502 = vsub.f32 0.0, %v494
  %v503 = vmul.f32 %v497, 1.442695
  %v504 = vpow.pop %v503
  %v505 = vmul.f32 %v498, 1.442695
  %v506 = vpow.pop %v505
  %v507 = vmul.f32 %v499, 1.442695
  %v508 = vpow.pop %v507
  %v509 = vmul.f32 %v500, 1.442695
  %v510 = vpow.pop %v509
  %v511 = vmul.f32 %v501, 1.442695
  %v512 = vpow.pop %v511
  %v513 = vmul.f32 %v502, 1.442695
  %v514 = vpow.pop %v513
  %v515 = vadd.f32 %v504, 1.0
  %v516 = vadd.f32 %v506, 1.0
  %v517 = vadd.f32 %v508, 1.0
  %v518 = vadd.f32 %v510, 1.0
  %v519 = vadd.f32 %v512, 1.0
  %v520 = vadd.f32 %v514, 1.0
  %v521 = vrcp.pop %v515
  %v522 = vrcp.pop %v516
  %v523 = vrcp.pop %v517
  %v524 = vrcp.pop %v518
  %v525 = vrcp.pop %v519
  %v526 = vrcp.pop %v520
  %v527 = vmul.f32 %v475, %v521
  %v528 = vmul.f32 %v478, %v522
  %v529 = vmul.f32 %v483, %v523
  %v530 = vmul.f32 %v486, %v524
  %v531 = vmul.f32 %v491, %v525
  %v532 = vmul.f32 %v494, %v526
  %v533 = vld [vmem:[%s3 + $0x1] sm:$0x1]
  %v534 = vlaneseq
  %v535 = vshrl.u32 %v534, 7
  %v536 = vsub.s32 0, %v535
  %v537 = vrot.slane %v533, %v536
  %v538 = vmul.f32 %v527, %v537
  %v539 = vmul.f32 %v528, %v537
  %v540 = vmul.f32 %v529, %v537
  %v541 = vmul.f32 %v530, %v537
  %v542 = vmul.f32 %v531, %v537
  %v543 = vmul.f32 %v532, %v537
  %v544 = vmax.f32 %v399, %v538
  %v545 = vmax.f32 %v400, %v539
  %v546 = vmax.f32 %v401, %v540
  %v547 = vmax.f32 %v402, %v541
  %v548 = vmax.f32 %v403, %v542
  %v549 = vmax.f32 %v404, %v543
  %v550 = vld [vmem:[#allocation2 + $0x30] sm:$0xff]
  %v551 = vld [vmem:[#allocation2 + $0x38] sm:$0xff]
  %v552 = vld [vmem:[#allocation2 + $0x40] sm:$0xff]
  %v553 = vld [vmem:[#allocation2 + $0x48] sm:$0xff]
  %v554 = vld [vmem:[#allocation2 + $0x50] sm:$0xff]
  %v555 = vld [vmem:[#allocation2 + $0x58] sm:$0xff]
  %v556 = vld [vmem:[#allocation2 + $0x60] sm:$0xff]
  %v557 = vld [vmem:[#allocation2 + $0x68] sm:$0xff]
  %v558 = vld [vmem:[#allocation2 + $0x70] sm:$0xff]
  %v559 = vld [vmem:[#allocation2 + $0x78] sm:$0xff]
  %v560 = vld [vmem:[#allocation2 + $0x80] sm:$0xff]
  %v561 = vld [vmem:[#allocation2 + $0x88] sm:$0xff]
  %v562 = vld [vmem:[#allocation2 + $0x90] sm:$0xff]
  %v563 = vld [vmem:[#allocation2 + $0x98] sm:$0xff]
  %v564 = vld [vmem:[#allocation2 + $0xa0] sm:$0xff]
  %v565 = vld [vmem:[#allocation2 + $0xa8] sm:$0xff]
  %v566 = vld [vmem:[#allocation2 + $0xb0] sm:$0xff]
  %v567 = vld [vmem:[#allocation2 + $0xb8] sm:$0xff]
  %v568 = vld [vmem:[#allocation2 + $0xc0] sm:$0xff]
  %v569 = vld [vmem:[#allocation2 + $0xc8] sm:$0xff]
  %v570 = vld [vmem:[#allocation2 + $0xd0] sm:$0xff]
  %v571 = vpack.c.bf16 %v551, %v550
  %v572 = vpack.c.bf16 %v553, %v552
  %v573 = vpack.c.bf16 %v555, %v554
  %v574 = vpack.c.bf16 %v557, %v556
  %v575 = vpack.c.bf16 %v559, %v558
  %v576 = vpack.c.bf16 %v561, %v560
  %v577 = vpack.c.bf16 %v563, %v562
  %v578 = vpack.c.bf16 %v565, %v564
  %v579 = vpack.c.bf16 %v567, %v566
  %v580 = vpack.c.bf16 %v569, %v568
  %v581 = vpack.c.bf16 %v570, %v570
  %v583 = vsel %vm297, %v581, 0
  %585 = vmatprep.subr.bf16.mxu0 0
  %586 = vmatpush1.bf16.msra.mxu0 %v578
  %587 = vmatprep.subr.bf16.mxu0 0
  %588 = vmatpush1.bf16.msra.mxu0 %v577
  %589 = vmatprep.subr.bf16.mxu0 0
  %590 = vmatpush1.bf16.msra.mxu0 %v576
  %591 = vmatprep.subr.bf16.mxu0 0
  %592 = vmatpush1.bf16.msra.mxu0 %v575
  %593 = vmatprep.subr.bf16.mxu0 0
  %594 = vmatpush1.bf16.msra.mxu0 %v574
  %595 = vmatprep.subr.bf16.mxu0 0
  %596 = vmatpush1.bf16.msra.mxu0 %v573
  %597 = vmatprep.subr.bf16.mxu0 0
  %598 = vmatpush1.bf16.msra.mxu0 %v572
  %599 = vmatprep.subr.bf16.mxu0 0
  %600 = vmatpush1.bf16.msra.mxu0 %v571
  %601 = vmatprep.subr.bf16.mxu0 0
  %602 = vmatpush2.bf16.msra.mxu0 0
  %603 = vmatprep.subr.bf16.mxu0 0
  %604 = vmatpush2.bf16.msra.mxu0 0
  %605 = vmatprep.subr.bf16.mxu0 0
  %606 = vmatpush2.bf16.msra.mxu0 0
  %607 = vmatprep.subr.bf16.mxu0 0
  %608 = vmatpush2.bf16.msra.mxu0 0
  %609 = vmatprep.subr.bf16.mxu0 0
  %610 = vmatpush2.bf16.msra.mxu0 0
  %611 = vmatprep.subr.bf16.mxu0 0
  %612 = vmatpush2.bf16.msra.mxu0 %v583
  %613 = vmatprep.subr.bf16.mxu0 0
  %614 = vmatpush2.bf16.msra.mxu0 %v580
  %615 = vmatprep.subr.bf16.mxu0 0
  %616 = vmatpush2.bf16.msra.mxu0 %v579
  %617 = vmatprep.mubr.bf16.mxu0 %v289
  %618 = vmatmul.mubr.bf16.gmra.mxu0 %v278
  %v619 = vpop.f32.mrf.mxu0
  %v620 = vadd.f32 %v195, %v619
  %v621 = vpop.f32.mrf.mxu0
  %v622 = vpop.f32.mrf.mxu0
  %v623 = vadd.f32 %v200, %v622
  %v624 = vpop.f32.mrf.mxu0
  %625 = vmatprep.mubr.bf16.mxu0 %v292
  %626 = vmatmul.mubr.bf16.gmra.mxu0 %v280
  %v627 = vpop.f32.mrf.mxu0
  %v628 = vadd.f32 %v205, %v627
  %v629 = vpop.f32.mrf.mxu0
  %v630 = vpop.f32.mrf.mxu0
  %v631 = vadd.f32 %v210, %v630
  %v632 = vpop.f32.mrf.mxu0
  %633 = vmatprep.mubr.bf16.mxu0 %v295
  %634 = vmatmul.mubr.bf16.gmra.mxu0 %v282
  %v635 = vpop.f32.mrf.mxu0
  %v636 = vadd.f32 %v215, %v635
  %v637 = vpop.f32.mrf.mxu0
  %v638 = vpop.f32.mrf.mxu0
  %v639 = vadd.f32 %v220, %v638
  %v640 = vpop.f32.mrf.mxu0
  %641 = vdwg.mxu0
  %v642 = vsub.f32 0.0, %v620
  %v643 = vsub.f32 0.0, %v623
  %v644 = vsub.f32 0.0, %v628
  %v645 = vsub.f32 0.0, %v631
  %v646 = vsub.f32 0.0, %v636
  %v647 = vsub.f32 0.0, %v639
  %v648 = vmul.f32 %v642, 1.442695
  %v649 = vpow.pop %v648
  %v650 = vmul.f32 %v643, 1.442695
  %v651 = vpow.pop %v650
  %v652 = vmul.f32 %v644, 1.442695
  %v653 = vpow.pop %v652
  %v654 = vmul.f32 %v645, 1.442695
  %v655 = vpow.pop %v654
  %v656 = vmul.f32 %v646, 1.442695
  %v657 = vpow.pop %v656
  %v658 = vmul.f32 %v647, 1.442695
  %v659 = vpow.pop %v658
  %v660 = vadd.f32 %v649, 1.0
  %v661 = vadd.f32 %v651, 1.0
  %v662 = vadd.f32 %v653, 1.0
  %v663 = vadd.f32 %v655, 1.0
  %v664 = vadd.f32 %v657, 1.0
  %v665 = vadd.f32 %v659, 1.0
  %v666 = vrcp.pop %v660
  %v667 = vrcp.pop %v661
  %v668 = vrcp.pop %v662
  %v669 = vrcp.pop %v663
  %v670 = vrcp.pop %v664
  %v671 = vrcp.pop %v665
  %v672 = vmul.f32 %v620, %v666
  %v673 = vmul.f32 %v623, %v667
  %v674 = vmul.f32 %v628, %v668
  %v675 = vmul.f32 %v631, %v669
  %v676 = vmul.f32 %v636, %v670
  %v677 = vmul.f32 %v639, %v671
  %v678 = vld [vmem:[%s3 + $0x2] sm:$0x1]
  %v679 = vlaneseq
  %v680 = vshrl.u32 %v679, 7
  %v681 = vsub.s32 0, %v680
  %v682 = vrot.slane %v678, %v681
  %v683 = vmul.f32 %v672, %v682
  %v684 = vmul.f32 %v673, %v682
  %v685 = vmul.f32 %v674, %v682
  %v686 = vmul.f32 %v675, %v682
  %v687 = vmul.f32 %v676, %v682
  %v688 = vmul.f32 %v677, %v682
  %v689 = vmax.f32 %v544, %v683
  %v690 = vmax.f32 %v545, %v684
  %v691 = vmax.f32 %v546, %v685
  %v692 = vmax.f32 %v547, %v686
  %v693 = vmax.f32 %v548, %v687
  %v694 = vmax.f32 %v549, %v688
  %v695 = vld [vmem:[#allocation2 + $0x48] sm:$0xff]
  %v696 = vld [vmem:[#allocation2 + $0x50] sm:$0xff]
  %v697 = vld [vmem:[#allocation2 + $0x58] sm:$0xff]
  %v698 = vld [vmem:[#allocation2 + $0x60] sm:$0xff]
  %v699 = vld [vmem:[#allocation2 + $0x68] sm:$0xff]
  %v700 = vld [vmem:[#allocation2 + $0x70] sm:$0xff]
  %v701 = vld [vmem:[#allocation2 + $0x78] sm:$0xff]
  %v702 = vld [vmem:[#allocation2 + $0x80] sm:$0xff]
  %v703 = vld [vmem:[#allocation2 + $0x88] sm:$0xff]
  %v704 = vld [vmem:[#allocation2 + $0x90] sm:$0xff]
  %v705 = vld [vmem:[#allocation2 + $0x98] sm:$0xff]
  %v706 = vld [vmem:[#allocation2 + $0xa0] sm:$0xff]
  %v707 = vld [vmem:[#allocation2 + $0xa8] sm:$0xff]
  %v708 = vld [vmem:[#allocation2 + $0xb0] sm:$0xff]
  %v709 = vld [vmem:[#allocation2 + $0xb8] sm:$0xff]
  %v710 = vld [vmem:[#allocation2 + $0xc0] sm:$0xff]
  %v711 = vld [vmem:[#allocation2 + $0xc8] sm:$0xff]
  %v712 = vld [vmem:[#allocation2 + $0xd0] sm:$0xff]
  %v713 = vld [vmem:[#allocation2 + $0xd8] sm:$0xff]
  %v714 = vld [vmem:[#allocation2 + $0xe0] sm:$0xff]
  %v715 = vld [vmem:[#allocation2 + $0xe8] sm:$0xff]
  %v716 = vpack.c.bf16 %v696, %v695
  %v717 = vpack.c.bf16 %v698, %v697
  %v718 = vpack.c.bf16 %v700, %v699
  %v719 = vpack.c.bf16 %v702, %v701
  %v720 = vpack.c.bf16 %v704, %v703
  %v721 = vpack.c.bf16 %v706, %v705
  %v722 = vpack.c.bf16 %v708, %v707
  %v723 = vpack.c.bf16 %v710, %v709
  %v724 = vpack.c.bf16 %v712, %v711
  %v725 = vpack.c.bf16 %v714, %v713
  %v726 = vpack.c.bf16 %v715, %v715
  %v728 = vsel %vm297, %v726, 0
  %730 = vmatprep.subr.bf16.mxu0 0
  %731 = vmatpush1.bf16.msra.mxu0 %v723
  %732 = vmatprep.subr.bf16.mxu0 0
  %733 = vmatpush1.bf16.msra.mxu0 %v722
  %734 = vmatprep.subr.bf16.mxu0 0
  %735 = vmatpush1.bf16.msra.mxu0 %v721
  %736 = vmatprep.subr.bf16.mxu0 0
  %737 = vmatpush1.bf16.msra.mxu0 %v720
  %738 = vmatprep.subr.bf16.mxu0 0
  %739 = vmatpush1.bf16.msra.mxu0 %v719
  %740 = vmatprep.subr.bf16.mxu0 0
  %741 = vmatpush1.bf16.msra.mxu0 %v718
  %742 = vmatprep.subr.bf16.mxu0 0
  %743 = vmatpush1.bf16.msra.mxu0 %v717
  %744 = vmatprep.subr.bf16.mxu0 0
  %745 = vmatpush1.bf16.msra.mxu0 %v716
  %746 = vmatprep.subr.bf16.mxu0 0
  %747 = vmatpush2.bf16.msra.mxu0 0
  %748 = vmatprep.subr.bf16.mxu0 0
  %749 = vmatpush2.bf16.msra.mxu0 0
  %750 = vmatprep.subr.bf16.mxu0 0
  %751 = vmatpush2.bf16.msra.mxu0 0
  %752 = vmatprep.subr.bf16.mxu0 0
  %753 = vmatpush2.bf16.msra.mxu0 0
  %754 = vmatprep.subr.bf16.mxu0 0
  %755 = vmatpush2.bf16.msra.mxu0 0
  %756 = vmatprep.subr.bf16.mxu0 0
  %757 = vmatpush2.bf16.msra.mxu0 %v728
  %758 = vmatprep.subr.bf16.mxu0 0
  %759 = vmatpush2.bf16.msra.mxu0 %v725
  %760 = vmatprep.subr.bf16.mxu0 0
  %761 = vmatpush2.bf16.msra.mxu0 %v724
  %762 = vmatprep.mubr.bf16.mxu0 %v289
  %763 = vmatmul.mubr.bf16.gmra.mxu0 %v278
  %v764 = vpop.f32.mrf.mxu0
  %v765 = vadd.f32 %v195, %v764
  %v766 = vpop.f32.mrf.mxu0
  %v767 = vpop.f32.mrf.mxu0
  %v768 = vadd.f32 %v200, %v767
  %v769 = vpop.f32.mrf.mxu0
  %770 = vmatprep.mubr.bf16.mxu0 %v292
  %771 = vmatmul.mubr.bf16.gmra.mxu0 %v280
  %v772 = vpop.f32.mrf.mxu0
  %v773 = vadd.f32 %v205, %v772
  %v774 = vpop.f32.mrf.mxu0
  %v775 = vpop.f32.mrf.mxu0
  %v776 = vadd.f32 %v210, %v775
  %v777 = vpop.f32.mrf.mxu0
  %778 = vmatprep.mubr.bf16.mxu0 %v295
  %779 = vmatmul.mubr.bf16.gmra.mxu0 %v282
  %v780 = vpop.f32.mrf.mxu0
  %v781 = vadd.f32 %v215, %v780
  %v782 = vpop.f32.mrf.mxu0
  %v783 = vpop.f32.mrf.mxu0
  %v784 = vadd.f32 %v220, %v783
  %v785 = vpop.f32.mrf.mxu0
  %786 = vdwg.mxu0
  %v787 = vsub.f32 0.0, %v765
  %v788 = vsub.f32 0.0, %v768
  %v789 = vsub.f32 0.0, %v773
  %v790 = vsub.f32 0.0, %v776
  %v791 = vsub.f32 0.0, %v781
  %v792 = vsub.f32 0.0, %v784
  %v793 = vmul.f32 %v787, 1.442695
  %v794 = vpow.pop %v793
  %v795 = vmul.f32 %v788, 1.442695
  %v796 = vpow.pop %v795
  %v797 = vmul.f32 %v789, 1.442695
  %v798 = vpow.pop %v797
  %v799 = vmul.f32 %v790, 1.442695
  %v800 = vpow.pop %v799
  %v801 = vmul.f32 %v791, 1.442695
  %v802 = vpow.pop %v801
  %v803 = vmul.f32 %v792, 1.442695
  %v804 = vpow.pop %v803
  %v805 = vadd.f32 %v794, 1.0
  %v806 = vadd.f32 %v796, 1.0
  %v807 = vadd.f32 %v798, 1.0
  %v808 = vadd.f32 %v800, 1.0
  %v809 = vadd.f32 %v802, 1.0
  %v810 = vadd.f32 %v804, 1.0
  %v811 = vrcp.pop %v805
  %v812 = vrcp.pop %v806
  %v813 = vrcp.pop %v807
  %v814 = vrcp.pop %v808
  %v815 = vrcp.pop %v809
  %v816 = vrcp.pop %v810
  %v817 = vmul.f32 %v765, %v811
  %v818 = vmul.f32 %v768, %v812
  %v819 = vmul.f32 %v773, %v813
  %v820 = vmul.f32 %v776, %v814
  %v821 = vmul.f32 %v781, %v815
  %v822 = vmul.f32 %v784, %v816
  %v823 = vld [vmem:[%s3 + $0x3] sm:$0x1]
  %v824 = vlaneseq
  %v825 = vshrl.u32 %v824, 7
  %v826 = vsub.s32 0, %v825
  %v827 = vrot.slane %v823, %v826
  %v828 = vmul.f32 %v817, %v827
  %v829 = vmul.f32 %v818, %v827
  %v830 = vmul.f32 %v819, %v827
  %v831 = vmul.f32 %v820, %v827
  %v832 = vmul.f32 %v821, %v827
  %v833 = vmul.f32 %v822, %v827
  %v834 = vmax.f32 %v689, %v828
  %v835 = vmax.f32 %v690, %v829
  %v836 = vmax.f32 %v691, %v830
  %v837 = vmax.f32 %v692, %v831
  %v838 = vmax.f32 %v693, %v832
  %v839 = vmax.f32 %v694, %v833
  %v840 = vld [vmem:[#allocation2 + $0x60] sm:$0xff]
  %v841 = vld [vmem:[#allocation2 + $0x68] sm:$0xff]
  %v842 = vld [vmem:[#allocation2 + $0x70] sm:$0xff]
  %v843 = vld [vmem:[#allocation2 + $0x78] sm:$0xff]
  %v844 = vld [vmem:[#allocation2 + $0x80] sm:$0xff]
  %v845 = vld [vmem:[#allocation2 + $0x88] sm:$0xff]
  %v846 = vld [vmem:[#allocation2 + $0x90] sm:$0xff]
  %v847 = vld [vmem:[#allocation2 + $0x98] sm:$0xff]
  %v848 = vld [vmem:[#allocation2 + $0xa0] sm:$0xff]
  %v849 = vld [vmem:[#allocation2 + $0xa8] sm:$0xff]
  %v850 = vld [vmem:[#allocation2 + $0xb0] sm:$0xff]
  %v851 = vld [vmem:[#allocation2 + $0xb8] sm:$0xff]
  %v852 = vld [vmem:[#allocation2 + $0xc0] sm:$0xff]
  %v853 = vld [vmem:[#allocation2 + $0xc8] sm:$0xff]
  %v854 = vld [vmem:[#allocation2 + $0xd0] sm:$0xff]
  %v855 = vld [vmem:[#allocation2 + $0xd8] sm:$0xff]
  %v856 = vld [vmem:[#allocation2 + $0xe0] sm:$0xff]
  %v857 = vld [vmem:[#allocation2 + $0xe8] sm:$0xff]
  %v858 = vld [vmem:[#allocation2 + $0xf0] sm:$0xff]
  %v859 = vld [vmem:[#allocation2 + $0xf8] sm:$0xff]
  %v860 = vld [vmem:[#allocation2 + $0x100] sm:$0xff]
  %v861 = vpack.c.bf16 %v841, %v840
  %v862 = vpack.c.bf16 %v843, %v842
  %v863 = vpack.c.bf16 %v845, %v844
  %v864 = vpack.c.bf16 %v847, %v846
  %v865 = vpack.c.bf16 %v849, %v848
  %v866 = vpack.c.bf16 %v851, %v850
  %v867 = vpack.c.bf16 %v853, %v852
  %v868 = vpack.c.bf16 %v855, %v854
  %v869 = vpack.c.bf16 %v857, %v856
  %v870 = vpack.c.bf16 %v859, %v858
  %v871 = vpack.c.bf16 %v860, %v860
  %v873 = vsel %vm297, %v871, 0
  %875 = vmatprep.subr.bf16.mxu0 0
  %876 = vmatpush1.bf16.msra.mxu0 %v868
  %877 = vmatprep.subr.bf16.mxu0 0
  %878 = vmatpush1.bf16.msra.mxu0 %v867
  %879 = vmatprep.subr.bf16.mxu0 0
  %880 = vmatpush1.bf16.msra.mxu0 %v866
  %881 = vmatprep.subr.bf16.mxu0 0
  %882 = vmatpush1.bf16.msra.mxu0 %v865
  %883 = vmatprep.subr.bf16.mxu0 0
  %884 = vmatpush1.bf16.msra.mxu0 %v864
  %885 = vmatprep.subr.bf16.mxu0 0
  %886 = vmatpush1.bf16.msra.mxu0 %v863
  %887 = vmatprep.subr.bf16.mxu0 0
  %888 = vmatpush1.bf16.msra.mxu0 %v862
  %889 = vmatprep.subr.bf16.mxu0 0
  %890 = vmatpush1.bf16.msra.mxu0 %v861
  %891 = vmatprep.subr.bf16.mxu0 0
  %892 = vmatpush2.bf16.msra.mxu0 0
  %893 = vmatprep.subr.bf16.mxu0 0
  %894 = vmatpush2.bf16.msra.mxu0 0
  %895 = vmatprep.subr.bf16.mxu0 0
  %896 = vmatpush2.bf16.msra.mxu0 0
  %897 = vmatprep.subr.bf16.mxu0 0
  %898 = vmatpush2.bf16.msra.mxu0 0
  %899 = vmatprep.subr.bf16.mxu0 0
  %900 = vmatpush2.bf16.msra.mxu0 0
  %901 = vmatprep.subr.bf16.mxu0 0
  %902 = vmatpush2.bf16.msra.mxu0 %v873
  %903 = vmatprep.subr.bf16.mxu0 0
  %904 = vmatpush2.bf16.msra.mxu0 %v870
  %905 = vmatprep.subr.bf16.mxu0 0
  %906 = vmatpush2.bf16.msra.mxu0 %v869
  %907 = vmatprep.mubr.bf16.mxu0 %v289
  %908 = vmatmul.mubr.bf16.gmra.mxu0 %v278
  %v909 = vpop.f32.mrf.mxu0
  %v910 = vadd.f32 %v195, %v909
  %v911 = vpop.f32.mrf.mxu0
  %v912 = vpop.f32.mrf.mxu0
  %v913 = vadd.f32 %v200, %v912
  %v914 = vpop.f32.mrf.mxu0
  %915 = vmatprep.mubr.bf16.mxu0 %v292
  %916 = vmatmul.mubr.bf16.gmra.mxu0 %v280
  %v917 = vpop.f32.mrf.mxu0
  %v918 = vadd.f32 %v205, %v917
  %v919 = vpop.f32.mrf.mxu0
  %v920 = vpop.f32.mrf.mxu0
  %v921 = vadd.f32 %v210, %v920
  %v922 = vpop.f32.mrf.mxu0
  %923 = vmatprep.mubr.bf16.mxu0 %v295
  %924 = vmatmul.mubr.bf16.gmra.mxu0 %v282
  %v925 = vpop.f32.mrf.mxu0
  %v926 = vadd.f32 %v215, %v925
  %v927 = vpop.f32.mrf.mxu0
  %v928 = vpop.f32.mrf.mxu0
  %v929 = vadd.f32 %v220, %v928
  %v930 = vpop.f32.mrf.mxu0
  %931 = vdwg.mxu0
  %v932 = vsub.f32 0.0, %v910
  %v933 = vsub.f32 0.0, %v913
  %v934 = vsub.f32 0.0, %v918
  %v935 = vsub.f32 0.0, %v921
  %v936 = vsub.f32 0.0, %v926
  %v937 = vsub.f32 0.0, %v929
  %v938 = vmul.f32 %v932, 1.442695
  %v939 = vpow.pop %v938
  %v940 = vmul.f32 %v933, 1.442695
  %v941 = vpow.pop %v940
  %v942 = vmul.f32 %v934, 1.442695
  %v943 = vpow.pop %v942
  %v944 = vmul.f32 %v935, 1.442695
  %v945 = vpow.pop %v944
  %v946 = vmul.f32 %v936, 1.442695
  %v947 = vpow.pop %v946
  %v948 = vmul.f32 %v937, 1.442695
  %v949 = vpow.pop %v948
  %v950 = vadd.f32 %v939, 1.0
  %v951 = vadd.f32 %v941, 1.0
  %v952 = vadd.f32 %v943, 1.0
  %v953 = vadd.f32 %v945, 1.0
  %v954 = vadd.f32 %v947, 1.0
  %v955 = vadd.f32 %v949, 1.0
  %v956 = vrcp.pop %v950
  %v957 = vrcp.pop %v951
  %v958 = vrcp.pop %v952
  %v959 = vrcp.pop %v953
  %v960 = vrcp.pop %v954
  %v961 = vrcp.pop %v955
  %v962 = vmul.f32 %v910, %v956
  %v963 = vmul.f32 %v913, %v957
  %v964 = vmul.f32 %v918, %v958
  %v965 = vmul.f32 %v921, %v959
  %v966 = vmul.f32 %v926, %v960
  %v967 = vmul.f32 %v929, %v961
  %v968 = vld [vmem:[%s3 + $0x4] sm:$0x1]
  %v969 = vlaneseq
  %v970 = vshrl.u32 %v969, 7
  %v971 = vsub.s32 0, %v970
  %v972 = vrot.slane %v968, %v971
  %v973 = vmul.f32 %v962, %v972
  %v974 = vmul.f32 %v963, %v972
  %v975 = vmul.f32 %v964, %v972
  %v976 = vmul.f32 %v965, %v972
  %v977 = vmul.f32 %v966, %v972
  %v978 = vmul.f32 %v967, %v972
  %v979 = vmax.f32 %v834, %v973
  %v980 = vmax.f32 %v835, %v974
  %v981 = vmax.f32 %v836, %v975
  %v982 = vmax.f32 %v837, %v976
  %v983 = vmax.f32 %v838, %v977
  %v984 = vmax.f32 %v839, %v978
  %v985 = vld [vmem:[#allocation2 + $0x78] sm:$0xff]
  %v986 = vld [vmem:[#allocation2 + $0x80] sm:$0xff]
  %v987 = vld [vmem:[#allocation2 + $0x88] sm:$0xff]
  %v988 = vld [vmem:[#allocation2 + $0x90] sm:$0xff]
  %v989 = vld [vmem:[#allocation2 + $0x98] sm:$0xff]
  %v990 = vld [vmem:[#allocation2 + $0xa0] sm:$0xff]
  %v991 = vld [vmem:[#allocation2 + $0xa8] sm:$0xff]
  %v992 = vld [vmem:[#allocation2 + $0xb0] sm:$0xff]
  %v993 = vld [vmem:[#allocation2 + $0xb8] sm:$0xff]
  %v994 = vld [vmem:[#allocation2 + $0xc0] sm:$0xff]
  %v995 = vld [vmem:[#allocation2 + $0xc8] sm:$0xff]
  %v996 = vld [vmem:[#allocation2 + $0xd0] sm:$0xff]
  %v997 = vld [vmem:[#allocation2 + $0xd8] sm:$0xff]
  %v998 = vld [vmem:[#allocation2 + $0xe0] sm:$0xff]
  %v999 = vld [vmem:[#allocation2 + $0xe8] sm:$0xff]
  %v1000 = vld [vmem:[#allocation2 + $0xf0] sm:$0xff]
  %v1001 = vld [vmem:[#allocation2 + $0xf8] sm:$0xff]
  %v1002 = vld [vmem:[#allocation2 + $0x100] sm:$0xff]
  %v1003 = vld [vmem:[#allocation2 + $0x108] sm:$0xff]
  %v1004 = vld [vmem:[#allocation2 + $0x110] sm:$0xff]
  %v1005 = vld [vmem:[#allocation2 + $0x118] sm:$0xff]
  %v1006 = vpack.c.bf16 %v986, %v985
  %v1007 = vpack.c.bf16 %v988, %v987
  %v1008 = vpack.c.bf16 %v990, %v989
  %v1009 = vpack.c.bf16 %v992, %v991
  %v1010 = vpack.c.bf16 %v994, %v993
  %v1011 = vpack.c.bf16 %v996, %v995
  %v1012 = vpack.c.bf16 %v998, %v997
  %v1013 = vpack.c.bf16 %v1000, %v999
  %v1014 = vpack.c.bf16 %v1002, %v1001
  %v1015 = vpack.c.bf16 %v1004, %v1003
  %v1016 = vpack.c.bf16 %v1005, %v1005
  %v1018 = vsel %vm297, %v1016, 0
  %1020 = vmatprep.subr.bf16.mxu0 0
  %1021 = vmatpush1.bf16.msra.mxu0 %v1013
  %1022 = vmatprep.subr.bf16.mxu0 0
  %1023 = vmatpush1.bf16.msra.mxu0 %v1012
  %1024 = vmatprep.subr.bf16.mxu0 0
  %1025 = vmatpush1.bf16.msra.mxu0 %v1011
  %1026 = vmatprep.subr.bf16.mxu0 0
  %1027 = vmatpush1.bf16.msra.mxu0 %v1010
  %1028 = vmatprep.subr.bf16.mxu0 0
  %1029 = vmatpush1.bf16.msra.mxu0 %v1009
  %1030 = vmatprep.subr.bf16.mxu0 0
  %1031 = vmatpush1.bf16.msra.mxu0 %v1008
  %1032 = vmatprep.subr.bf16.mxu0 0
  %1033 = vmatpush1.bf16.msra.mxu0 %v1007
  %1034 = vmatprep.subr.bf16.mxu0 0
  %1035 = vmatpush1.bf16.msra.mxu0 %v1006
  %1036 = vmatprep.subr.bf16.mxu0 0
  %1037 = vmatpush2.bf16.msra.mxu0 0
  %1038 = vmatprep.subr.bf16.mxu0 0
  %1039 = vmatpush2.bf16.msra.mxu0 0
  %1040 = vmatprep.subr.bf16.mxu0 0
  %1041 = vmatpush2.bf16.msra.mxu0 0
  %1042 = vmatprep.subr.bf16.mxu0 0
  %1043 = vmatpush2.bf16.msra.mxu0 0
  %1044 = vmatprep.subr.bf16.mxu0 0
  %1045 = vmatpush2.bf16.msra.mxu0 0
  %1046 = vmatprep.subr.bf16.mxu0 0
  %1047 = vmatpush2.bf16.msra.mxu0 %v1018
  %1048 = vmatprep.subr.bf16.mxu0 0
  %1049 = vmatpush2.bf16.msra.mxu0 %v1015
  %1050 = vmatprep.subr.bf16.mxu0 0
  %1051 = vmatpush2.bf16.msra.mxu0 %v1014
  %1052 = vmatprep.mubr.bf16.mxu0 %v289
  %1053 = vmatmul.mubr.bf16.gmra.mxu0 %v278
  %v1054 = vpop.f32.mrf.mxu0
  %v1055 = vadd.f32 %v195, %v1054
  %v1056 = vpop.f32.mrf.mxu0
  %v1057 = vpop.f32.mrf.mxu0
  %v1058 = vadd.f32 %v200, %v1057
  %v1059 = vpop.f32.mrf.mxu0
  %1060 = vmatprep.mubr.bf16.mxu0 %v292
  %1061 = vmatmul.mubr.bf16.gmra.mxu0 %v280
  %v1062 = vpop.f32.mrf.mxu0
  %v1063 = vadd.f32 %v205, %v1062
  %v1064 = vpop.f32.mrf.mxu0
  %v1065 = vpop.f32.mrf.mxu0
  %v1066 = vadd.f32 %v210, %v1065
  %v1067 = vpop.f32.mrf.mxu0
  %1068 = vmatprep.mubr.bf16.mxu0 %v295
  %1069 = vmatmul.mubr.bf16.gmra.mxu0 %v282
  %v1070 = vpop.f32.mrf.mxu0
  %v1071 = vadd.f32 %v215, %v1070
  %v1072 = vpop.f32.mrf.mxu0
  %v1073 = vpop.f32.mrf.mxu0
  %v1074 = vadd.f32 %v220, %v1073
  %v1075 = vpop.f32.mrf.mxu0
  %1076 = vdwg.mxu0
  %v1077 = vsub.f32 0.0, %v1055
  %v1078 = vsub.f32 0.0, %v1058
  %v1079 = vsub.f32 0.0, %v1063
  %v1080 = vsub.f32 0.0, %v1066
  %v1081 = vsub.f32 0.0, %v1071
  %v1082 = vsub.f32 0.0, %v1074
  %v1083 = vmul.f32 %v1077, 1.442695
  %v1084 = vpow.pop %v1083
  %v1085 = vmul.f32 %v1078, 1.442695
  %v1086 = vpow.pop %v1085
  %v1087 = vmul.f32 %v1079, 1.442695
  %v1088 = vpow.pop %v1087
  %v1089 = vmul.f32 %v1080, 1.442695
  %v1090 = vpow.pop %v1089
  %v1091 = vmul.f32 %v1081, 1.442695
  %v1092 = vpow.pop %v1091
  %v1093 = vmul.f32 %v1082, 1.442695
  %v1094 = vpow.pop %v1093
  %v1095 = vadd.f32 %v1084, 1.0
  %v1096 = vadd.f32 %v1086, 1.0
  %v1097 = vadd.f32 %v1088, 1.0
  %v1098 = vadd.f32 %v1090, 1.0
  %v1099 = vadd.f32 %v1092, 1.0
  %v1100 = vadd.f32 %v1094, 1.0
  %v1101 = vrcp.pop %v1095
  %v1102 = vrcp.pop %v1096
  %v1103 = vrcp.pop %v1097
  %v1104 = vrcp.pop %v1098
  %v1105 = vrcp.pop %v1099
  %v1106 = vrcp.pop %v1100
  %v1107 = vmul.f32 %v1055, %v1101
  %v1108 = vmul.f32 %v1058, %v1102
  %v1109 = vmul.f32 %v1063, %v1103
  %v1110 = vmul.f32 %v1066, %v1104
  %v1111 = vmul.f32 %v1071, %v1105
  %v1112 = vmul.f32 %v1074, %v1106
  %v1113 = vld [vmem:[%s3 + $0x5] sm:$0x1]
  %v1114 = vlaneseq
  %v1115 = vshrl.u32 %v1114, 7
  %v1116 = vsub.s32 0, %v1115
  %v1117 = vrot.slane %v1113, %v1116
  %v1118 = vmul.f32 %v1107, %v1117
  %v1119 = vmul.f32 %v1108, %v1117
  %v1120 = vmul.f32 %v1109, %v1117
  %v1121 = vmul.f32 %v1110, %v1117
  %v1122 = vmul.f32 %v1111, %v1117
  %v1123 = vmul.f32 %v1112, %v1117
  %v1124 = vmax.f32 %v979, %v1118
  %v1125 = vmax.f32 %v980, %v1119
  %v1126 = vmax.f32 %v981, %v1120
  %v1127 = vmax.f32 %v982, %v1121
  %v1128 = vmax.f32 %v983, %v1122
  %v1129 = vmax.f32 %v984, %v1123
  %v1130 = vld [vmem:[#allocation2 + $0x90] sm:$0xff]
  %v1131 = vld [vmem:[#allocation2 + $0x98] sm:$0xff]
  %v1132 = vld [vmem:[#allocation2 + $0xa0] sm:$0xff]
  %v1133 = vld [vmem:[#allocation2 + $0xa8] sm:$0xff]
  %v1134 = vld [vmem:[#allocation2 + $0xb0] sm:$0xff]
  %v1135 = vld [vmem:[#allocation2 + $0xb8] sm:$0xff]
  %v1136 = vld [vmem:[#allocation2 + $0xc0] sm:$0xff]
  %v1137 = vld [vmem:[#allocation2 + $0xc8] sm:$0xff]
  %v1138 = vld [vmem:[#allocation2 + $0xd0] sm:$0xff]
  %v1139 = vld [vmem:[#allocation2 + $0xd8] sm:$0xff]
  %v1140 = vld [vmem:[#allocation2 + $0xe0] sm:$0xff]
  %v1141 = vld [vmem:[#allocation2 + $0xe8] sm:$0xff]
  %v1142 = vld [vmem:[#allocation2 + $0xf0] sm:$0xff]
  %v1143 = vld [vmem:[#allocation2 + $0xf8] sm:$0xff]
  %v1144 = vld [vmem:[#allocation2 + $0x100] sm:$0xff]
  %v1145 = vld [vmem:[#allocation2 + $0x108] sm:$0xff]
  %v1146 = vld [vmem:[#allocation2 + $0x110] sm:$0xff]
  %v1147 = vld [vmem:[#allocation2 + $0x118] sm:$0xff]
  %v1148 = vld [vmem:[#allocation2 + $0x120] sm:$0xff]
  %v1149 = vld [vmem:[#allocation2 + $0x128] sm:$0xff]
  %v1150 = vld [vmem:[#allocation2 + $0x130] sm:$0xff]
  %v1151 = vpack.c.bf16 %v1131, %v1130
  %v1152 = vpack.c.bf16 %v1133, %v1132
  %v1153 = vpack.c.bf16 %v1135, %v1134
  %v1154 = vpack.c.bf16 %v1137, %v1136
  %v1155 = vpack.c.bf16 %v1139, %v1138
  %v1156 = vpack.c.bf16 %v1141, %v1140
  %v1157 = vpack.c.bf16 %v1143, %v1142
  %v1158 = vpack.c.bf16 %v1145, %v1144
  %v1159 = vpack.c.bf16 %v1147, %v1146
  %v1160 = vpack.c.bf16 %v1149, %v1148
  %v1161 = vpack.c.bf16 %v1150, %v1150
  %v1163 = vsel %vm297, %v1161, 0
  %1165 = vmatprep.subr.bf16.mxu0 0
  %1166 = vmatpush1.bf16.msra.mxu0 %v1158
  %1167 = vmatprep.subr.bf16.mxu0 0
  %1168 = vmatpush1.bf16.msra.mxu0 %v1157
  %1169 = vmatprep.subr.bf16.mxu0 0
  %1170 = vmatpush1.bf16.msra.mxu0 %v1156
  %1171 = vmatprep.subr.bf16.mxu0 0
  %1172 = vmatpush1.bf16.msra.mxu0 %v1155
  %1173 = vmatprep.subr.bf16.mxu0 0
  %1174 = vmatpush1.bf16.msra.mxu0 %v1154
  %1175 = vmatprep.subr.bf16.mxu0 0
  %1176 = vmatpush1.bf16.msra.mxu0 %v1153
  %1177 = vmatprep.subr.bf16.mxu0 0
  %1178 = vmatpush1.bf16.msra.mxu0 %v1152
  %1179 = vmatprep.subr.bf16.mxu0 0
  %1180 = vmatpush1.bf16.msra.mxu0 %v1151
  %1181 = vmatprep.subr.bf16.mxu0 0
  %1182 = vmatpush2.bf16.msra.mxu0 0
  %1183 = vmatprep.subr.bf16.mxu0 0
  %1184 = vmatpush2.bf16.msra.mxu0 0
  %1185 = vmatprep.subr.bf16.mxu0 0
  %1186 = vmatpush2.bf16.msra.mxu0 0
  %1187 = vmatprep.subr.bf16.mxu0 0
  %1188 = vmatpush2.bf16.msra.mxu0 0
  %1189 = vmatprep.subr.bf16.mxu0 0
  %1190 = vmatpush2.bf16.msra.mxu0 0
  %1191 = vmatprep.subr.bf16.mxu0 0
  %1192 = vmatpush2.bf16.msra.mxu0 %v1163
  %1193 = vmatprep.subr.bf16.mxu0 0
  %1194 = vmatpush2.bf16.msra.mxu0 %v1160
  %1195 = vmatprep.subr.bf16.mxu0 0
  %1196 = vmatpush2.bf16.msra.mxu0 %v1159
  %1197 = vmatprep.mubr.bf16.mxu0 %v289
  %1198 = vmatmul.mubr.bf16.gmra.mxu0 %v278
  %v1199 = vpop.f32.mrf.mxu0
  %v1200 = vadd.f32 %v195, %v1199
  %v1201 = vpop.f32.mrf.mxu0
  %v1202 = vpop.f32.mrf.mxu0
  %v1203 = vadd.f32 %v200, %v1202
  %v1204 = vpop.f32.mrf.mxu0
  %1205 = vmatprep.mubr.bf16.mxu0 %v292
  %1206 = vmatmul.mubr.bf16.gmra.mxu0 %v280
  %v1207 = vpop.f32.mrf.mxu0
  %v1208 = vadd.f32 %v205, %v1207
  %v1209 = vpop.f32.mrf.mxu0
  %v1210 = vpop.f32.mrf.mxu0
  %v1211 = vadd.f32 %v210, %v1210
  %v1212 = vpop.f32.mrf.mxu0
  %1213 = vmatprep.mubr.bf16.mxu0 %v295
  %1214 = vmatmul.mubr.bf16.gmra.mxu0 %v282
  %v1215 = vpop.f32.mrf.mxu0
  %v1216 = vadd.f32 %v215, %v1215
  %v1217 = vpop.f32.mrf.mxu0
  %v1218 = vpop.f32.mrf.mxu0
  %v1219 = vadd.f32 %v220, %v1218
  %v1220 = vpop.f32.mrf.mxu0
  %1221 = vdwg.mxu0
  %v1222 = vsub.f32 0.0, %v1200
  %v1223 = vsub.f32 0.0, %v1203
  %v1224 = vsub.f32 0.0, %v1208
  %v1225 = vsub.f32 0.0, %v1211
  %v1226 = vsub.f32 0.0, %v1216
  %v1227 = vsub.f32 0.0, %v1219
  %v1228 = vmul.f32 %v1222, 1.442695
  %v1229 = vpow.pop %v1228
  %v1230 = vmul.f32 %v1223, 1.442695
  %v1231 = vpow.pop %v1230
  %v1232 = vmul.f32 %v1224, 1.442695
  %v1233 = vpow.pop %v1232
  %v1234 = vmul.f32 %v1225, 1.442695
  %v1235 = vpow.pop %v1234
  %v1236 = vmul.f32 %v1226, 1.442695
  %v1237 = vpow.pop %v1236
  %v1238 = vmul.f32 %v1227, 1.442695
  %v1239 = vpow.pop %v1238
  %v1240 = vadd.f32 %v1229, 1.0
  %v1241 = vadd.f32 %v1231, 1.0
  %v1242 = vadd.f32 %v1233, 1.0
  %v1243 = vadd.f32 %v1235, 1.0
  %v1244 = vadd.f32 %v1237, 1.0
  %v1245 = vadd.f32 %v1239, 1.0
  %v1246 = vrcp.pop %v1240
  %v1247 = vrcp.pop %v1241
  %v1248 = vrcp.pop %v1242
  %v1249 = vrcp.pop %v1243
  %v1250 = vrcp.pop %v1244
  %v1251 = vrcp.pop %v1245
  %v1252 = vmul.f32 %v1200, %v1246
  %v1253 = vmul.f32 %v1203, %v1247
  %v1254 = vmul.f32 %v1208, %v1248
  %v1255 = vmul.f32 %v1211, %v1249
  %v1256 = vmul.f32 %v1216, %v1250
  %v1257 = vmul.f32 %v1219, %v1251
  %v1258 = vld [vmem:[%s3 + $0x6] sm:$0x1]
  %v1259 = vlaneseq
  %v1260 = vshrl.u32 %v1259, 7
  %v1261 = vsub.s32 0, %v1260
  %v1262 = vrot.slane %v1258, %v1261
  %v1263 = vmul.f32 %v1252, %v1262
  %v1264 = vmul.f32 %v1253, %v1262
  %v1265 = vmul.f32 %v1254, %v1262
  %v1266 = vmul.f32 %v1255, %v1262
  %v1267 = vmul.f32 %v1256, %v1262
  %v1268 = vmul.f32 %v1257, %v1262
  %v1269 = vmax.f32 %v1124, %v1263
  %v1270 = vmax.f32 %v1125, %v1264
  %v1271 = vmax.f32 %v1126, %v1265
  %v1272 = vmax.f32 %v1127, %v1266
  %v1273 = vmax.f32 %v1128, %v1267
  %v1274 = vmax.f32 %v1129, %v1268
  %v1275 = vld [vmem:[#allocation2 + $0xa8] sm:$0xff]
  %v1276 = vld [vmem:[#allocation2 + $0xb0] sm:$0xff]
  %v1277 = vld [vmem:[#allocation2 + $0xb8] sm:$0xff]
  %v1278 = vld [vmem:[#allocation2 + $0xc0] sm:$0xff]
  %v1279 = vld [vmem:[#allocation2 + $0xc8] sm:$0xff]
  %v1280 = vld [vmem:[#allocation2 + $0xd0] sm:$0xff]
  %v1281 = vld [vmem:[#allocation2 + $0xd8] sm:$0xff]
  %v1282 = vld [vmem:[#allocation2 + $0xe0] sm:$0xff]
  %v1283 = vld [vmem:[#allocation2 + $0xe8] sm:$0xff]
  %v1284 = vld [vmem:[#allocation2 + $0xf0] sm:$0xff]
  %v1285 = vld [vmem:[#allocation2 + $0xf8] sm:$0xff]
  %v1286 = vld [vmem:[#allocation2 + $0x100] sm:$0xff]
  %v1287 = vld [vmem:[#allocation2 + $0x108] sm:$0xff]
  %v1288 = vld [vmem:[#allocation2 + $0x110] sm:$0xff]
  %v1289 = vld [vmem:[#allocation2 + $0x118] sm:$0xff]
  %v1290 = vld [vmem:[#allocation2 + $0x120] sm:$0xff]
  %v1291 = vld [vmem:[#allocation2 + $0x128] sm:$0xff]
  %v1292 = vld [vmem:[#allocation2 + $0x130] sm:$0xff]
  %v1293 = vld [vmem:[#allocation2 + $0x138] sm:$0xff]
  %v1294 = vld [vmem:[#allocation2 + $0x140] sm:$0xff]
  %v1295 = vld [vmem:[#allocation2 + $0x148] sm:$0xff]
  %v1296 = vpack.c.bf16 %v1276, %v1275
  %v1297 = vpack.c.bf16 %v1278, %v1277
  %v1298 = vpack.c.bf16 %v1280, %v1279
  %v1299 = vpack.c.bf16 %v1282, %v1281
  %v1300 = vpack.c.bf16 %v1284, %v1283
  %v1301 = vpack.c.bf16 %v1286, %v1285
  %v1302 = vpack.c.bf16 %v1288, %v1287
  %v1303 = vpack.c.bf16 %v1290, %v1289
  %v1304 = vpack.c.bf16 %v1292, %v1291
  %v1305 = vpack.c.bf16 %v1294, %v1293
  %v1306 = vpack.c.bf16 %v1295, %v1295
  %v1308 = vsel %vm297, %v1306, 0
  %1310 = vmatprep.subr.bf16.mxu0 0
  %1311 = vmatpush1.bf16.msra.mxu0 %v1303
  %1312 = vmatprep.subr.bf16.mxu0 0
  %1313 = vmatpush1.bf16.msra.mxu0 %v1302
  %1314 = vmatprep.subr.bf16.mxu0 0
  %1315 = vmatpush1.bf16.msra.mxu0 %v1301
  %1316 = vmatprep.subr.bf16.mxu0 0
  %1317 = vmatpush1.bf16.msra.mxu0 %v1300
  %1318 = vmatprep.subr.bf16.mxu0 0
  %1319 = vmatpush1.bf16.msra.mxu0 %v1299
  %1320 = vmatprep.subr.bf16.mxu0 0
  %1321 = vmatpush1.bf16.msra.mxu0 %v1298
  %1322 = vmatprep.subr.bf16.mxu0 0
  %1323 = vmatpush1.bf16.msra.mxu0 %v1297
  %1324 = vmatprep.subr.bf16.mxu0 0
  %1325 = vmatpush1.bf16.msra.mxu0 %v1296
  %1326 = vmatprep.subr.bf16.mxu0 0
  %1327 = vmatpush2.bf16.msra.mxu0 0
  %1328 = vmatprep.subr.bf16.mxu0 0
  %1329 = vmatpush2.bf16.msra.mxu0 0
  %1330 = vmatprep.subr.bf16.mxu0 0
  %1331 = vmatpush2.bf16.msra.mxu0 0
  %1332 = vmatprep.subr.bf16.mxu0 0
  %1333 = vmatpush2.bf16.msra.mxu0 0
  %1334 = vmatprep.subr.bf16.mxu0 0
  %1335 = vmatpush2.bf16.msra.mxu0 0
  %1336 = vmatprep.subr.bf16.mxu0 0
  %1337 = vmatpush2.bf16.msra.mxu0 %v1308
  %1338 = vmatprep.subr.bf16.mxu0 0
  %1339 = vmatpush2.bf16.msra.mxu0 %v1305
  %1340 = vmatprep.subr.bf16.mxu0 0
  %1341 = vmatpush2.bf16.msra.mxu0 %v1304
  %1342 = vmatprep.mubr.bf16.mxu0 %v289
  %1343 = vmatmul.mubr.bf16.gmra.mxu0 %v278
  %v1344 = vpop.f32.mrf.mxu0
  %v1345 = vadd.f32 %v195, %v1344
  %v1346 = vpop.f32.mrf.mxu0
  %v1347 = vpop.f32.mrf.mxu0
  %v1348 = vadd.f32 %v200, %v1347
  %v1349 = vpop.f32.mrf.mxu0
  %1350 = vmatprep.mubr.bf16.mxu0 %v292
  %1351 = vmatmul.mubr.bf16.gmra.mxu0 %v280
  %v1352 = vpop.f32.mrf.mxu0
  %v1353 = vadd.f32 %v205, %v1352
  %v1354 = vpop.f32.mrf.mxu0
  %v1355 = vpop.f32.mrf.mxu0
  %v1356 = vadd.f32 %v210, %v1355
  %v1357 = vpop.f32.mrf.mxu0
  %1358 = vmatprep.mubr.bf16.mxu0 %v295
  %1359 = vmatmul.mubr.bf16.gmra.mxu0 %v282
  %v1360 = vpop.f32.mrf.mxu0
  %v1361 = vadd.f32 %v215, %v1360
  %v1362 = vpop.f32.mrf.mxu0
  %v1363 = vpop.f32.mrf.mxu0
  %v1364 = vadd.f32 %v220, %v1363
  %v1365 = vpop.f32.mrf.mxu0
  %1366 = vdwg.mxu0
  %v1367 = vsub.f32 0.0, %v1345
  %v1368 = vsub.f32 0.0, %v1348
  %v1369 = vsub.f32 0.0, %v1353
  %v1370 = vsub.f32 0.0, %v1356
  %v1371 = vsub.f32 0.0, %v1361
  %v1372 = vsub.f32 0.0, %v1364
  %v1373 = vmul.f32 %v1367, 1.442695
  %v1374 = vpow.pop %v1373
  %v1375 = vmul.f32 %v1368, 1.442695
  %v1376 = vpow.pop %v1375
  %v1377 = vmul.f32 %v1369, 1.442695
  %v1378 = vpow.pop %v1377
  %v1379 = vmul.f32 %v1370, 1.442695
  %v1380 = vpow.pop %v1379
  %v1381 = vmul.f32 %v1371, 1.442695
  %v1382 = vpow.pop %v1381
  %v1383 = vmul.f32 %v1372, 1.442695
  %v1384 = vpow.pop %v1383
  %v1385 = vadd.f32 %v1374, 1.0
  %v1386 = vadd.f32 %v1376, 1.0
  %v1387 = vadd.f32 %v1378, 1.0
  %v1388 = vadd.f32 %v1380, 1.0
  %v1389 = vadd.f32 %v1382, 1.0
  %v1390 = vadd.f32 %v1384, 1.0
  %v1391 = vrcp.pop %v1385
  %v1392 = vrcp.pop %v1386
  %v1393 = vrcp.pop %v1387
  %v1394 = vrcp.pop %v1388
  %v1395 = vrcp.pop %v1389
  %v1396 = vrcp.pop %v1390
  %v1397 = vmul.f32 %v1345, %v1391
  %v1398 = vmul.f32 %v1348, %v1392
  %v1399 = vmul.f32 %v1353, %v1393
  %v1400 = vmul.f32 %v1356, %v1394
  %v1401 = vmul.f32 %v1361, %v1395
  %v1402 = vmul.f32 %v1364, %v1396
  %v1403 = vld [vmem:[%s3 + $0x7] sm:$0x1]
  %v1404 = vlaneseq
  %v1405 = vshrl.u32 %v1404, 7
  %v1406 = vsub.s32 0, %v1405
  %v1407 = vrot.slane %v1403, %v1406
  %v1408 = vmul.f32 %v1397, %v1407
  %v1409 = vmul.f32 %v1398, %v1407
  %v1410 = vmul.f32 %v1399, %v1407
  %v1411 = vmul.f32 %v1400, %v1407
  %v1412 = vmul.f32 %v1401, %v1407
  %v1413 = vmul.f32 %v1402, %v1407
  %v1414 = vmax.f32 %v1269, %v1408
  %v1415 = vmax.f32 %v1270, %v1409
  %v1416 = vmax.f32 %v1271, %v1410
  %v1417 = vmax.f32 %v1272, %v1411
  %v1418 = vmax.f32 %v1273, %v1412
  %v1419 = vmax.f32 %v1274, %v1413
  %v1420 = vld [vmem:[#allocation2 + $0xc0] sm:$0xff]
  %v1421 = vld [vmem:[#allocation2 + $0xc8] sm:$0xff]
  %v1422 = vld [vmem:[#allocation2 + $0xd0] sm:$0xff]
  %v1423 = vld [vmem:[#allocation2 + $0xd8] sm:$0xff]
  %v1424 = vld [vmem:[#allocation2 + $0xe0] sm:$0xff]
  %v1425 = vld [vmem:[#allocation2 + $0xe8] sm:$0xff]
  %v1426 = vld [vmem:[#allocation2 + $0xf0] sm:$0xff]
  %v1427 = vld [vmem:[#allocation2 + $0xf8] sm:$0xff]
  %v1428 = vld [vmem:[#allocation2 + $0x100] sm:$0xff]
  %v1429 = vld [vmem:[#allocation2 + $0x108] sm:$0xff]
  %v1430 = vld [vmem:[#allocation2 + $0x110] sm:$0xff]
  %v1431 = vld [vmem:[#allocation2 + $0x118] sm:$0xff]
  %v1432 = vld [vmem:[#allocation2 + $0x120] sm:$0xff]
  %v1433 = vld [vmem:[#allocation2 + $0x128] sm:$0xff]
  %v1434 = vld [vmem:[#allocation2 + $0x130] sm:$0xff]
  %v1435 = vld [vmem:[#allocation2 + $0x138] sm:$0xff]
  %v1436 = vld [vmem:[#allocation2 + $0x140] sm:$0xff]
  %v1437 = vld [vmem:[#allocation2 + $0x148] sm:$0xff]
  %v1438 = vld [vmem:[#allocation2 + $0x150] sm:$0xff]
  %v1439 = vld [vmem:[#allocation2 + $0x158] sm:$0xff]
  %v1440 = vld [vmem:[#allocation2 + $0x160] sm:$0xff]
  %v1441 = vpack.c.bf16 %v1421, %v1420
  %v1442 = vpack.c.bf16 %v1423, %v1422
  %v1443 = vpack.c.bf16 %v1425, %v1424
  %v1444 = vpack.c.bf16 %v1427, %v1426
  %v1445 = vpack.c.bf16 %v1429, %v1428
  %v1446 = vpack.c.bf16 %v1431, %v1430
  %v1447 = vpack.c.bf16 %v1433, %v1432
  %v1448 = vpack.c.bf16 %v1435, %v1434
  %v1449 = vpack.c.bf16 %v1437, %v1436
  %v1450 = vpack.c.bf16 %v1439, %v1438
  %v1451 = vpack.c.bf16 %v1440, %v1440
  %v1453 = vsel %vm297, %v1451, 0
  %1455 = vmatprep.subr.bf16.mxu0 0
  %1456 = vmatpush1.bf16.msra.mxu0 %v1448
  %1457 = vmatprep.subr.bf16.mxu0 0
  %1458 = vmatpush1.bf16.msra.mxu0 %v1447
  %1459 = vmatprep.subr.bf16.mxu0 0
  %1460 = vmatpush1.bf16.msra.mxu0 %v1446
  %1461 = vmatprep.subr.bf16.mxu0 0
  %1462 = vmatpush1.bf16.msra.mxu0 %v1445
  %1463 = vmatprep.subr.bf16.mxu0 0
  %1464 = vmatpush1.bf16.msra.mxu0 %v1444
  %1465 = vmatprep.subr.bf16.mxu0 0
  %1466 = vmatpush1.bf16.msra.mxu0 %v1443
  %1467 = vmatprep.subr.bf16.mxu0 0
  %1468 = vmatpush1.bf16.msra.mxu0 %v1442
  %1469 = vmatprep.subr.bf16.mxu0 0
  %1470 = vmatpush1.bf16.msra.mxu0 %v1441
  %1471 = vmatprep.subr.bf16.mxu0 0
  %1472 = vmatpush2.bf16.msra.mxu0 0
  %1473 = vmatprep.subr.bf16.mxu0 0
  %1474 = vmatpush2.bf16.msra.mxu0 0
  %1475 = vmatprep.subr.bf16.mxu0 0
  %1476 = vmatpush2.bf16.msra.mxu0 0
  %1477 = vmatprep.subr.bf16.mxu0 0
  %1478 = vmatpush2.bf16.msra.mxu0 0
  %1479 = vmatprep.subr.bf16.mxu0 0
  %1480 = vmatpush2.bf16.msra.mxu0 0
  %1481 = vmatprep.subr.bf16.mxu0 0
  %1482 = vmatpush2.bf16.msra.mxu0 %v1453
  %1483 = vmatprep.subr.bf16.mxu0 0
  %1484 = vmatpush2.bf16.msra.mxu0 %v1450
  %1485 = vmatprep.subr.bf16.mxu0 0
  %1486 = vmatpush2.bf16.msra.mxu0 %v1449
  %1487 = vmatprep.mubr.bf16.mxu0 %v289
  %1488 = vmatmul.mubr.bf16.gmra.mxu0 %v278
  %v1489 = vpop.f32.mrf.mxu0
  %v1490 = vadd.f32 %v195, %v1489
  %v1491 = vpop.f32.mrf.mxu0
  %v1492 = vpop.f32.mrf.mxu0
  %v1493 = vadd.f32 %v200, %v1492
  %v1494 = vpop.f32.mrf.mxu0
  %1495 = vmatprep.mubr.bf16.mxu0 %v292
  %1496 = vmatmul.mubr.bf16.gmra.mxu0 %v280
  %v1497 = vpop.f32.mrf.mxu0
  %v1498 = vadd.f32 %v205, %v1497
  %v1499 = vpop.f32.mrf.mxu0
  %v1500 = vpop.f32.mrf.mxu0
  %v1501 = vadd.f32 %v210, %v1500
  %v1502 = vpop.f32.mrf.mxu0
  %1503 = vmatprep.mubr.bf16.mxu0 %v295
  %1504 = vmatmul.mubr.bf16.gmra.mxu0 %v282
  %v1505 = vpop.f32.mrf.mxu0
  %v1506 = vadd.f32 %v215, %v1505
  %v1507 = vpop.f32.mrf.mxu0
  %v1508 = vpop.f32.mrf.mxu0
  %v1509 = vadd.f32 %v220, %v1508
  %v1510 = vpop.f32.mrf.mxu0
  %1511 = vdwg.mxu0
  %v1512 = vsub.f32 0.0, %v1490
  %v1513 = vsub.f32 0.0, %v1493
  %v1514 = vsub.f32 0.0, %v1498
  %v1515 = vsub.f32 0.0, %v1501
  %v1516 = vsub.f32 0.0, %v1506
  %v1517 = vsub.f32 0.0, %v1509
  %v1518 = vmul.f32 %v1512, 1.442695
  %v1519 = vpow.pop %v1518
  %v1520 = vmul.f32 %v1513, 1.442695
  %v1521 = vpow.pop %v1520
  %v1522 = vmul.f32 %v1514, 1.442695
  %v1523 = vpow.pop %v1522
  %v1524 = vmul.f32 %v1515, 1.442695
  %v1525 = vpow.pop %v1524
  %v1526 = vmul.f32 %v1516, 1.442695
  %v1527 = vpow.pop %v1526
  %v1528 = vmul.f32 %v1517, 1.442695
  %v1529 = vpow.pop %v1528
  %v1530 = vadd.f32 %v1519, 1.0
  %v1531 = vadd.f32 %v1521, 1.0
  %v1532 = vadd.f32 %v1523, 1.0
  %v1533 = vadd.f32 %v1525, 1.0
  %v1534 = vadd.f32 %v1527, 1.0
  %v1535 = vadd.f32 %v1529, 1.0
  %v1536 = vrcp.pop %v1530
  %v1537 = vrcp.pop %v1531
  %v1538 = vrcp.pop %v1532
  %v1539 = vrcp.pop %v1533
  %v1540 = vrcp.pop %v1534
  %v1541 = vrcp.pop %v1535
  %v1542 = vmul.f32 %v1490, %v1536
  %v1543 = vmul.f32 %v1493, %v1537
  %v1544 = vmul.f32 %v1498, %v1538
  %v1545 = vmul.f32 %v1501, %v1539
  %v1546 = vmul.f32 %v1506, %v1540
  %v1547 = vmul.f32 %v1509, %v1541
  %v1548 = vld [vmem:[%s3 + $0x8] sm:$0x1]
  %v1549 = vlaneseq
  %v1550 = vshrl.u32 %v1549, 7
  %v1551 = vsub.s32 0, %v1550
  %v1552 = vrot.slane %v1548, %v1551
  %v1553 = vmul.f32 %v1542, %v1552
  %v1554 = vmul.f32 %v1543, %v1552
  %v1555 = vmul.f32 %v1544, %v1552
  %v1556 = vmul.f32 %v1545, %v1552
  %v1557 = vmul.f32 %v1546, %v1552
  %v1558 = vmul.f32 %v1547, %v1552
  %v1559 = vmax.f32 %v1414, %v1553
  %v1560 = vmax.f32 %v1415, %v1554
  %v1561 = vmax.f32 %v1416, %v1555
  %v1562 = vmax.f32 %v1417, %v1556
  %v1563 = vmax.f32 %v1418, %v1557
  %v1564 = vmax.f32 %v1419, %v1558
  %v1565 = vld [vmem:[#allocation2 + $0xd8] sm:$0xff]
  %v1566 = vld [vmem:[#allocation2 + $0xe0] sm:$0xff]
  %v1567 = vld [vmem:[#allocation2 + $0xe8] sm:$0xff]
  %v1568 = vld [vmem:[#allocation2 + $0xf0] sm:$0xff]
  %v1569 = vld [vmem:[#allocation2 + $0xf8] sm:$0xff]
  %v1570 = vld [vmem:[#allocation2 + $0x100] sm:$0xff]
  %v1571 = vld [vmem:[#allocation2 + $0x108] sm:$0xff]
  %v1572 = vld [vmem:[#allocation2 + $0x110] sm:$0xff]
  %v1573 = vld [vmem:[#allocation2 + $0x118] sm:$0xff]
  %v1574 = vld [vmem:[#allocation2 + $0x120] sm:$0xff]
  %v1575 = vld [vmem:[#allocation2 + $0x128] sm:$0xff]
  %v1576 = vld [vmem:[#allocation2 + $0x130] sm:$0xff]
  %v1577 = vld [vmem:[#allocation2 + $0x138] sm:$0xff]
  %v1578 = vld [vmem:[#allocation2 + $0x140] sm:$0xff]
  %v1579 = vld [vmem:[#allocation2 + $0x148] sm:$0xff]
  %v1580 = vld [vmem:[#allocation2 + $0x150] sm:$0xff]
  %v1581 = vld [vmem:[#allocation2 + $0x158] sm:$0xff]
  %v1582 = vld [vmem:[#allocation2 + $0x160] sm:$0xff]
  %v1583 = vld [vmem:[#allocation2 + $0x168] sm:$0xff]
  %v1584 = vld [vmem:[#allocation2 + $0x170] sm:$0xff]
  %v1585 = vld [vmem:[#allocation2 + $0x178] sm:$0xff]
  %v1586 = vpack.c.bf16 %v1566, %v1565
  %v1587 = vpack.c.bf16 %v1568, %v1567
  %v1588 = vpack.c.bf16 %v1570, %v1569
  %v1589 = vpack.c.bf16 %v1572, %v1571
  %v1590 = vpack.c.bf16 %v1574, %v1573
  %v1591 = vpack.c.bf16 %v1576, %v1575
  %v1592 = vpack.c.bf16 %v1578, %v1577
  %v1593 = vpack.c.bf16 %v1580, %v1579
  %v1594 = vpack.c.bf16 %v1582, %v1581
  %v1595 = vpack.c.bf16 %v1584, %v1583
  %v1596 = vpack.c.bf16 %v1585, %v1585
  %v1598 = vsel %vm297, %v1596, 0
  %1600 = vmatprep.subr.bf16.mxu0 0
  %1601 = vmatpush1.bf16.msra.mxu0 %v1593
  %1602 = vmatprep.subr.bf16.mxu0 0
  %1603 = vmatpush1.bf16.msra.mxu0 %v1592
  %1604 = vmatprep.subr.bf16.mxu0 0
  %1605 = vmatpush1.bf16.msra.mxu0 %v1591
  %1606 = vmatprep.subr.bf16.mxu0 0
  %1607 = vmatpush1.bf16.msra.mxu0 %v1590
  %1608 = vmatprep.subr.bf16.mxu0 0
  %1609 = vmatpush1.bf16.msra.mxu0 %v1589
  %1610 = vmatprep.subr.bf16.mxu0 0
  %1611 = vmatpush1.bf16.msra.mxu0 %v1588
  %1612 = vmatprep.subr.bf16.mxu0 0
  %1613 = vmatpush1.bf16.msra.mxu0 %v1587
  %1614 = vmatprep.subr.bf16.mxu0 0
  %1615 = vmatpush1.bf16.msra.mxu0 %v1586
  %1616 = vmatprep.subr.bf16.mxu0 0
  %1617 = vmatpush2.bf16.msra.mxu0 0
  %1618 = vmatprep.subr.bf16.mxu0 0
  %1619 = vmatpush2.bf16.msra.mxu0 0
  %1620 = vmatprep.subr.bf16.mxu0 0
  %1621 = vmatpush2.bf16.msra.mxu0 0
  %1622 = vmatprep.subr.bf16.mxu0 0
  %1623 = vmatpush2.bf16.msra.mxu0 0
  %1624 = vmatprep.subr.bf16.mxu0 0
  %1625 = vmatpush2.bf16.msra.mxu0 0
  %1626 = vmatprep.subr.bf16.mxu0 0
  %1627 = vmatpush2.bf16.msra.mxu0 %v1598
  %1628 = vmatprep.subr.bf16.mxu0 0
  %1629 = vmatpush2.bf16.msra.mxu0 %v1595
  %1630 = vmatprep.subr.bf16.mxu0 0
  %1631 = vmatpush2.bf16.msra.mxu0 %v1594
  %1632 = vmatprep.mubr.bf16.mxu0 %v289
  %1633 = vmatmul.mubr.bf16.gmra.mxu0 %v278
  %v1634 = vpop.f32.mrf.mxu0
  %v1635 = vadd.f32 %v195, %v1634
  %v1636 = vpop.f32.mrf.mxu0
  %v1637 = vpop.f32.mrf.mxu0
  %v1638 = vadd.f32 %v200, %v1637
  %v1639 = vpop.f32.mrf.mxu0
  %1640 = vmatprep.mubr.bf16.mxu0 %v292
  %1641 = vmatmul.mubr.bf16.gmra.mxu0 %v280
  %v1642 = vpop.f32.mrf.mxu0
  %v1643 = vadd.f32 %v205, %v1642
  %v1644 = vpop.f32.mrf.mxu0
  %v1645 = vpop.f32.mrf.mxu0
  %v1646 = vadd.f32 %v210, %v1645
  %v1647 = vpop.f32.mrf.mxu0
  %1648 = vmatprep.mubr.bf16.mxu0 %v295
  %1649 = vmatmul.mubr.bf16.gmra.mxu0 %v282
  %v1650 = vpop.f32.mrf.mxu0
  %v1651 = vadd.f32 %v215, %v1650
  %v1652 = vpop.f32.mrf.mxu0
  %v1653 = vpop.f32.mrf.mxu0
  %v1654 = vadd.f32 %v220, %v1653
  %v1655 = vpop.f32.mrf.mxu0
  %1656 = vdwg.mxu0
  %v1657 = vsub.f32 0.0, %v1635
  %v1658 = vsub.f32 0.0, %v1638
  %v1659 = vsub.f32 0.0, %v1643
  %v1660 = vsub.f32 0.0, %v1646
  %v1661 = vsub.f32 0.0, %v1651
  %v1662 = vsub.f32 0.0, %v1654
  %v1663 = vmul.f32 %v1657, 1.442695
  %v1664 = vpow.pop %v1663
  %v1665 = vmul.f32 %v1658, 1.442695
  %v1666 = vpow.pop %v1665
  %v1667 = vmul.f32 %v1659, 1.442695
  %v1668 = vpow.pop %v1667
  %v1669 = vmul.f32 %v1660, 1.442695
  %v1670 = vpow.pop %v1669
  %v1671 = vmul.f32 %v1661, 1.442695
  %v1672 = vpow.pop %v1671
  %v1673 = vmul.f32 %v1662, 1.442695
  %v1674 = vpow.pop %v1673
  %v1675 = vadd.f32 %v1664, 1.0
  %v1676 = vadd.f32 %v1666, 1.0
  %v1677 = vadd.f32 %v1668, 1.0
  %v1678 = vadd.f32 %v1670, 1.0
  %v1679 = vadd.f32 %v1672, 1.0
  %v1680 = vadd.f32 %v1674, 1.0
  %v1681 = vrcp.pop %v1675
  %v1682 = vrcp.pop %v1676
  %v1683 = vrcp.pop %v1677
  %v1684 = vrcp.pop %v1678
  %v1685 = vrcp.pop %v1679
  %v1686 = vrcp.pop %v1680
  %v1687 = vmul.f32 %v1635, %v1681
  %v1688 = vmul.f32 %v1638, %v1682
  %v1689 = vmul.f32 %v1643, %v1683
  %v1690 = vmul.f32 %v1646, %v1684
  %v1691 = vmul.f32 %v1651, %v1685
  %v1692 = vmul.f32 %v1654, %v1686
  %v1693 = vld [vmem:[%s3 + $0x9] sm:$0x1]
  %v1694 = vlaneseq
  %v1695 = vshrl.u32 %v1694, 7
  %v1696 = vsub.s32 0, %v1695
  %v1697 = vrot.slane %v1693, %v1696
  %v1698 = vmul.f32 %v1687, %v1697
  %v1699 = vmul.f32 %v1688, %v1697
  %v1700 = vmul.f32 %v1689, %v1697
  %v1701 = vmul.f32 %v1690, %v1697
  %v1702 = vmul.f32 %v1691, %v1697
  %v1703 = vmul.f32 %v1692, %v1697
  %v1704 = vmax.f32 %v1559, %v1698
  %v1705 = vmax.f32 %v1560, %v1699
  %v1706 = vmax.f32 %v1561, %v1700
  %v1707 = vmax.f32 %v1562, %v1701
  %v1708 = vmax.f32 %v1563, %v1702
  %v1709 = vmax.f32 %v1564, %v1703
  %v1710 = vld [vmem:[#allocation2 + $0xf0] sm:$0xff]
  %v1711 = vld [vmem:[#allocation2 + $0xf8] sm:$0xff]
  %v1712 = vld [vmem:[#allocation2 + $0x100] sm:$0xff]
  %v1713 = vld [vmem:[#allocation2 + $0x108] sm:$0xff]
  %v1714 = vld [vmem:[#allocation2 + $0x110] sm:$0xff]
  %v1715 = vld [vmem:[#allocation2 + $0x118] sm:$0xff]
  %v1716 = vld [vmem:[#allocation2 + $0x120] sm:$0xff]
  %v1717 = vld [vmem:[#allocation2 + $0x128] sm:$0xff]
  %v1718 = vld [vmem:[#allocation2 + $0x130] sm:$0xff]
  %v1719 = vld [vmem:[#allocation2 + $0x138] sm:$0xff]
  %v1720 = vld [vmem:[#allocation2 + $0x140] sm:$0xff]
  %v1721 = vld [vmem:[#allocation2 + $0x148] sm:$0xff]
  %v1722 = vld [vmem:[#allocation2 + $0x150] sm:$0xff]
  %v1723 = vld [vmem:[#allocation2 + $0x158] sm:$0xff]
  %v1724 = vld [vmem:[#allocation2 + $0x160] sm:$0xff]
  %v1725 = vld [vmem:[#allocation2 + $0x168] sm:$0xff]
  %v1726 = vld [vmem:[#allocation2 + $0x170] sm:$0xff]
  %v1727 = vld [vmem:[#allocation2 + $0x178] sm:$0xff]
  %v1728 = vld [vmem:[#allocation2 + $0x180] sm:$0xff]
  %v1729 = vld [vmem:[#allocation2 + $0x188] sm:$0xff]
  %v1730 = vld [vmem:[#allocation2 + $0x190] sm:$0xff]
  %v1731 = vpack.c.bf16 %v1711, %v1710
  %v1732 = vpack.c.bf16 %v1713, %v1712
  %v1733 = vpack.c.bf16 %v1715, %v1714
  %v1734 = vpack.c.bf16 %v1717, %v1716
  %v1735 = vpack.c.bf16 %v1719, %v1718
  %v1736 = vpack.c.bf16 %v1721, %v1720
  %v1737 = vpack.c.bf16 %v1723, %v1722
  %v1738 = vpack.c.bf16 %v1725, %v1724
  %v1739 = vpack.c.bf16 %v1727, %v1726
  %v1740 = vpack.c.bf16 %v1729, %v1728
  %v1741 = vpack.c.bf16 %v1730, %v1730
  %v1743 = vsel %vm297, %v1741, 0
  %1745 = vmatprep.subr.bf16.mxu0 0
  %1746 = vmatpush1.bf16.msra.mxu0 %v1738
  %1747 = vmatprep.subr.bf16.mxu0 0
  %1748 = vmatpush1.bf16.msra.mxu0 %v1737
  %1749 = vmatprep.subr.bf16.mxu0 0
  %1750 = vmatpush1.bf16.msra.mxu0 %v1736
  %1751 = vmatprep.subr.bf16.mxu0 0
  %1752 = vmatpush1.bf16.msra.mxu0 %v1735
  %1753 = vmatprep.subr.bf16.mxu0 0
  %1754 = vmatpush1.bf16.msra.mxu0 %v1734
  %1755 = vmatprep.subr.bf16.mxu0 0
  %1756 = vmatpush1.bf16.msra.mxu0 %v1733
  %1757 = vmatprep.subr.bf16.mxu0 0
  %1758 = vmatpush1.bf16.msra.mxu0 %v1732
  %1759 = vmatprep.subr.bf16.mxu0 0
  %1760 = vmatpush1.bf16.msra.mxu0 %v1731
  %1761 = vmatprep.subr.bf16.mxu0 0
  %1762 = vmatpush2.bf16.msra.mxu0 0
  %1763 = vmatprep.subr.bf16.mxu0 0
  %1764 = vmatpush2.bf16.msra.mxu0 0
  %1765 = vmatprep.subr.bf16.mxu0 0
  %1766 = vmatpush2.bf16.msra.mxu0 0
  %1767 = vmatprep.subr.bf16.mxu0 0
  %1768 = vmatpush2.bf16.msra.mxu0 0
  %1769 = vmatprep.subr.bf16.mxu0 0
  %1770 = vmatpush2.bf16.msra.mxu0 0
  %1771 = vmatprep.subr.bf16.mxu0 0
  %1772 = vmatpush2.bf16.msra.mxu0 %v1743
  %1773 = vmatprep.subr.bf16.mxu0 0
  %1774 = vmatpush2.bf16.msra.mxu0 %v1740
  %1775 = vmatprep.subr.bf16.mxu0 0
  %1776 = vmatpush2.bf16.msra.mxu0 %v1739
  %1777 = vmatprep.mubr.bf16.mxu0 %v289
  %1778 = vmatmul.mubr.bf16.gmra.mxu0 %v278
  %v1779 = vpop.f32.mrf.mxu0
  %v1780 = vadd.f32 %v195, %v1779
  %v1781 = vpop.f32.mrf.mxu0
  %v1782 = vpop.f32.mrf.mxu0
  %v1783 = vadd.f32 %v200, %v1782
  %v1784 = vpop.f32.mrf.mxu0
  %1785 = vmatprep.mubr.bf16.mxu0 %v292
  %1786 = vmatmul.mubr.bf16.gmra.mxu0 %v280
  %v1787 = vpop.f32.mrf.mxu0
  %v1788 = vadd.f32 %v205, %v1787
  %v1789 = vpop.f32.mrf.mxu0
  %v1790 = vpop.f32.mrf.mxu0
  %v1791 = vadd.f32 %v210, %v1790
  %v1792 = vpop.f32.mrf.mxu0
  %1793 = vmatprep.mubr.bf16.mxu0 %v295
  %1794 = vmatmul.mubr.bf16.gmra.mxu0 %v282
  %v1795 = vpop.f32.mrf.mxu0
  %v1796 = vadd.f32 %v215, %v1795
  %v1797 = vpop.f32.mrf.mxu0
  %v1798 = vpop.f32.mrf.mxu0
  %v1799 = vadd.f32 %v220, %v1798
  %v1800 = vpop.f32.mrf.mxu0
  %1801 = vdwg.mxu0
  %v1802 = vsub.f32 0.0, %v1780
  %v1803 = vsub.f32 0.0, %v1783
  %v1804 = vsub.f32 0.0, %v1788
  %v1805 = vsub.f32 0.0, %v1791
  %v1806 = vsub.f32 0.0, %v1796
  %v1807 = vsub.f32 0.0, %v1799
  %v1808 = vmul.f32 %v1802, 1.442695
  %v1809 = vpow.pop %v1808
  %v1810 = vmul.f32 %v1803, 1.442695
  %v1811 = vpow.pop %v1810
  %v1812 = vmul.f32 %v1804, 1.442695
  %v1813 = vpow.pop %v1812
  %v1814 = vmul.f32 %v1805, 1.442695
  %v1815 = vpow.pop %v1814
  %v1816 = vmul.f32 %v1806, 1.442695
  %v1817 = vpow.pop %v1816
  %v1818 = vmul.f32 %v1807, 1.442695
  %v1819 = vpow.pop %v1818
  %v1820 = vadd.f32 %v1809, 1.0
  %v1821 = vadd.f32 %v1811, 1.0
  %v1822 = vadd.f32 %v1813, 1.0
  %v1823 = vadd.f32 %v1815, 1.0
  %v1824 = vadd.f32 %v1817, 1.0
  %v1825 = vadd.f32 %v1819, 1.0
  %v1826 = vrcp.pop %v1820
  %v1827 = vrcp.pop %v1821
  %v1828 = vrcp.pop %v1822
  %v1829 = vrcp.pop %v1823
  %v1830 = vrcp.pop %v1824
  %v1831 = vrcp.pop %v1825
  %v1832 = vmul.f32 %v1780, %v1826
  %v1833 = vmul.f32 %v1783, %v1827
  %v1834 = vmul.f32 %v1788, %v1828
  %v1835 = vmul.f32 %v1791, %v1829
  %v1836 = vmul.f32 %v1796, %v1830
  %v1837 = vmul.f32 %v1799, %v1831
  %v1838 = vld [vmem:[%s3 + $0xa] sm:$0x1]
  %v1839 = vlaneseq
  %v1840 = vshrl.u32 %v1839, 7
  %v1841 = vsub.s32 0, %v1840
  %v1842 = vrot.slane %v1838, %v1841
  %v1843 = vmul.f32 %v1832, %v1842
  %v1844 = vmul.f32 %v1833, %v1842
  %v1845 = vmul.f32 %v1834, %v1842
  %v1846 = vmul.f32 %v1835, %v1842
  %v1847 = vmul.f32 %v1836, %v1842
  %v1848 = vmul.f32 %v1837, %v1842
  %v1849 = vmax.f32 %v1704, %v1843
  %v1850 = vmax.f32 %v1705, %v1844
  %v1851 = vmax.f32 %v1706, %v1845
  %v1852 = vmax.f32 %v1707, %v1846
  %v1853 = vmax.f32 %v1708, %v1847
  %v1854 = vmax.f32 %v1709, %v1848
  %v1855 = vld [vmem:[#allocation2 + $0x108] sm:$0xff]
  %v1856 = vld [vmem:[#allocation2 + $0x110] sm:$0xff]
  %v1857 = vld [vmem:[#allocation2 + $0x118] sm:$0xff]
  %v1858 = vld [vmem:[#allocation2 + $0x120] sm:$0xff]
  %v1859 = vld [vmem:[#allocation2 + $0x128] sm:$0xff]
  %v1860 = vld [vmem:[#allocation2 + $0x130] sm:$0xff]
  %v1861 = vld [vmem:[#allocation2 + $0x138] sm:$0xff]
  %v1862 = vld [vmem:[#allocation2 + $0x140] sm:$0xff]
  %v1863 = vld [vmem:[#allocation2 + $0x148] sm:$0xff]
  %v1864 = vld [vmem:[#allocation2 + $0x150] sm:$0xff]
  %v1865 = vld [vmem:[#allocation2 + $0x158] sm:$0xff]
  %v1866 = vld [vmem:[#allocation2 + $0x160] sm:$0xff]
  %v1867 = vld [vmem:[#allocation2 + $0x168] sm:$0xff]
  %v1868 = vld [vmem:[#allocation2 + $0x170] sm:$0xff]
  %v1869 = vld [vmem:[#allocation2 + $0x178] sm:$0xff]
  %v1870 = vld [vmem:[#allocation2 + $0x180] sm:$0xff]
  %v1871 = vld [vmem:[#allocation2 + $0x188] sm:$0xff]
  %v1872 = vld [vmem:[#allocation2 + $0x190] sm:$0xff]
  %v1873 = vld [vmem:[#allocation2 + $0x198] sm:$0xff]
  %v1874 = vld [vmem:[#allocation2 + $0x1a0] sm:$0xff]
  %v1875 = vld [vmem:[#allocation2 + $0x1a8] sm:$0xff]
  %v1876 = vpack.c.bf16 %v1856, %v1855
  %v1877 = vpack.c.bf16 %v1858, %v1857
  %v1878 = vpack.c.bf16 %v1860, %v1859
  %v1879 = vpack.c.bf16 %v1862, %v1861
  %v1880 = vpack.c.bf16 %v1864, %v1863
  %v1881 = vpack.c.bf16 %v1866, %v1865
  %v1882 = vpack.c.bf16 %v1868, %v1867
  %v1883 = vpack.c.bf16 %v1870, %v1869
  %v1884 = vpack.c.bf16 %v1872, %v1871
  %v1885 = vpack.c.bf16 %v1874, %v1873
  %v1886 = vpack.c.bf16 %v1875, %v1875
  %v1888 = vsel %vm297, %v1886, 0
  %1890 = vmatprep.subr.bf16.mxu0 0
  %1891 = vmatpush1.bf16.msra.mxu0 %v1883
  %1892 = vmatprep.subr.bf16.mxu0 0
  %1893 = vmatpush1.bf16.msra.mxu0 %v1882
  %1894 = vmatprep.subr.bf16.mxu0 0
  %1895 = vmatpush1.bf16.msra.mxu0 %v1881
  %1896 = vmatprep.subr.bf16.mxu0 0
  %1897 = vmatpush1.bf16.msra.mxu0 %v1880
  %1898 = vmatprep.subr.bf16.mxu0 0
  %1899 = vmatpush1.bf16.msra.mxu0 %v1879
  %1900 = vmatprep.subr.bf16.mxu0 0
  %1901 = vmatpush1.bf16.msra.mxu0 %v1878
  %1902 = vmatprep.subr.bf16.mxu0 0
  %1903 = vmatpush1.bf16.msra.mxu0 %v1877
  %1904 = vmatprep.subr.bf16.mxu0 0
  %1905 = vmatpush1.bf16.msra.mxu0 %v1876
  %1906 = vmatprep.subr.bf16.mxu0 0
  %1907 = vmatpush2.bf16.msra.mxu0 0
  %1908 = vmatprep.subr.bf16.mxu0 0
  %1909 = vmatpush2.bf16.msra.mxu0 0
  %1910 = vmatprep.subr.bf16.mxu0 0
  %1911 = vmatpush2.bf16.msra.mxu0 0
  %1912 = vmatprep.subr.bf16.mxu0 0
  %1913 = vmatpush2.bf16.msra.mxu0 0
  %1914 = vmatprep.subr.bf16.mxu0 0
  %1915 = vmatpush2.bf16.msra.mxu0 0
  %1916 = vmatprep.subr.bf16.mxu0 0
  %1917 = vmatpush2.bf16.msra.mxu0 %v1888
  %1918 = vmatprep.subr.bf16.mxu0 0
  %1919 = vmatpush2.bf16.msra.mxu0 %v1885
  %1920 = vmatprep.subr.bf16.mxu0 0
  %1921 = vmatpush2.bf16.msra.mxu0 %v1884
  %1922 = vmatprep.mubr.bf16.mxu0 %v289
  %1923 = vmatmul.mubr.bf16.gmra.mxu0 %v278
  %v1924 = vpop.f32.mrf.mxu0
  %v1925 = vadd.f32 %v195, %v1924
  %v1926 = vpop.f32.mrf.mxu0
  %v1927 = vpop.f32.mrf.mxu0
  %v1928 = vadd.f32 %v200, %v1927
  %v1929 = vpop.f32.mrf.mxu0
  %1930 = vmatprep.mubr.bf16.mxu0 %v292
  %1931 = vmatmul.mubr.bf16.gmra.mxu0 %v280
  %v1932 = vpop.f32.mrf.mxu0
  %v1933 = vadd.f32 %v205, %v1932
  %v1934 = vpop.f32.mrf.mxu0
  %v1935 = vpop.f32.mrf.mxu0
  %v1936 = vadd.f32 %v210, %v1935
  %v1937 = vpop.f32.mrf.mxu0
  %1938 = vmatprep.mubr.bf16.mxu0 %v295
  %1939 = vmatmul.mubr.bf16.gmra.mxu0 %v282
  %v1940 = vpop.f32.mrf.mxu0
  %v1941 = vadd.f32 %v215, %v1940
  %v1942 = vpop.f32.mrf.mxu0
  %v1943 = vpop.f32.mrf.mxu0
  %v1944 = vadd.f32 %v220, %v1943
  %v1945 = vpop.f32.mrf.mxu0
  %1946 = vdwg.mxu0
  %v1947 = vsub.f32 0.0, %v1925
  %v1948 = vsub.f32 0.0, %v1928
  %v1949 = vsub.f32 0.0, %v1933
  %v1950 = vsub.f32 0.0, %v1936
  %v1951 = vsub.f32 0.0, %v1941
  %v1952 = vsub.f32 0.0, %v1944
  %v1953 = vmul.f32 %v1947, 1.442695
  %v1954 = vpow.pop %v1953
  %v1955 = vmul.f32 %v1948, 1.442695
  %v1956 = vpow.pop %v1955
  %v1957 = vmul.f32 %v1949, 1.442695
  %v1958 = vpow.pop %v1957
  %v1959 = vmul.f32 %v1950, 1.442695
  %v1960 = vpow.pop %v1959
  %v1961 = vmul.f32 %v1951, 1.442695
  %v1962 = vpow.pop %v1961
  %v1963 = vmul.f32 %v1952, 1.442695
  %v1964 = vpow.pop %v1963
  %v1965 = vadd.f32 %v1954, 1.0
  %v1966 = vadd.f32 %v1956, 1.0
  %v1967 = vadd.f32 %v1958, 1.0
  %v1968 = vadd.f32 %v1960, 1.0
  %v1969 = vadd.f32 %v1962, 1.0
  %v1970 = vadd.f32 %v1964, 1.0
  %v1971 = vrcp.pop %v1965
  %v1972 = vrcp.pop %v1966
  %v1973 = vrcp.pop %v1967
  %v1974 = vrcp.pop %v1968
  %v1975 = vrcp.pop %v1969
  %v1976 = vrcp.pop %v1970
  %v1977 = vmul.f32 %v1925, %v1971
  %v1978 = vmul.f32 %v1928, %v1972
  %v1979 = vmul.f32 %v1933, %v1973
  %v1980 = vmul.f32 %v1936, %v1974
  %v1981 = vmul.f32 %v1941, %v1975
  %v1982 = vmul.f32 %v1944, %v1976
  %v1983 = vld [vmem:[%s3 + $0xb] sm:$0x1]
  %v1984 = vlaneseq
  %v1985 = vshrl.u32 %v1984, 7
  %v1986 = vsub.s32 0, %v1985
  %v1987 = vrot.slane %v1983, %v1986
  %v1988 = vmul.f32 %v1977, %v1987
  %v1989 = vmul.f32 %v1978, %v1987
  %v1990 = vmul.f32 %v1979, %v1987
  %v1991 = vmul.f32 %v1980, %v1987
  %v1992 = vmul.f32 %v1981, %v1987
  %v1993 = vmul.f32 %v1982, %v1987
  %v1994 = vmax.f32 %v1849, %v1988
  %v1995 = vmax.f32 %v1850, %v1989
  %v1996 = vmax.f32 %v1851, %v1990
  %v1997 = vmax.f32 %v1852, %v1991
  %v1998 = vmax.f32 %v1853, %v1992
  %v1999 = vmax.f32 %v1854, %v1993
  %v2000 = vld [vmem:[%s0] sm:$0xf]
  %v2001 = vld [vmem:[%s0 + $0x4] sm:$0xf]
  %v2002 = vld [vmem:[%s0 + $0x8] sm:$0xf]
  %v2003 = vld [vmem:[%s0 + $0xc] sm:$0xf]
  %v2004 = vpack.c.bf16 %v1995, %v1994
  %v2005 = vpack.c.bf16 %v1997, %v1996
  %v2006 = vpack.c.bf16 %v1999, %v1998
  %v2011 = vunpack.c.l.b16 %v2000
  %v2012 = vunpack.c.l.b16 %v2001
  %v2013 = vunpack.c.l.b16 %v2002
  %v2014 = vunpack.c.l.b16 %v2003
  %v2015 = vpack.c.b16 %v2012, %v2011
  %v2016 = vpack.c.b16 %v2014, %v2013
  %v2019 = vld [vmem:[%s8] sm:$0x7]
  %v2020 = vld [vmem:[%s9] sm:$0x1f]
  %2022 = vset.pattern.permute.xlu0 0
  %2023 = vperm.xlu0 %2022, %v2020
  %v2024 = vpop.permute.xlu0 %2023
  %vm2026 = vcmask 654336
  %v2028 = vsel %vm2026, %v2019, 0
  %2030 = vmatprep.subr.bf16.mxu0 0
  %2031 = vmatpush1.bf16.msra.mxu0 0
  %2032 = vmatprep.subr.bf16.mxu0 0
  %2033 = vmatpush1.bf16.msra.mxu0 0
  %2034 = vmatprep.subr.bf16.mxu0 0
  %2035 = vmatpush1.bf16.msra.mxu0 0
  %2036 = vmatprep.subr.bf16.mxu0 0
  %2037 = vmatpush1.bf16.msra.mxu0 %v2006
  %2038 = vmatprep.subr.bf16.mxu0 0
  %2039 = vmatpush1.bf16.msra.mxu0 %v2005
  %2040 = vmatprep.subr.bf16.mxu0 0
  %2041 = vmatpush1.bf16.msra.mxu0 %v2004
  %2042 = vmatprep.subr.bf16.mxu0 0
  %2043 = vmatpush1.bf16.msra.mxu0 %v2016
  %2044 = vmatprep.subr.bf16.mxu0 0
  %2045 = vmatpush1.bf16.msra.mxu0 %v2015
  %2046 = vmatprep.subr.bf16.mxu0 0
  %2047 = vmatpush2.bf16.msra.mxu0 0
  %2048 = vmatprep.subr.bf16.mxu0 0
  %2049 = vmatpush2.bf16.msra.mxu0 0
  %2050 = vmatprep.subr.bf16.mxu0 0
  %2051 = vmatpush2.bf16.msra.mxu0 0
  %2052 = vmatprep.subr.bf16.mxu0 0
  %2053 = vmatpush2.bf16.msra.mxu0 0
  %2054 = vmatprep.subr.bf16.mxu0 0
  %2055 = vmatpush2.bf16.msra.mxu0 0
  %2056 = vmatprep.subr.bf16.mxu0 0
  %2057 = vmatpush2.bf16.msra.mxu0 0
  %2058 = vmatprep.subr.bf16.mxu0 0
  %2059 = vmatpush2.bf16.msra.mxu0 0
  %2060 = vmatprep.subr.bf16.mxu0 0
  %2061 = vmatpush2.bf16.msra.mxu0 0
  %2062 = vmatprep.mubr.bf16.mxu0 0
  %2063 = vmatmul.mubr.bf16.gmra.mxu0 %v2028
  %v2064 = vpop.f32.mrf.mxu0
  %v2065 = vadd.f32 %v2024, %v2064
  %v2066 = vpop.f32.mrf.mxu0
  %v2067 = vpop.f32.mrf.mxu0
  %v2068 = vpop.f32.mrf.mxu0
  %2069 = vdwg.mxu0
  %v2070 = vlaneseq
  %v2071 = vshrl.u32 %v2070, 7
  %vm2072 = vcmask 1044480
  %v2073 = vsel %vm2072, %v2065, -inf
  %v2074 = vrot.slane %v2073, 4
  %v2075 = vmax.f32 %v2073, %v2074
  %v2076 = vrot.slane %v2075, 2
  %v2077 = vmax.f32 %v2075, %v2076
  %v2078 = vrot.slane %v2077, 1
  %v2079 = vmax.f32 %v2077, %v2078
  %vm2080 = vcmp.eq.f32.partialorder %v2065, %v2079
  %v2081 = vcvt.s32.f32 %v2071
  %v2082 = vsel %vm2080, %v2081, 5.0
  %v2083 = vsel %vm2072, %v2082, inf
  %v2084 = vrot.slane %v2083, 4
  %v2085 = vmin.f32 %v2083, %v2084
  %v2086 = vrot.slane %v2085, 2
  %v2087 = vmin.f32 %v2085, %v2086
  %v2088 = vrot.slane %v2087, 1
  %v2089 = vmin.f32 %v2087, %v2088
  %v2090 = vcvt.f32.s32.to.zero.pseudo %v2089
  %2091 = vst [vmem:[%s10] sm:$0x1] %v2090
  %v2092 = vld [vmem:[%s4] sm:$0x1]
  %v2093 = vsub.f32 %v2065, %v2079
  %v2094 = vmul.f32 %v2093, 1.442695
  %v2095 = vpow.pop %v2094
  %v2096 = vsel %vm2072, %v2095, 0.0
  %v2097 = vrot.slane %v2096, 4
  %v2098 = vadd.f32 %v2096, %v2097
  %v2099 = vrot.slane %v2098, 2
  %v2100 = vadd.f32 %v2098, %v2099
  %v2101 = vrot.slane %v2100, 1
  %v2102 = vadd.f32 %v2100, %v2101
  %v2103 = vlaneseq
  %v2104 = vshrl.u32 %v2103, 7
  %v2105 = vsub.s32 0, %v2104
  %v2106 = vrot.slane %v2092, %v2105
  %vm2107 = vcmp.eq.s32.totalorder %v2071, %v2106
  %v2108 = vsel %vm2107, %v2093, 0.0
  %v2109 = vsel %vm2072, %v2108, 0.0
  %v2110 = vrot.slane %v2109, 4
  %v2111 = vadd.f32 %v2109, %v2110
  %v2112 = vrot.slane %v2111, 2
  %v2113 = vadd.f32 %v2111, %v2112
  %v2114 = vrot.slane %v2113, 1
  %v2115 = vadd.f32 %v2113, %v2114
  %v2116 = vlog2.pop %v2102
  %v2117 = vmul.f32 %v2116, 0.6931472
  %v2118 = vsub.f32 %v2117, %v2115
  %vm2119 = vcmp.ne.s32.totalorder %v2092, 4294967196
  %v2120 = vsel %vm2119, %v2118, 0.0
  %v2121 = vld [vmem:[%s5] sm:$0x1]
  %v2122 = vmul.f32 %v2120, %v2121
  %2123 = vst [vmem:[%s11] sm:$0x1] %v2122
  // Predicated region
  $region42: #{cse_tagger_forward.1} parent=0 // pred_check
    _
  $region43: #{cse_tagger_forward.1} parent=0 // pred_check_branch
    %2125 = sbr.rel (0) target = $region45
  $region44: #{cse_tagger_forward.1} parent=0 // pred_region
    _
  $region45: #{cse_tagger_forward.1} parent=0 // pred_fallthru
    _
  // Predicated region
  $region46: #{cse_tagger_forward.1} parent=0 // pred_check
    _
  $region47: #{cse_tagger_forward.1} parent=0 // pred_check_branch
    %2127 = sbr.rel (0) target = $region49
  $region48: #{cse_tagger_forward.1} parent=0 // pred_region
    _
  $region49: #{cse_tagger_forward.1} parent=0 // pred_fallthru
    _
  // Predicated region
  $region50: #{cse_tagger_forward.1} parent=0 // pred_check
    _
  $region51: #{cse_tagger_forward.1} parent=0 // pred_check_branch
    %2129 = sbr.rel (0) target = $region53
  $region52: #{cse_tagger_forward.1} parent=0 // pred_region
    _
  $region53: #{cse_tagger_forward.1} parent=0 // pred_fallthru
    _
  // Predicated region
  $region54: #{cse_tagger_forward.1} parent=0 // pred_check
    _
  $region55: #{cse_tagger_forward.1} parent=0 // pred_check_branch
    %2131 = sbr.rel (0) target = $region57
  $region56: #{cse_tagger_forward.1} parent=0 // pred_region
    _
  $region57: #{cse_tagger_forward.1} parent=0 // pred_fallthru
    _

</llo_original>
